<compile_context>
chip_gen: v7x
topology: tpu7x:2x2x1
jax: 0.10.0
libtpu: 0.0.40
codegen_flags: <defaults>
</compile_context>

<pallas_src>
import functools

import jax
import jax.numpy as jnp
from jax.experimental import pallas as pl
from jax.experimental.pallas import tpu as pltpu


# Synthetic EdgeSpeechNet-style architecture (encoder must end with 45 ch to
# match the PyTorch decoder Linear(in_features=45, ...)).
STEM_OUT = 32          # stem conv output channels
RES_MID = 16           # residual-block bottleneck channels
NUM_RES_BLOCKS = 2
ENCODER_OUT = 45       # fixed by the decoder
ENCODER_OUT_PAD = 48   # zero-padded to a sublane-friendly multiple of 8
BATCH_BLOCK = 8        # images per grid step (clipped to N)

# 3x3 taps in (kh, kw) order -> (dh, dw) offsets.
_TAPS = tuple((kh - 1, kw - 1) for kh in range(3) for kw in range(3))


# ----------------------------------------------------------------------------
# Fused Pallas kernel: stem + residual blocks + pooled 1x1/Linear + log_softmax
# ----------------------------------------------------------------------------

def _fused_forward_kernel(
    x_ref,       # (1, 1, M)        f32   B flattened images, M = B*H*W on lanes
    mask_ref,    # (9, M)           f32   per-tap halo validity masks (1/0)
    stem_w_ref,  # (C0, 9)          f32   stem weights [cout, tap]
    stem_b_ref,  # (C0, 1)          f32
    rw1_ref,     # (NB, CM, 9*C0)   bf16  residual conv1 weights [cout, tap*cin]
    rb1_ref,     # (NB, CM, 1)      f32
    rw2_ref,     # (NB, C0, 9*CM)   bf16  residual conv2 weights
    rb2_ref,     # (NB, C0, 1)      f32
    outw_ref,    # (CEP, C0)        f32   1x1 conv, channel-major, zero-pad rows
    outb_ref,    # (CEP, 1)         f32
    decw_ref,    # (KP, CEP)        f32   decoder Linear, channel-major, zero-pad
    decb_ref,    # (KP, 1)          f32   pad rows = -1e30 (vanish in softmax)
    o_ref,       # (1, KP, B)       f32   log-probs (wrapper transposes/slices)
    pmat_ref,    # (9*C0, M)        bf16  im2col patch scratch
    *, H, W, B, n_blocks,
):
    HW = H * W
    M = B * HW
    C0 = stem_w_ref.shape[0]
    CM = rw1_ref.shape[1]

    def tap_shift(v, t):
        """Shifted + halo-masked activation for 3x3 tap t; v is (c, M) f32."""
        dh, dw = _TAPS[t]
        s = dh * W + dw
        out = v if s == 0 else pltpu.roll(v, shift=(-s) % M, axis=1)
        if (dh, dw) != (0, 0):
            # 0/1 mask zeros halo taps AND cross-image wrap-around from the roll.
            out = out * mask_ref[t:t + 1, :]
        return out

    # ---- stem: 3x3 conv (1 -> C0) as 9 shifted broadcast-MACs on the VPU
    #      (K = 9 is far too shallow to be worth an MXU pass). ----
    x0 = x_ref[0]                                                   # (1, M) f32
    x = stem_w_ref[:, 0:1] * tap_shift(x0, 0)
    for t in range(1, 9):
        x = x + stem_w_ref[:, t:t + 1] * tap_shift(x0, t)
    x = x + stem_b_ref[...]                                         # (C0, M) f32

    # ---- residual blocks: x = x + conv2(relu(conv1(x))) ----
    def conv3x3(v, cin, w, b):
        # im2col with spatial on lanes: each tap is an XLU roll + VPU mask-mul
        # + lane-dense bf16 store; the conv is ONE MXU matmul with K = 9*cin.
        for t in range(9):
            pmat_ref[t * cin:(t + 1) * cin, :] = (
                tap_shift(v, t).astype(jnp.bfloat16))
        # Invariant: only rows [0, 9*cin) are read below; stale rows beyond
        # that (left over from a wider previous conv) are never consumed.
        y = jnp.dot(w, pmat_ref[0:9 * cin, :],
                    preferred_element_type=jnp.float32)
        return y + b                                                # (cout, M) f32

    for blk in range(n_blocks):
        h = jnp.maximum(conv3x3(x, C0, rw1_ref[blk], rb1_ref[blk]), 0.0)  # (CM, M)
        x = x + conv3x3(h, CM, rw2_ref[blk], rb2_ref[blk])                # (C0, M)

    # ---- head: per-image global average pool, then the (linear) 1x1 conv and
    #      the decoder Linear on the pooled vectors (pool/1x1 commute exactly),
    #      finished with log_softmax.  All f32, batched over the B images. ----
    cols = [jnp.sum(x[:, b * HW:(b + 1) * HW], axis=1, keepdims=True)
            for b in range(B)]
    pooled = jnp.concatenate(cols, axis=1) * jnp.float32(1.0 / HW)        # (C0, B)
    feat = jnp.dot(outw_ref[...], pooled,
                   preferred_element_type=jnp.float32) + outb_ref[...]    # (CEP, B)
    logits = jnp.dot(decw_ref[...], feat,
                     preferred_element_type=jnp.float32) + decb_ref[...]  # (KP, B)
    m = jnp.max(logits, axis=0, keepdims=True)                            # (1, B)
    z = logits - m
    lse = jnp.log(jnp.sum(jnp.exp(z), axis=0, keepdims=True))
    o_ref[0] = z - lse                                                    # (KP, B)


# ----------------------------------------------------------------------------
# Wrapper: input/weight prep + single pallas_call
# ----------------------------------------------------------------------------

@jax.jit
def edgespeechnet_forward(params, x_nchw):
    """x_nchw: (N, 1, H, W) float32 (PyTorch layout). Returns (N, K) log-probs."""
    N, _, H, W = x_nchw.shape
    HW = H * W
    C0, CM, NB = STEM_OUT, RES_MID, NUM_RES_BLOCKS
    CE, CEP = ENCODER_OUT, ENCODER_OUT_PAD
    K = params["dec_w"].shape[-1]
    KP = max(8, ((K + 7) // 8) * 8)

    # Batch blocking: B images per grid step; pad N up to a multiple of B.
    B = max(1, min(BATCH_BLOCK, N))
    nsteps = pl.cdiv(N, B)
    Npad = nsteps * B
    M = B * HW

    xf = x_nchw.reshape(N, HW).astype(jnp.float32)
    if Npad != N:
        xf = jnp.concatenate(
            [xf, jnp.zeros((Npad - N, HW), jnp.float32)], axis=0)
    x_blocks = xf.reshape(nsteps, 1, M)

    # Per-tap halo masks (1 = in-bounds, 0 = halo / cross-image wrap), with the
    # flattened spatial axis on lanes; built once here, replicated to the kernel.
    pos = jnp.arange(M, dtype=jnp.int32)
    r = (pos % HW) // W
    c = pos % W
    mask_rows = []
    for (dh, dw) in _TAPS:
        ok = jnp.ones((M,), bool)
        if dh == -1:
            ok = ok & (r >= 1)
        if dh == 1:
            ok = ok & (r <= H - 2)
        if dw == -1:
            ok = ok & (c >= 1)
        if dw == 1:
            ok = ok & (c <= W - 2)
        mask_rows.append(ok)
    tap_mask = jnp.stack(mask_rows).astype(jnp.float32)              # (9, M)

    # Weight prep: channel-major ([cout, ...]) so conv outputs land with the
    # spatial axis on lanes; 3x3 weights bf16 for the MXU, everything else f32.
    def imat(w):  # (3,3,cin,cout) -> (cout, 9*cin), tap-major to match pmat rows
        cin, cout = w.shape[2], w.shape[3]
        return w.transpose(3, 0, 1, 2).reshape(cout, 9 * cin).astype(jnp.bfloat16)

    stem_w = params["stem_w"].transpose(3, 0, 1, 2).reshape(C0, 9)   # f32 (VPU)
    stem_b = params["stem_b"].reshape(C0, 1)
    rw1 = jnp.stack([imat(w1) for (w1, _, _, _) in params["res"]])   # (NB,CM,9*C0)
    rb1 = jnp.stack([b1.reshape(CM, 1) for (_, b1, _, _) in params["res"]])
    rw2 = jnp.stack([imat(w2) for (_, _, w2, _) in params["res"]])   # (NB,C0,9*CM)
    rb2 = jnp.stack([b2.reshape(C0, 1) for (_, _, _, b2) in params["res"]])
    out_w = jnp.zeros((CEP, C0), jnp.float32).at[:CE].set(params["out_w"].T)
    out_b = jnp.zeros((CEP, 1), jnp.float32).at[:CE].set(
        params["out_b"].reshape(CE, 1))
    dec_w = jnp.zeros((KP, CEP), jnp.float32).at[:K, :CE].set(params["dec_w"].T)
    dec_b = jnp.full((KP, 1), -1e30, jnp.float32).at[:K].set(
        params["dec_b"].reshape(K, 1))

    kern = functools.partial(_fused_forward_kernel, H=H, W=W, B=B, n_blocks=NB)

    def rep(shape):
        # Whole-array block, same block every grid step (stays VMEM-resident).
        return pl.BlockSpec(shape, lambda n: (0,) * len(shape))

    grid_spec = pltpu.PrefetchScalarGridSpec(
        num_scalar_prefetch=0,
        grid=(nsteps,),
        in_specs=[
            pl.BlockSpec((1, 1, M), lambda n: (n, 0, 0)),
            rep((9, M)),
            rep((C0, 9)), rep((C0, 1)),
            rep((NB, CM, 9 * C0)), rep((NB, CM, 1)),
            rep((NB, C0, 9 * CM)), rep((NB, C0, 1)),
            rep((CEP, C0)), rep((CEP, 1)),
            rep((KP, CEP)), rep((KP, 1)),
        ],
        out_specs=pl.BlockSpec((1, KP, B), lambda n: (n, 0, 0)),
        scratch_shapes=[pltpu.VMEM((9 * C0, M), jnp.bfloat16)],     # im2col patches
    )

    out_kb = pl.pallas_call(
        kern,
        out_shape=jax.ShapeDtypeStruct((nsteps, KP, B), jnp.float32),
        grid_spec=grid_spec,
        compiler_params=pltpu.CompilerParams(
            dimension_semantics=("parallel",)),
    )(x_blocks, tap_mask, stem_w, stem_b, rw1, rb1, rw2, rb2,
      out_w, out_b, dec_w, dec_b)

    # (nsteps, KP, B) -> (Npad, KP) -> strip batch/class padding.
    return jnp.transpose(out_kb, (0, 2, 1)).reshape(Npad, KP)[:N, :K]


# ----------------------------------------------------------------------------
# Parameter init (PyTorch-style uniform fan-in init) and pure-JAX reference
# ----------------------------------------------------------------------------

def _conv_init(key, kh, kw, cin, cout):
    kw_, kb_ = jax.random.split(key)
    fan_in = kh * kw * cin
    scale = 1.0 / jnp.sqrt(jnp.float32(fan_in))
    w = jax.random.uniform(kw_, (kh, kw, cin, cout), jnp.float32, -scale, scale)
    b = jax.random.uniform(kb_, (cout,), jnp.float32, -scale, scale)
    return w, b


def init_params(key, target_classes_n):
    params = {}
    keys = jax.random.split(key, 3 + 2 * NUM_RES_BLOCKS)
    k_iter = iter(keys)

    params["stem_w"], params["stem_b"] = _conv_init(next(k_iter), 3, 3, 1, STEM_OUT)

    params["res"] = []
    for _ in range(NUM_RES_BLOCKS):
        w1, b1 = _conv_init(next(k_iter), 3, 3, STEM_OUT, RES_MID)
        w2, b2 = _conv_init(next(k_iter), 3, 3, RES_MID, STEM_OUT)
        params["res"].append((w1, b1, w2, b2))

    w_out, b_out = _conv_init(next(k_iter), 1, 1, STEM_OUT, ENCODER_OUT)
    params["out_w"] = w_out.reshape(STEM_OUT, ENCODER_OUT)
    params["out_b"] = b_out

    kd1, kd2 = jax.random.split(next(k_iter))
    scale = 1.0 / jnp.sqrt(jnp.float32(ENCODER_OUT))
    params["dec_w"] = jax.random.uniform(
        kd1, (ENCODER_OUT, target_classes_n), jnp.float32, -scale, scale)
    params["dec_b"] = jax.random.uniform(
        kd2, (target_classes_n,), jnp.float32, -scale, scale)
    return params


def _reference_forward(params, x_nchw):
    """Pure-JAX (XLA) reference with the SAME rounding as the kernel:
    residual-block convs use bf16-rounded activations AND weights (MXU-style,
    f32 accumulation); stem conv and the whole head stay in f32."""
    hi = jax.lax.Precision.HIGHEST

    def bf16_round(v):
        return v.astype(jnp.bfloat16).astype(jnp.float32)

    def conv3x3(x, w, b, round_ops):
        if round_ops:
            x = bf16_round(x)
            w = bf16_round(w)
        y = jax.lax.conv_general_dilated(
            x, w, window_strides=(1, 1), padding=((1, 1), (1, 1)),
            dimension_numbers=("NHWC", "HWIO", "NHWC"), precision=hi)
        return y + b

    x = jnp.transpose(x_nchw, (0, 2, 3, 1)).astype(jnp.float32)
    x = conv3x3(x, params["stem_w"], params["stem_b"], round_ops=False)
    for (w1, b1, w2, b2) in params["res"]:
        h = jnp.maximum(conv3x3(x, w1, b1, True), 0.0)
        x = x + conv3x3(h, w2, b2, True)
    feat = jnp.einsum("nhwc,cd->nhwd", x, params["out_w"],
                      precision=hi) + params["out_b"]
    pooled = jnp.mean(feat, axis=(1, 2))                            # (N, 45)
    logits = jnp.dot(pooled, params["dec_w"], precision=hi) + params["dec_b"]
    return jax.nn.log_softmax(logits, axis=-1)


# ----------------------------------------------------------------------------

if __name__ == "__main__":
    key = jax.random.PRNGKey(0)
    k_params, k_x = jax.random.split(key)

    target_classes_n = 12
    N, C, H, W = 2, 1, 16, 16                   # PyTorch NCHW input shape

    params = init_params(k_params, target_classes_n)
    x = jax.random.normal(k_x, (N, C, H, W), jnp.float32)

    out = edgespeechnet_forward(params, x)
    out = jax.block_until_ready(out)

    assert out.shape == (N, target_classes_n)
    assert bool(jnp.all(jnp.isfinite(out)))
    # log_softmax sanity: rows exponentiate-sum to ~1
    assert bool(jnp.allclose(jnp.sum(jnp.exp(out), axis=1), 1.0, atol=1e-4))
    # Numerical check vs a pure-JAX/XLA reference that applies the same bf16
    # rounding to the residual convs.  Tolerance leaves headroom for the
    # in-kernel f32 head matmuls possibly running at reduced MXU precision.
    ref = _reference_forward(params, x)
    err = float(jnp.max(jnp.abs(out - ref)))
    assert bool(jnp.allclose(out, ref, atol=1e-2, rtol=1e-2)), err

    print("KERNEL_OK")
</pallas_src>

<mosaic_0001>
module attributes {stable_mosaic.version = 11 : i64} {
  func.func @_fused_forward_kernel(%arg0: i32, %arg1: memref<1x1x512xf32, #tpu.memory_space<vmem>>, %arg2: memref<9x512xf32, #tpu.memory_space<vmem>>, %arg3: memref<32x9xf32, #tpu.memory_space<vmem>>, %arg4: memref<32x1xf32, #tpu.memory_space<vmem>>, %arg5: memref<2x16x288xbf16, #tpu.memory_space<vmem>>, %arg6: memref<2x16x1xf32, #tpu.memory_space<vmem>>, %arg7: memref<2x32x144xbf16, #tpu.memory_space<vmem>>, %arg8: memref<2x32x1xf32, #tpu.memory_space<vmem>>, %arg9: memref<48x32xf32, #tpu.memory_space<vmem>>, %arg10: memref<48x1xf32, #tpu.memory_space<vmem>>, %arg11: memref<16x48xf32, #tpu.memory_space<vmem>>, %arg12: memref<16x1xf32, #tpu.memory_space<vmem>>, %arg13: memref<1x16x2xf32, #tpu.memory_space<vmem>>, %arg14: memref<288x512xbf16, #tpu.memory_space<vmem>>) attributes {dimension_semantics = [#tpu.dimension_semantics<parallel>], iteration_bounds = array<i64: 1>, scalar_prefetch = 0 : i64, scratch_operands = 1 : i64, tpu.core_type = #tpu.core_type<tc>, window_params = [{transform_indices = @transform_0, window_bounds = array<i64: 1, 1, 512>}, {pipeline_mode = #tpu.pipeline_mode<synchronous>, transform_indices = @transform_1, window_bounds = array<i64: 9, 512>}, {pipeline_mode = #tpu.pipeline_mode<synchronous>, transform_indices = @transform_2, window_bounds = array<i64: 32, 9>}, {pipeline_mode = #tpu.pipeline_mode<synchronous>, transform_indices = @transform_3, window_bounds = array<i64: 32, 1>}, {pipeline_mode = #tpu.pipeline_mode<synchronous>, transform_indices = @transform_4, window_bounds = array<i64: 2, 16, 288>}, {pipeline_mode = #tpu.pipeline_mode<synchronous>, transform_indices = @transform_5, window_bounds = array<i64: 2, 16, 1>}, {pipeline_mode = #tpu.pipeline_mode<synchronous>, transform_indices = @transform_6, window_bounds = array<i64: 2, 32, 144>}, {pipeline_mode = #tpu.pipeline_mode<synchronous>, transform_indices = @transform_7, window_bounds = array<i64: 2, 32, 1>}, {pipeline_mode = #tpu.pipeline_mode<synchronous>, transform_indices = @transform_8, window_bounds = array<i64: 48, 32>}, {pipeline_mode = #tpu.pipeline_mode<synchronous>, transform_indices = @transform_9, window_bounds = array<i64: 48, 1>}, {pipeline_mode = #tpu.pipeline_mode<synchronous>, transform_indices = @transform_10, window_bounds = array<i64: 16, 48>}, {pipeline_mode = #tpu.pipeline_mode<synchronous>, transform_indices = @transform_11, window_bounds = array<i64: 16, 1>}, {transform_indices = @transform_12, window_bounds = array<i64: 1, 16, 2>}]} {
    %c0 = arith.constant 0 : index
    %c0_0 = arith.constant 0 : index
    %c0_1 = arith.constant 0 : index
    %0 = vector.load %arg1[%c0, %c0_0, %c0_1] : memref<1x1x512xf32, #tpu.memory_space<vmem>>, vector<1x1x512xf32>
    %1 = vector.shape_cast %0 : vector<1x1x512xf32> to vector<1x512xf32>
    %c0_2 = arith.constant 0 : index
    %c0_3 = arith.constant 0 : index
    %2 = vector.load %arg3[%c0_2, %c0_3] : memref<32x9xf32, #tpu.memory_space<vmem>>, vector<32x1xf32>
    %c17_i32 = arith.constant 17 : i32
    %3 = tpu.dynamic_rotate %1 by %c17_i32 dim 1 : vector<1x512xf32>, i32 -> vector<1x512xf32>
    %c0_4 = arith.constant 0 : index
    %c0_5 = arith.constant 0 : index
    %4 = vector.load %arg2[%c0_4, %c0_5] : memref<9x512xf32, #tpu.memory_space<vmem>>, vector<1x512xf32>
    %5 = arith.mulf %3, %4 : vector<1x512xf32>
    %6 = vector.broadcast %2 : vector<32x1xf32> to vector<32x512xf32>
    %7 = vector.broadcast %5 : vector<1x512xf32> to vector<32x512xf32>
    %8 = arith.mulf %6, %7 : vector<32x512xf32>
    %c0_6 = arith.constant 0 : index
    %c1 = arith.constant 1 : index
    %9 = vector.load %arg3[%c0_6, %c1] : memref<32x9xf32, #tpu.memory_space<vmem>>, vector<32x1xf32>
    %c16_i32 = arith.constant 16 : i32
    %10 = tpu.dynamic_rotate %1 by %c16_i32 dim 1 : vector<1x512xf32>, i32 -> vector<1x512xf32>
    %c1_7 = arith.constant 1 : index
    %c0_8 = arith.constant 0 : index
    %11 = vector.load %arg2[%c1_7, %c0_8] : memref<9x512xf32, #tpu.memory_space<vmem>>, vector<1x512xf32>
    %12 = arith.mulf %10, %11 : vector<1x512xf32>
    %13 = vector.broadcast %9 : vector<32x1xf32> to vector<32x512xf32>
    %14 = vector.broadcast %12 : vector<1x512xf32> to vector<32x512xf32>
    %15 = arith.mulf %13, %14 : vector<32x512xf32>
    %16 = arith.addf %8, %15 : vector<32x512xf32>
    %c0_9 = arith.constant 0 : index
    %c2 = arith.constant 2 : index
    %17 = vector.load %arg3[%c0_9, %c2] : memref<32x9xf32, #tpu.memory_space<vmem>>, vector<32x1xf32>
    %c15_i32 = arith.constant 15 : i32
    %18 = tpu.dynamic_rotate %1 by %c15_i32 dim 1 : vector<1x512xf32>, i32 -> vector<1x512xf32>
    %c2_10 = arith.constant 2 : index
    %c0_11 = arith.constant 0 : index
    %19 = vector.load %arg2[%c2_10, %c0_11] : memref<9x512xf32, #tpu.memory_space<vmem>>, vector<1x512xf32>
    %20 = arith.mulf %18, %19 : vector<1x512xf32>
    %21 = vector.broadcast %17 : vector<32x1xf32> to vector<32x512xf32>
    %22 = vector.broadcast %20 : vector<1x512xf32> to vector<32x512xf32>
    %23 = arith.mulf %21, %22 : vector<32x512xf32>
    %24 = arith.addf %16, %23 : vector<32x512xf32>
    %c0_12 = arith.constant 0 : index
    %c3 = arith.constant 3 : index
    %25 = vector.load %arg3[%c0_12, %c3] : memref<32x9xf32, #tpu.memory_space<vmem>>, vector<32x1xf32>
    %c1_i32 = arith.constant 1 : i32
    %26 = tpu.dynamic_rotate %1 by %c1_i32 dim 1 : vector<1x512xf32>, i32 -> vector<1x512xf32>
    %c3_13 = arith.constant 3 : index
    %c0_14 = arith.constant 0 : index
    %27 = vector.load %arg2[%c3_13, %c0_14] : memref<9x512xf32, #tpu.memory_space<vmem>>, vector<1x512xf32>
    %28 = arith.mulf %26, %27 : vector<1x512xf32>
    %29 = vector.broadcast %25 : vector<32x1xf32> to vector<32x512xf32>
    %30 = vector.broadcast %28 : vector<1x512xf32> to vector<32x512xf32>
    %31 = arith.mulf %29, %30 : vector<32x512xf32>
    %32 = arith.addf %24, %31 : vector<32x512xf32>
    %c0_15 = arith.constant 0 : index
    %c4 = arith.constant 4 : index
    %33 = vector.load %arg3[%c0_15, %c4] : memref<32x9xf32, #tpu.memory_space<vmem>>, vector<32x1xf32>
    %34 = vector.broadcast %33 : vector<32x1xf32> to vector<32x512xf32>
    %35 = vector.broadcast %1 : vector<1x512xf32> to vector<32x512xf32>
    %36 = arith.mulf %34, %35 : vector<32x512xf32>
    %37 = arith.addf %32, %36 : vector<32x512xf32>
    %c0_16 = arith.constant 0 : index
    %c5 = arith.constant 5 : index
    %38 = vector.load %arg3[%c0_16, %c5] : memref<32x9xf32, #tpu.memory_space<vmem>>, vector<32x1xf32>
    %c511_i32 = arith.constant 511 : i32
    %39 = tpu.dynamic_rotate %1 by %c511_i32 dim 1 : vector<1x512xf32>, i32 -> vector<1x512xf32>
    %c5_17 = arith.constant 5 : index
    %c0_18 = arith.constant 0 : index
    %40 = vector.load %arg2[%c5_17, %c0_18] : memref<9x512xf32, #tpu.memory_space<vmem>>, vector<1x512xf32>
    %41 = arith.mulf %39, %40 : vector<1x512xf32>
    %42 = vector.broadcast %38 : vector<32x1xf32> to vector<32x512xf32>
    %43 = vector.broadcast %41 : vector<1x512xf32> to vector<32x512xf32>
    %44 = arith.mulf %42, %43 : vector<32x512xf32>
    %45 = arith.addf %37, %44 : vector<32x512xf32>
    %c0_19 = arith.constant 0 : index
    %c6 = arith.constant 6 : index
    %46 = vector.load %arg3[%c0_19, %c6] : memref<32x9xf32, #tpu.memory_space<vmem>>, vector<32x1xf32>
    %c497_i32 = arith.constant 497 : i32
    %47 = tpu.dynamic_rotate %1 by %c497_i32 dim 1 : vector<1x512xf32>, i32 -> vector<1x512xf32>
    %c6_20 = arith.constant 6 : index
    %c0_21 = arith.constant 0 : index
    %48 = vector.load %arg2[%c6_20, %c0_21] : memref<9x512xf32, #tpu.memory_space<vmem>>, vector<1x512xf32>
    %49 = arith.mulf %47, %48 : vector<1x512xf32>
    %50 = vector.broadcast %46 : vector<32x1xf32> to vector<32x512xf32>
    %51 = vector.broadcast %49 : vector<1x512xf32> to vector<32x512xf32>
    %52 = arith.mulf %50, %51 : vector<32x512xf32>
    %53 = arith.addf %45, %52 : vector<32x512xf32>
    %c0_22 = arith.constant 0 : index
    %c7 = arith.constant 7 : index
    %54 = vector.load %arg3[%c0_22, %c7] : memref<32x9xf32, #tpu.memory_space<vmem>>, vector<32x1xf32>
    %c496_i32 = arith.constant 496 : i32
    %55 = tpu.dynamic_rotate %1 by %c496_i32 dim 1 : vector<1x512xf32>, i32 -> vector<1x512xf32>
    %c7_23 = arith.constant 7 : index
    %c0_24 = arith.constant 0 : index
    %56 = vector.load %arg2[%c7_23, %c0_24] : memref<9x512xf32, #tpu.memory_space<vmem>>, vector<1x512xf32>
    %57 = arith.mulf %55, %56 : vector<1x512xf32>
    %58 = vector.broadcast %54 : vector<32x1xf32> to vector<32x512xf32>
    %59 = vector.broadcast %57 : vector<1x512xf32> to vector<32x512xf32>
    %60 = arith.mulf %58, %59 : vector<32x512xf32>
    %61 = arith.addf %53, %60 : vector<32x512xf32>
    %c0_25 = arith.constant 0 : index
    %c8 = arith.constant 8 : index
    %62 = vector.load %arg3[%c0_25, %c8] : memref<32x9xf32, #tpu.memory_space<vmem>>, vector<32x1xf32>
    %c495_i32 = arith.constant 495 : i32
    %63 = tpu.dynamic_rotate %1 by %c495_i32 dim 1 : vector<1x512xf32>, i32 -> vector<1x512xf32>
    %c8_26 = arith.constant 8 : index
    %c0_27 = arith.constant 0 : index
    %64 = vector.load %arg2[%c8_26, %c0_27] : memref<9x512xf32, #tpu.memory_space<vmem>>, vector<1x512xf32>
    %65 = arith.mulf %63, %64 : vector<1x512xf32>
    %66 = vector.broadcast %62 : vector<32x1xf32> to vector<32x512xf32>
    %67 = vector.broadcast %65 : vector<1x512xf32> to vector<32x512xf32>
    %68 = arith.mulf %66, %67 : vector<32x512xf32>
    %69 = arith.addf %61, %68 : vector<32x512xf32>
    %c0_28 = arith.constant 0 : index
    %c0_29 = arith.constant 0 : index
    %70 = vector.load %arg4[%c0_28, %c0_29] : memref<32x1xf32, #tpu.memory_space<vmem>>, vector<32x1xf32>
    %71 = vector.broadcast %70 : vector<32x1xf32> to vector<32x512xf32>
    %72 = arith.addf %69, %71 : vector<32x512xf32>
    %c0_30 = arith.constant 0 : index
    %c0_31 = arith.constant 0 : index
    %c0_32 = arith.constant 0 : index
    %73 = vector.load %arg5[%c0_30, %c0_31, %c0_32] : memref<2x16x288xbf16, #tpu.memory_space<vmem>>, vector<1x16x288xbf16>
    %74 = vector.shape_cast %73 : vector<1x16x288xbf16> to vector<16x288xbf16>
    %c0_33 = arith.constant 0 : index
    %c0_34 = arith.constant 0 : index
    %c0_35 = arith.constant 0 : index
    %75 = vector.load %arg6[%c0_33, %c0_34, %c0_35] : memref<2x16x1xf32, #tpu.memory_space<vmem>>, vector<1x16x1xf32>
    %76 = vector.shape_cast %75 : vector<1x16x1xf32> to vector<16x1xf32>
    %c17_i32_36 = arith.constant 17 : i32
    %77 = tpu.dynamic_rotate %72 by %c17_i32_36 dim 1 : vector<32x512xf32>, i32 -> vector<32x512xf32>
    %c0_37 = arith.constant 0 : index
    %c0_38 = arith.constant 0 : index
    %78 = vector.load %arg2[%c0_37, %c0_38] : memref<9x512xf32, #tpu.memory_space<vmem>>, vector<1x512xf32>
    %79 = vector.broadcast %78 : vector<1x512xf32> to vector<32x512xf32>
    %80 = arith.mulf %77, %79 : vector<32x512xf32>
    %81 = arith.truncf %80 : vector<32x512xf32> to vector<32x512xbf16>
    %c0_39 = arith.constant 0 : index
    %c0_40 = arith.constant 0 : index
    %82 = vector.load %arg14[%c0_39, %c0_40] : memref<288x512xbf16, #tpu.memory_space<vmem>>, vector<32x512xbf16>
    tpu.vector_store %arg14[%c0_39, %c0_40], %81 {strides = array<i32>} : memref<288x512xbf16, #tpu.memory_space<vmem>>, vector<32x512xbf16>,
    %c16_i32_41 = arith.constant 16 : i32
    %83 = tpu.dynamic_rotate %72 by %c16_i32_41 dim 1 : vector<32x512xf32>, i32 -> vector<32x512xf32>
    %c1_42 = arith.constant 1 : index
    %c0_43 = arith.constant 0 : index
    %84 = vector.load %arg2[%c1_42, %c0_43] : memref<9x512xf32, #tpu.memory_space<vmem>>, vector<1x512xf32>
    %85 = vector.broadcast %84 : vector<1x512xf32> to vector<32x512xf32>
    %86 = arith.mulf %83, %85 : vector<32x512xf32>
    %87 = arith.truncf %86 : vector<32x512xf32> to vector<32x512xbf16>
    %c32 = arith.constant 32 : index
    %c0_44 = arith.constant 0 : index
    %88 = vector.load %arg14[%c32, %c0_44] : memref<288x512xbf16, #tpu.memory_space<vmem>>, vector<32x512xbf16>
    tpu.vector_store %arg14[%c32, %c0_44], %87 {strides = array<i32>} : memref<288x512xbf16, #tpu.memory_space<vmem>>, vector<32x512xbf16>,
    %c15_i32_45 = arith.constant 15 : i32
    %89 = tpu.dynamic_rotate %72 by %c15_i32_45 dim 1 : vector<32x512xf32>, i32 -> vector<32x512xf32>
    %c2_46 = arith.constant 2 : index
    %c0_47 = arith.constant 0 : index
    %90 = vector.load %arg2[%c2_46, %c0_47] : memref<9x512xf32, #tpu.memory_space<vmem>>, vector<1x512xf32>
    %91 = vector.broadcast %90 : vector<1x512xf32> to vector<32x512xf32>
    %92 = arith.mulf %89, %91 : vector<32x512xf32>
    %93 = arith.truncf %92 : vector<32x512xf32> to vector<32x512xbf16>
    %c64 = arith.constant 64 : index
    %c0_48 = arith.constant 0 : index
    %94 = vector.load %arg14[%c64, %c0_48] : memref<288x512xbf16, #tpu.memory_space<vmem>>, vector<32x512xbf16>
    tpu.vector_store %arg14[%c64, %c0_48], %93 {strides = array<i32>} : memref<288x512xbf16, #tpu.memory_space<vmem>>, vector<32x512xbf16>,
    %c1_i32_49 = arith.constant 1 : i32
    %95 = tpu.dynamic_rotate %72 by %c1_i32_49 dim 1 : vector<32x512xf32>, i32 -> vector<32x512xf32>
    %c3_50 = arith.constant 3 : index
    %c0_51 = arith.constant 0 : index
    %96 = vector.load %arg2[%c3_50, %c0_51] : memref<9x512xf32, #tpu.memory_space<vmem>>, vector<1x512xf32>
    %97 = vector.broadcast %96 : vector<1x512xf32> to vector<32x512xf32>
    %98 = arith.mulf %95, %97 : vector<32x512xf32>
    %99 = arith.truncf %98 : vector<32x512xf32> to vector<32x512xbf16>
    %c96 = arith.constant 96 : index
    %c0_52 = arith.constant 0 : index
    %100 = vector.load %arg14[%c96, %c0_52] : memref<288x512xbf16, #tpu.memory_space<vmem>>, vector<32x512xbf16>
    tpu.vector_store %arg14[%c96, %c0_52], %99 {strides = array<i32>} : memref<288x512xbf16, #tpu.memory_space<vmem>>, vector<32x512xbf16>,
    %101 = arith.truncf %72 : vector<32x512xf32> to vector<32x512xbf16>
    %c128 = arith.constant 128 : index
    %c0_53 = arith.constant 0 : index
    %102 = vector.load %arg14[%c128, %c0_53] : memref<288x512xbf16, #tpu.memory_space<vmem>>, vector<32x512xbf16>
    tpu.vector_store %arg14[%c128, %c0_53], %101 {strides = array<i32>} : memref<288x512xbf16, #tpu.memory_space<vmem>>, vector<32x512xbf16>,
    %c511_i32_54 = arith.constant 511 : i32
    %103 = tpu.dynamic_rotate %72 by %c511_i32_54 dim 1 : vector<32x512xf32>, i32 -> vector<32x512xf32>
    %c5_55 = arith.constant 5 : index
    %c0_56 = arith.constant 0 : index
    %104 = vector.load %arg2[%c5_55, %c0_56] : memref<9x512xf32, #tpu.memory_space<vmem>>, vector<1x512xf32>
    %105 = vector.broadcast %104 : vector<1x512xf32> to vector<32x512xf32>
    %106 = arith.mulf %103, %105 : vector<32x512xf32>
    %107 = arith.truncf %106 : vector<32x512xf32> to vector<32x512xbf16>
    %c160 = arith.constant 160 : index
    %c0_57 = arith.constant 0 : index
    %108 = vector.load %arg14[%c160, %c0_57] : memref<288x512xbf16, #tpu.memory_space<vmem>>, vector<32x512xbf16>
    tpu.vector_store %arg14[%c160, %c0_57], %107 {strides = array<i32>} : memref<288x512xbf16, #tpu.memory_space<vmem>>, vector<32x512xbf16>,
    %c497_i32_58 = arith.constant 497 : i32
    %109 = tpu.dynamic_rotate %72 by %c497_i32_58 dim 1 : vector<32x512xf32>, i32 -> vector<32x512xf32>
    %c6_59 = arith.constant 6 : index
    %c0_60 = arith.constant 0 : index
    %110 = vector.load %arg2[%c6_59, %c0_60] : memref<9x512xf32, #tpu.memory_space<vmem>>, vector<1x512xf32>
    %111 = vector.broadcast %110 : vector<1x512xf32> to vector<32x512xf32>
    %112 = arith.mulf %109, %111 : vector<32x512xf32>
    %113 = arith.truncf %112 : vector<32x512xf32> to vector<32x512xbf16>
    %c192 = arith.constant 192 : index
    %c0_61 = arith.constant 0 : index
    %114 = vector.load %arg14[%c192, %c0_61] : memref<288x512xbf16, #tpu.memory_space<vmem>>, vector<32x512xbf16>
    tpu.vector_store %arg14[%c192, %c0_61], %113 {strides = array<i32>} : memref<288x512xbf16, #tpu.memory_space<vmem>>, vector<32x512xbf16>,
    %c496_i32_62 = arith.constant 496 : i32
    %115 = tpu.dynamic_rotate %72 by %c496_i32_62 dim 1 : vector<32x512xf32>, i32 -> vector<32x512xf32>
    %c7_63 = arith.constant 7 : index
    %c0_64 = arith.constant 0 : index
    %116 = vector.load %arg2[%c7_63, %c0_64] : memref<9x512xf32, #tpu.memory_space<vmem>>, vector<1x512xf32>
    %117 = vector.broadcast %116 : vector<1x512xf32> to vector<32x512xf32>
    %118 = arith.mulf %115, %117 : vector<32x512xf32>
    %119 = arith.truncf %118 : vector<32x512xf32> to vector<32x512xbf16>
    %c224 = arith.constant 224 : index
    %c0_65 = arith.constant 0 : index
    %120 = vector.load %arg14[%c224, %c0_65] : memref<288x512xbf16, #tpu.memory_space<vmem>>, vector<32x512xbf16>
    tpu.vector_store %arg14[%c224, %c0_65], %119 {strides = array<i32>} : memref<288x512xbf16, #tpu.memory_space<vmem>>, vector<32x512xbf16>,
    %c495_i32_66 = arith.constant 495 : i32
    %121 = tpu.dynamic_rotate %72 by %c495_i32_66 dim 1 : vector<32x512xf32>, i32 -> vector<32x512xf32>
    %c8_67 = arith.constant 8 : index
    %c0_68 = arith.constant 0 : index
    %122 = vector.load %arg2[%c8_67, %c0_68] : memref<9x512xf32, #tpu.memory_space<vmem>>, vector<1x512xf32>
    %123 = vector.broadcast %122 : vector<1x512xf32> to vector<32x512xf32>
    %124 = arith.mulf %121, %123 : vector<32x512xf32>
    %125 = arith.truncf %124 : vector<32x512xf32> to vector<32x512xbf16>
    %c256 = arith.constant 256 : index
    %c0_69 = arith.constant 0 : index
    %126 = vector.load %arg14[%c256, %c0_69] : memref<288x512xbf16, #tpu.memory_space<vmem>>, vector<32x512xbf16>
    tpu.vector_store %arg14[%c256, %c0_69], %125 {strides = array<i32>} : memref<288x512xbf16, #tpu.memory_space<vmem>>, vector<32x512xbf16>,
    %c0_70 = arith.constant 0 : index
    %c0_71 = arith.constant 0 : index
    %127 = vector.load %arg14[%c0_70, %c0_71] : memref<288x512xbf16, #tpu.memory_space<vmem>>, vector<288x512xbf16>
    %cst = arith.constant dense<0.000000e+00> : vector<16x512xf32>
    %128 = tpu.matmul %74, %127, %cst {dimension_numbers = #tpu.dot_dimension_numbers<[1], [0], [0], [1], [0, 0, 1, 1], [], []>} : vector<16x288xbf16>, vector<288x512xbf16>, vector<16x512xf32> -> vector<16x512xf32>
    %129 = vector.broadcast %76 : vector<16x1xf32> to vector<16x512xf32>
    %130 = arith.addf %128, %129 : vector<16x512xf32>
    %cst_72 = arith.constant 0.000000e+00 : f32
    %131 = vector.broadcast %cst_72 : f32 to vector<16x512xf32>
    %132 = arith.maximumf %130, %131 : vector<16x512xf32>
    %c0_73 = arith.constant 0 : index
    %c0_74 = arith.constant 0 : index
    %c0_75 = arith.constant 0 : index
    %133 = vector.load %arg7[%c0_73, %c0_74, %c0_75] : memref<2x32x144xbf16, #tpu.memory_space<vmem>>, vector<1x32x144xbf16>
    %134 = vector.shape_cast %133 : vector<1x32x144xbf16> to vector<32x144xbf16>
    %c0_76 = arith.constant 0 : index
    %c0_77 = arith.constant 0 : index
    %c0_78 = arith.constant 0 : index
    %135 = vector.load %arg8[%c0_76, %c0_77, %c0_78] : memref<2x32x1xf32, #tpu.memory_space<vmem>>, vector<1x32x1xf32>
    %136 = vector.shape_cast %135 : vector<1x32x1xf32> to vector<32x1xf32>
    %c17_i32_79 = arith.constant 17 : i32
    %137 = tpu.dynamic_rotate %132 by %c17_i32_79 dim 1 : vector<16x512xf32>, i32 -> vector<16x512xf32>
    %c0_80 = arith.constant 0 : index
    %c0_81 = arith.constant 0 : index
    %138 = vector.load %arg2[%c0_80, %c0_81] : memref<9x512xf32, #tpu.memory_space<vmem>>, vector<1x512xf32>
    %139 = vector.broadcast %138 : vector<1x512xf32> to vector<16x512xf32>
    %140 = arith.mulf %137, %139 : vector<16x512xf32>
    %141 = arith.truncf %140 : vector<16x512xf32> to vector<16x512xbf16>
    %c0_82 = arith.constant 0 : index
    %c0_83 = arith.constant 0 : index
    %142 = vector.load %arg14[%c0_82, %c0_83] : memref<288x512xbf16, #tpu.memory_space<vmem>>, vector<16x512xbf16>
    tpu.vector_store %arg14[%c0_82, %c0_83], %141 {strides = array<i32>} : memref<288x512xbf16, #tpu.memory_space<vmem>>, vector<16x512xbf16>,
    %c16_i32_84 = arith.constant 16 : i32
    %143 = tpu.dynamic_rotate %132 by %c16_i32_84 dim 1 : vector<16x512xf32>, i32 -> vector<16x512xf32>
    %c1_85 = arith.constant 1 : index
    %c0_86 = arith.constant 0 : index
    %144 = vector.load %arg2[%c1_85, %c0_86] : memref<9x512xf32, #tpu.memory_space<vmem>>, vector<1x512xf32>
    %145 = vector.broadcast %144 : vector<1x512xf32> to vector<16x512xf32>
    %146 = arith.mulf %143, %145 : vector<16x512xf32>
    %147 = arith.truncf %146 : vector<16x512xf32> to vector<16x512xbf16>
    %c16 = arith.constant 16 : index
    %c0_87 = arith.constant 0 : index
    %148 = vector.load %arg14[%c16, %c0_87] : memref<288x512xbf16, #tpu.memory_space<vmem>>, vector<16x512xbf16>
    tpu.vector_store %arg14[%c16, %c0_87], %147 {strides = array<i32>} : memref<288x512xbf16, #tpu.memory_space<vmem>>, vector<16x512xbf16>,
    %c15_i32_88 = arith.constant 15 : i32
    %149 = tpu.dynamic_rotate %132 by %c15_i32_88 dim 1 : vector<16x512xf32>, i32 -> vector<16x512xf32>
    %c2_89 = arith.constant 2 : index
    %c0_90 = arith.constant 0 : index
    %150 = vector.load %arg2[%c2_89, %c0_90] : memref<9x512xf32, #tpu.memory_space<vmem>>, vector<1x512xf32>
    %151 = vector.broadcast %150 : vector<1x512xf32> to vector<16x512xf32>
    %152 = arith.mulf %149, %151 : vector<16x512xf32>
    %153 = arith.truncf %152 : vector<16x512xf32> to vector<16x512xbf16>
    %c32_91 = arith.constant 32 : index
    %c0_92 = arith.constant 0 : index
    %154 = vector.load %arg14[%c32_91, %c0_92] : memref<288x512xbf16, #tpu.memory_space<vmem>>, vector<16x512xbf16>
    tpu.vector_store %arg14[%c32_91, %c0_92], %153 {strides = array<i32>} : memref<288x512xbf16, #tpu.memory_space<vmem>>, vector<16x512xbf16>,
    %c1_i32_93 = arith.constant 1 : i32
    %155 = tpu.dynamic_rotate %132 by %c1_i32_93 dim 1 : vector<16x512xf32>, i32 -> vector<16x512xf32>
    %c3_94 = arith.constant 3 : index
    %c0_95 = arith.constant 0 : index
    %156 = vector.load %arg2[%c3_94, %c0_95] : memref<9x512xf32, #tpu.memory_space<vmem>>, vector<1x512xf32>
    %157 = vector.broadcast %156 : vector<1x512xf32> to vector<16x512xf32>
    %158 = arith.mulf %155, %157 : vector<16x512xf32>
    %159 = arith.truncf %158 : vector<16x512xf32> to vector<16x512xbf16>
    %c48 = arith.constant 48 : index
    %c0_96 = arith.constant 0 : index
    %160 = vector.load %arg14[%c48, %c0_96] : memref<288x512xbf16, #tpu.memory_space<vmem>>, vector<16x512xbf16>
    tpu.vector_store %arg14[%c48, %c0_96], %159 {strides = array<i32>} : memref<288x512xbf16, #tpu.memory_space<vmem>>, vector<16x512xbf16>,
    %161 = arith.truncf %132 : vector<16x512xf32> to vector<16x512xbf16>
    %c64_97 = arith.constant 64 : index
    %c0_98 = arith.constant 0 : index
    %162 = vector.load %arg14[%c64_97, %c0_98] : memref<288x512xbf16, #tpu.memory_space<vmem>>, vector<16x512xbf16>
    tpu.vector_store %arg14[%c64_97, %c0_98], %161 {strides = array<i32>} : memref<288x512xbf16, #tpu.memory_space<vmem>>, vector<16x512xbf16>,
    %c511_i32_99 = arith.constant 511 : i32
    %163 = tpu.dynamic_rotate %132 by %c511_i32_99 dim 1 : vector<16x512xf32>, i32 -> vector<16x512xf32>
    %c5_100 = arith.constant 5 : index
    %c0_101 = arith.constant 0 : index
    %164 = vector.load %arg2[%c5_100, %c0_101] : memref<9x512xf32, #tpu.memory_space<vmem>>, vector<1x512xf32>
    %165 = vector.broadcast %164 : vector<1x512xf32> to vector<16x512xf32>
    %166 = arith.mulf %163, %165 : vector<16x512xf32>
    %167 = arith.truncf %166 : vector<16x512xf32> to vector<16x512xbf16>
    %c80 = arith.constant 80 : index
    %c0_102 = arith.constant 0 : index
    %168 = vector.load %arg14[%c80, %c0_102] : memref<288x512xbf16, #tpu.memory_space<vmem>>, vector<16x512xbf16>
    tpu.vector_store %arg14[%c80, %c0_102], %167 {strides = array<i32>} : memref<288x512xbf16, #tpu.memory_space<vmem>>, vector<16x512xbf16>,
    %c497_i32_103 = arith.constant 497 : i32
    %169 = tpu.dynamic_rotate %132 by %c497_i32_103 dim 1 : vector<16x512xf32>, i32 -> vector<16x512xf32>
    %c6_104 = arith.constant 6 : index
    %c0_105 = arith.constant 0 : index
    %170 = vector.load %arg2[%c6_104, %c0_105] : memref<9x512xf32, #tpu.memory_space<vmem>>, vector<1x512xf32>
    %171 = vector.broadcast %170 : vector<1x512xf32> to vector<16x512xf32>
    %172 = arith.mulf %169, %171 : vector<16x512xf32>
    %173 = arith.truncf %172 : vector<16x512xf32> to vector<16x512xbf16>
    %c96_106 = arith.constant 96 : index
    %c0_107 = arith.constant 0 : index
    %174 = vector.load %arg14[%c96_106, %c0_107] : memref<288x512xbf16, #tpu.memory_space<vmem>>, vector<16x512xbf16>
    tpu.vector_store %arg14[%c96_106, %c0_107], %173 {strides = array<i32>} : memref<288x512xbf16, #tpu.memory_space<vmem>>, vector<16x512xbf16>,
    %c496_i32_108 = arith.constant 496 : i32
    %175 = tpu.dynamic_rotate %132 by %c496_i32_108 dim 1 : vector<16x512xf32>, i32 -> vector<16x512xf32>
    %c7_109 = arith.constant 7 : index
    %c0_110 = arith.constant 0 : index
    %176 = vector.load %arg2[%c7_109, %c0_110] : memref<9x512xf32, #tpu.memory_space<vmem>>, vector<1x512xf32>
    %177 = vector.broadcast %176 : vector<1x512xf32> to vector<16x512xf32>
    %178 = arith.mulf %175, %177 : vector<16x512xf32>
    %179 = arith.truncf %178 : vector<16x512xf32> to vector<16x512xbf16>
    %c112 = arith.constant 112 : index
    %c0_111 = arith.constant 0 : index
    %180 = vector.load %arg14[%c112, %c0_111] : memref<288x512xbf16, #tpu.memory_space<vmem>>, vector<16x512xbf16>
    tpu.vector_store %arg14[%c112, %c0_111], %179 {strides = array<i32>} : memref<288x512xbf16, #tpu.memory_space<vmem>>, vector<16x512xbf16>,
    %c495_i32_112 = arith.constant 495 : i32
    %181 = tpu.dynamic_rotate %132 by %c495_i32_112 dim 1 : vector<16x512xf32>, i32 -> vector<16x512xf32>
    %c8_113 = arith.constant 8 : index
    %c0_114 = arith.constant 0 : index
    %182 = vector.load %arg2[%c8_113, %c0_114] : memref<9x512xf32, #tpu.memory_space<vmem>>, vector<1x512xf32>
    %183 = vector.broadcast %182 : vector<1x512xf32> to vector<16x512xf32>
    %184 = arith.mulf %181, %183 : vector<16x512xf32>
    %185 = arith.truncf %184 : vector<16x512xf32> to vector<16x512xbf16>
    %c128_115 = arith.constant 128 : index
    %c0_116 = arith.constant 0 : index
    %186 = vector.load %arg14[%c128_115, %c0_116] : memref<288x512xbf16, #tpu.memory_space<vmem>>, vector<16x512xbf16>
    tpu.vector_store %arg14[%c128_115, %c0_116], %185 {strides = array<i32>} : memref<288x512xbf16, #tpu.memory_space<vmem>>, vector<16x512xbf16>,
    %c0_117 = arith.constant 0 : index
    %c0_118 = arith.constant 0 : index
    %187 = vector.load %arg14[%c0_117, %c0_118] : memref<288x512xbf16, #tpu.memory_space<vmem>>, vector<144x512xbf16>
    %cst_119 = arith.constant dense<0.000000e+00> : vector<32x512xf32>
    %188 = tpu.matmul %134, %187, %cst_119 {dimension_numbers = #tpu.dot_dimension_numbers<[1], [0], [0], [1], [0, 0, 1, 1], [], []>} : vector<32x144xbf16>, vector<144x512xbf16>, vector<32x512xf32> -> vector<32x512xf32>
    %189 = vector.broadcast %136 : vector<32x1xf32> to vector<32x512xf32>
    %190 = arith.addf %188, %189 : vector<32x512xf32>
    %191 = arith.addf %72, %190 : vector<32x512xf32>
    %c1_120 = arith.constant 1 : index
    %c0_121 = arith.constant 0 : index
    %c0_122 = arith.constant 0 : index
    %192 = vector.load %arg5[%c1_120, %c0_121, %c0_122] : memref<2x16x288xbf16, #tpu.memory_space<vmem>>, vector<1x16x288xbf16>
    %193 = vector.shape_cast %192 : vector<1x16x288xbf16> to vector<16x288xbf16>
    %c1_123 = arith.constant 1 : index
    %c0_124 = arith.constant 0 : index
    %c0_125 = arith.constant 0 : index
    %194 = vector.load %arg6[%c1_123, %c0_124, %c0_125] : memref<2x16x1xf32, #tpu.memory_space<vmem>>, vector<1x16x1xf32>
    %195 = vector.shape_cast %194 : vector<1x16x1xf32> to vector<16x1xf32>
    %c17_i32_126 = arith.constant 17 : i32
    %196 = tpu.dynamic_rotate %191 by %c17_i32_126 dim 1 : vector<32x512xf32>, i32 -> vector<32x512xf32>
    %c0_127 = arith.constant 0 : index
    %c0_128 = arith.constant 0 : index
    %197 = vector.load %arg2[%c0_127, %c0_128] : memref<9x512xf32, #tpu.memory_space<vmem>>, vector<1x512xf32>
    %198 = vector.broadcast %197 : vector<1x512xf32> to vector<32x512xf32>
    %199 = arith.mulf %196, %198 : vector<32x512xf32>
    %200 = arith.truncf %199 : vector<32x512xf32> to vector<32x512xbf16>
    %c0_129 = arith.constant 0 : index
    %c0_130 = arith.constant 0 : index
    %201 = vector.load %arg14[%c0_129, %c0_130] : memref<288x512xbf16, #tpu.memory_space<vmem>>, vector<32x512xbf16>
    tpu.vector_store %arg14[%c0_129, %c0_130], %200 {strides = array<i32>} : memref<288x512xbf16, #tpu.memory_space<vmem>>, vector<32x512xbf16>,
    %c16_i32_131 = arith.constant 16 : i32
    %202 = tpu.dynamic_rotate %191 by %c16_i32_131 dim 1 : vector<32x512xf32>, i32 -> vector<32x512xf32>
    %c1_132 = arith.constant 1 : index
    %c0_133 = arith.constant 0 : index
    %203 = vector.load %arg2[%c1_132, %c0_133] : memref<9x512xf32, #tpu.memory_space<vmem>>, vector<1x512xf32>
    %204 = vector.broadcast %203 : vector<1x512xf32> to vector<32x512xf32>
    %205 = arith.mulf %202, %204 : vector<32x512xf32>
    %206 = arith.truncf %205 : vector<32x512xf32> to vector<32x512xbf16>
    %c32_134 = arith.constant 32 : index
    %c0_135 = arith.constant 0 : index
    %207 = vector.load %arg14[%c32_134, %c0_135] : memref<288x512xbf16, #tpu.memory_space<vmem>>, vector<32x512xbf16>
    tpu.vector_store %arg14[%c32_134, %c0_135], %206 {strides = array<i32>} : memref<288x512xbf16, #tpu.memory_space<vmem>>, vector<32x512xbf16>,
    %c15_i32_136 = arith.constant 15 : i32
    %208 = tpu.dynamic_rotate %191 by %c15_i32_136 dim 1 : vector<32x512xf32>, i32 -> vector<32x512xf32>
    %c2_137 = arith.constant 2 : index
    %c0_138 = arith.constant 0 : index
    %209 = vector.load %arg2[%c2_137, %c0_138] : memref<9x512xf32, #tpu.memory_space<vmem>>, vector<1x512xf32>
    %210 = vector.broadcast %209 : vector<1x512xf32> to vector<32x512xf32>
    %211 = arith.mulf %208, %210 : vector<32x512xf32>
    %212 = arith.truncf %211 : vector<32x512xf32> to vector<32x512xbf16>
    %c64_139 = arith.constant 64 : index
    %c0_140 = arith.constant 0 : index
    %213 = vector.load %arg14[%c64_139, %c0_140] : memref<288x512xbf16, #tpu.memory_space<vmem>>, vector<32x512xbf16>
    tpu.vector_store %arg14[%c64_139, %c0_140], %212 {strides = array<i32>} : memref<288x512xbf16, #tpu.memory_space<vmem>>, vector<32x512xbf16>,
    %c1_i32_141 = arith.constant 1 : i32
    %214 = tpu.dynamic_rotate %191 by %c1_i32_141 dim 1 : vector<32x512xf32>, i32 -> vector<32x512xf32>
    %c3_142 = arith.constant 3 : index
    %c0_143 = arith.constant 0 : index
    %215 = vector.load %arg2[%c3_142, %c0_143] : memref<9x512xf32, #tpu.memory_space<vmem>>, vector<1x512xf32>
    %216 = vector.broadcast %215 : vector<1x512xf32> to vector<32x512xf32>
    %217 = arith.mulf %214, %216 : vector<32x512xf32>
    %218 = arith.truncf %217 : vector<32x512xf32> to vector<32x512xbf16>
    %c96_144 = arith.constant 96 : index
    %c0_145 = arith.constant 0 : index
    %219 = vector.load %arg14[%c96_144, %c0_145] : memref<288x512xbf16, #tpu.memory_space<vmem>>, vector<32x512xbf16>
    tpu.vector_store %arg14[%c96_144, %c0_145], %218 {strides = array<i32>} : memref<288x512xbf16, #tpu.memory_space<vmem>>, vector<32x512xbf16>,
    %220 = arith.truncf %191 : vector<32x512xf32> to vector<32x512xbf16>
    %c128_146 = arith.constant 128 : index
    %c0_147 = arith.constant 0 : index
    %221 = vector.load %arg14[%c128_146, %c0_147] : memref<288x512xbf16, #tpu.memory_space<vmem>>, vector<32x512xbf16>
    tpu.vector_store %arg14[%c128_146, %c0_147], %220 {strides = array<i32>} : memref<288x512xbf16, #tpu.memory_space<vmem>>, vector<32x512xbf16>,
    %c511_i32_148 = arith.constant 511 : i32
    %222 = tpu.dynamic_rotate %191 by %c511_i32_148 dim 1 : vector<32x512xf32>, i32 -> vector<32x512xf32>
    %c5_149 = arith.constant 5 : index
    %c0_150 = arith.constant 0 : index
    %223 = vector.load %arg2[%c5_149, %c0_150] : memref<9x512xf32, #tpu.memory_space<vmem>>, vector<1x512xf32>
    %224 = vector.broadcast %223 : vector<1x512xf32> to vector<32x512xf32>
    %225 = arith.mulf %222, %224 : vector<32x512xf32>
    %226 = arith.truncf %225 : vector<32x512xf32> to vector<32x512xbf16>
    %c160_151 = arith.constant 160 : index
    %c0_152 = arith.constant 0 : index
    %227 = vector.load %arg14[%c160_151, %c0_152] : memref<288x512xbf16, #tpu.memory_space<vmem>>, vector<32x512xbf16>
    tpu.vector_store %arg14[%c160_151, %c0_152], %226 {strides = array<i32>} : memref<288x512xbf16, #tpu.memory_space<vmem>>, vector<32x512xbf16>,
    %c497_i32_153 = arith.constant 497 : i32
    %228 = tpu.dynamic_rotate %191 by %c497_i32_153 dim 1 : vector<32x512xf32>, i32 -> vector<32x512xf32>
    %c6_154 = arith.constant 6 : index
    %c0_155 = arith.constant 0 : index
    %229 = vector.load %arg2[%c6_154, %c0_155] : memref<9x512xf32, #tpu.memory_space<vmem>>, vector<1x512xf32>
    %230 = vector.broadcast %229 : vector<1x512xf32> to vector<32x512xf32>
    %231 = arith.mulf %228, %230 : vector<32x512xf32>
    %232 = arith.truncf %231 : vector<32x512xf32> to vector<32x512xbf16>
    %c192_156 = arith.constant 192 : index
    %c0_157 = arith.constant 0 : index
    %233 = vector.load %arg14[%c192_156, %c0_157] : memref<288x512xbf16, #tpu.memory_space<vmem>>, vector<32x512xbf16>
    tpu.vector_store %arg14[%c192_156, %c0_157], %232 {strides = array<i32>} : memref<288x512xbf16, #tpu.memory_space<vmem>>, vector<32x512xbf16>,
    %c496_i32_158 = arith.constant 496 : i32
    %234 = tpu.dynamic_rotate %191 by %c496_i32_158 dim 1 : vector<32x512xf32>, i32 -> vector<32x512xf32>
    %c7_159 = arith.constant 7 : index
    %c0_160 = arith.constant 0 : index
    %235 = vector.load %arg2[%c7_159, %c0_160] : memref<9x512xf32, #tpu.memory_space<vmem>>, vector<1x512xf32>
    %236 = vector.broadcast %235 : vector<1x512xf32> to vector<32x512xf32>
    %237 = arith.mulf %234, %236 : vector<32x512xf32>
    %238 = arith.truncf %237 : vector<32x512xf32> to vector<32x512xbf16>
    %c224_161 = arith.constant 224 : index
    %c0_162 = arith.constant 0 : index
    %239 = vector.load %arg14[%c224_161, %c0_162] : memref<288x512xbf16, #tpu.memory_space<vmem>>, vector<32x512xbf16>
    tpu.vector_store %arg14[%c224_161, %c0_162], %238 {strides = array<i32>} : memref<288x512xbf16, #tpu.memory_space<vmem>>, vector<32x512xbf16>,
    %c495_i32_163 = arith.constant 495 : i32
    %240 = tpu.dynamic_rotate %191 by %c495_i32_163 dim 1 : vector<32x512xf32>, i32 -> vector<32x512xf32>
    %c8_164 = arith.constant 8 : index
    %c0_165 = arith.constant 0 : index
    %241 = vector.load %arg2[%c8_164, %c0_165] : memref<9x512xf32, #tpu.memory_space<vmem>>, vector<1x512xf32>
    %242 = vector.broadcast %241 : vector<1x512xf32> to vector<32x512xf32>
    %243 = arith.mulf %240, %242 : vector<32x512xf32>
    %244 = arith.truncf %243 : vector<32x512xf32> to vector<32x512xbf16>
    %c256_166 = arith.constant 256 : index
    %c0_167 = arith.constant 0 : index
    %245 = vector.load %arg14[%c256_166, %c0_167] : memref<288x512xbf16, #tpu.memory_space<vmem>>, vector<32x512xbf16>
    tpu.vector_store %arg14[%c256_166, %c0_167], %244 {strides = array<i32>} : memref<288x512xbf16, #tpu.memory_space<vmem>>, vector<32x512xbf16>,
    %c0_168 = arith.constant 0 : index
    %c0_169 = arith.constant 0 : index
    %246 = vector.load %arg14[%c0_168, %c0_169] : memref<288x512xbf16, #tpu.memory_space<vmem>>, vector<288x512xbf16>
    %cst_170 = arith.constant dense<0.000000e+00> : vector<16x512xf32>
    %247 = tpu.matmul %193, %246, %cst_170 {dimension_numbers = #tpu.dot_dimension_numbers<[1], [0], [0], [1], [0, 0, 1, 1], [], []>} : vector<16x288xbf16>, vector<288x512xbf16>, vector<16x512xf32> -> vector<16x512xf32>
    %248 = vector.broadcast %195 : vector<16x1xf32> to vector<16x512xf32>
    %249 = arith.addf %247, %248 : vector<16x512xf32>
    %cst_171 = arith.constant 0.000000e+00 : f32
    %250 = vector.broadcast %cst_171 : f32 to vector<16x512xf32>
    %251 = arith.maximumf %249, %250 : vector<16x512xf32>
    %c1_172 = arith.constant 1 : index
    %c0_173 = arith.constant 0 : index
    %c0_174 = arith.constant 0 : index
    %252 = vector.load %arg7[%c1_172, %c0_173, %c0_174] : memref<2x32x144xbf16, #tpu.memory_space<vmem>>, vector<1x32x144xbf16>
    %253 = vector.shape_cast %252 : vector<1x32x144xbf16> to vector<32x144xbf16>
    %c1_175 = arith.constant 1 : index
    %c0_176 = arith.constant 0 : index
    %c0_177 = arith.constant 0 : index
    %254 = vector.load %arg8[%c1_175, %c0_176, %c0_177] : memref<2x32x1xf32, #tpu.memory_space<vmem>>, vector<1x32x1xf32>
    %255 = vector.shape_cast %254 : vector<1x32x1xf32> to vector<32x1xf32>
    %c17_i32_178 = arith.constant 17 : i32
    %256 = tpu.dynamic_rotate %251 by %c17_i32_178 dim 1 : vector<16x512xf32>, i32 -> vector<16x512xf32>
    %c0_179 = arith.constant 0 : index
    %c0_180 = arith.constant 0 : index
    %257 = vector.load %arg2[%c0_179, %c0_180] : memref<9x512xf32, #tpu.memory_space<vmem>>, vector<1x512xf32>
    %258 = vector.broadcast %257 : vector<1x512xf32> to vector<16x512xf32>
    %259 = arith.mulf %256, %258 : vector<16x512xf32>
    %260 = arith.truncf %259 : vector<16x512xf32> to vector<16x512xbf16>
    %c0_181 = arith.constant 0 : index
    %c0_182 = arith.constant 0 : index
    %261 = vector.load %arg14[%c0_181, %c0_182] : memref<288x512xbf16, #tpu.memory_space<vmem>>, vector<16x512xbf16>
    tpu.vector_store %arg14[%c0_181, %c0_182], %260 {strides = array<i32>} : memref<288x512xbf16, #tpu.memory_space<vmem>>, vector<16x512xbf16>,
    %c16_i32_183 = arith.constant 16 : i32
    %262 = tpu.dynamic_rotate %251 by %c16_i32_183 dim 1 : vector<16x512xf32>, i32 -> vector<16x512xf32>
    %c1_184 = arith.constant 1 : index
    %c0_185 = arith.constant 0 : index
    %263 = vector.load %arg2[%c1_184, %c0_185] : memref<9x512xf32, #tpu.memory_space<vmem>>, vector<1x512xf32>
    %264 = vector.broadcast %263 : vector<1x512xf32> to vector<16x512xf32>
    %265 = arith.mulf %262, %264 : vector<16x512xf32>
    %266 = arith.truncf %265 : vector<16x512xf32> to vector<16x512xbf16>
    %c16_186 = arith.constant 16 : index
    %c0_187 = arith.constant 0 : index
    %267 = vector.load %arg14[%c16_186, %c0_187] : memref<288x512xbf16, #tpu.memory_space<vmem>>, vector<16x512xbf16>
    tpu.vector_store %arg14[%c16_186, %c0_187], %266 {strides = array<i32>} : memref<288x512xbf16, #tpu.memory_space<vmem>>, vector<16x512xbf16>,
    %c15_i32_188 = arith.constant 15 : i32
    %268 = tpu.dynamic_rotate %251 by %c15_i32_188 dim 1 : vector<16x512xf32>, i32 -> vector<16x512xf32>
    %c2_189 = arith.constant 2 : index
    %c0_190 = arith.constant 0 : index
    %269 = vector.load %arg2[%c2_189, %c0_190] : memref<9x512xf32, #tpu.memory_space<vmem>>, vector<1x512xf32>
    %270 = vector.broadcast %269 : vector<1x512xf32> to vector<16x512xf32>
    %271 = arith.mulf %268, %270 : vector<16x512xf32>
    %272 = arith.truncf %271 : vector<16x512xf32> to vector<16x512xbf16>
    %c32_191 = arith.constant 32 : index
    %c0_192 = arith.constant 0 : index
    %273 = vector.load %arg14[%c32_191, %c0_192] : memref<288x512xbf16, #tpu.memory_space<vmem>>, vector<16x512xbf16>
    tpu.vector_store %arg14[%c32_191, %c0_192], %272 {strides = array<i32>} : memref<288x512xbf16, #tpu.memory_space<vmem>>, vector<16x512xbf16>,
    %c1_i32_193 = arith.constant 1 : i32
    %274 = tpu.dynamic_rotate %251 by %c1_i32_193 dim 1 : vector<16x512xf32>, i32 -> vector<16x512xf32>
    %c3_194 = arith.constant 3 : index
    %c0_195 = arith.constant 0 : index
    %275 = vector.load %arg2[%c3_194, %c0_195] : memref<9x512xf32, #tpu.memory_space<vmem>>, vector<1x512xf32>
    %276 = vector.broadcast %275 : vector<1x512xf32> to vector<16x512xf32>
    %277 = arith.mulf %274, %276 : vector<16x512xf32>
    %278 = arith.truncf %277 : vector<16x512xf32> to vector<16x512xbf16>
    %c48_196 = arith.constant 48 : index
    %c0_197 = arith.constant 0 : index
    %279 = vector.load %arg14[%c48_196, %c0_197] : memref<288x512xbf16, #tpu.memory_space<vmem>>, vector<16x512xbf16>
    tpu.vector_store %arg14[%c48_196, %c0_197], %278 {strides = array<i32>} : memref<288x512xbf16, #tpu.memory_space<vmem>>, vector<16x512xbf16>,
    %280 = arith.truncf %251 : vector<16x512xf32> to vector<16x512xbf16>
    %c64_198 = arith.constant 64 : index
    %c0_199 = arith.constant 0 : index
    %281 = vector.load %arg14[%c64_198, %c0_199] : memref<288x512xbf16, #tpu.memory_space<vmem>>, vector<16x512xbf16>
    tpu.vector_store %arg14[%c64_198, %c0_199], %280 {strides = array<i32>} : memref<288x512xbf16, #tpu.memory_space<vmem>>, vector<16x512xbf16>,
    %c511_i32_200 = arith.constant 511 : i32
    %282 = tpu.dynamic_rotate %251 by %c511_i32_200 dim 1 : vector<16x512xf32>, i32 -> vector<16x512xf32>
    %c5_201 = arith.constant 5 : index
    %c0_202 = arith.constant 0 : index
    %283 = vector.load %arg2[%c5_201, %c0_202] : memref<9x512xf32, #tpu.memory_space<vmem>>, vector<1x512xf32>
    %284 = vector.broadcast %283 : vector<1x512xf32> to vector<16x512xf32>
    %285 = arith.mulf %282, %284 : vector<16x512xf32>
    %286 = arith.truncf %285 : vector<16x512xf32> to vector<16x512xbf16>
    %c80_203 = arith.constant 80 : index
    %c0_204 = arith.constant 0 : index
    %287 = vector.load %arg14[%c80_203, %c0_204] : memref<288x512xbf16, #tpu.memory_space<vmem>>, vector<16x512xbf16>
    tpu.vector_store %arg14[%c80_203, %c0_204], %286 {strides = array<i32>} : memref<288x512xbf16, #tpu.memory_space<vmem>>, vector<16x512xbf16>,
    %c497_i32_205 = arith.constant 497 : i32
    %288 = tpu.dynamic_rotate %251 by %c497_i32_205 dim 1 : vector<16x512xf32>, i32 -> vector<16x512xf32>
    %c6_206 = arith.constant 6 : index
    %c0_207 = arith.constant 0 : index
    %289 = vector.load %arg2[%c6_206, %c0_207] : memref<9x512xf32, #tpu.memory_space<vmem>>, vector<1x512xf32>
    %290 = vector.broadcast %289 : vector<1x512xf32> to vector<16x512xf32>
    %291 = arith.mulf %288, %290 : vector<16x512xf32>
    %292 = arith.truncf %291 : vector<16x512xf32> to vector<16x512xbf16>
    %c96_208 = arith.constant 96 : index
    %c0_209 = arith.constant 0 : index
    %293 = vector.load %arg14[%c96_208, %c0_209] : memref<288x512xbf16, #tpu.memory_space<vmem>>, vector<16x512xbf16>
    tpu.vector_store %arg14[%c96_208, %c0_209], %292 {strides = array<i32>} : memref<288x512xbf16, #tpu.memory_space<vmem>>, vector<16x512xbf16>,
    %c496_i32_210 = arith.constant 496 : i32
    %294 = tpu.dynamic_rotate %251 by %c496_i32_210 dim 1 : vector<16x512xf32>, i32 -> vector<16x512xf32>
    %c7_211 = arith.constant 7 : index
    %c0_212 = arith.constant 0 : index
    %295 = vector.load %arg2[%c7_211, %c0_212] : memref<9x512xf32, #tpu.memory_space<vmem>>, vector<1x512xf32>
    %296 = vector.broadcast %295 : vector<1x512xf32> to vector<16x512xf32>
    %297 = arith.mulf %294, %296 : vector<16x512xf32>
    %298 = arith.truncf %297 : vector<16x512xf32> to vector<16x512xbf16>
    %c112_213 = arith.constant 112 : index
    %c0_214 = arith.constant 0 : index
    %299 = vector.load %arg14[%c112_213, %c0_214] : memref<288x512xbf16, #tpu.memory_space<vmem>>, vector<16x512xbf16>
    tpu.vector_store %arg14[%c112_213, %c0_214], %298 {strides = array<i32>} : memref<288x512xbf16, #tpu.memory_space<vmem>>, vector<16x512xbf16>,
    %c495_i32_215 = arith.constant 495 : i32
    %300 = tpu.dynamic_rotate %251 by %c495_i32_215 dim 1 : vector<16x512xf32>, i32 -> vector<16x512xf32>
    %c8_216 = arith.constant 8 : index
    %c0_217 = arith.constant 0 : index
    %301 = vector.load %arg2[%c8_216, %c0_217] : memref<9x512xf32, #tpu.memory_space<vmem>>, vector<1x512xf32>
    %302 = vector.broadcast %301 : vector<1x512xf32> to vector<16x512xf32>
    %303 = arith.mulf %300, %302 : vector<16x512xf32>
    %304 = arith.truncf %303 : vector<16x512xf32> to vector<16x512xbf16>
    %c128_218 = arith.constant 128 : index
    %c0_219 = arith.constant 0 : index
    %305 = vector.load %arg14[%c128_218, %c0_219] : memref<288x512xbf16, #tpu.memory_space<vmem>>, vector<16x512xbf16>
    tpu.vector_store %arg14[%c128_218, %c0_219], %304 {strides = array<i32>} : memref<288x512xbf16, #tpu.memory_space<vmem>>, vector<16x512xbf16>,
    %c0_220 = arith.constant 0 : index
    %c0_221 = arith.constant 0 : index
    %306 = vector.load %arg14[%c0_220, %c0_221] : memref<288x512xbf16, #tpu.memory_space<vmem>>, vector<144x512xbf16>
    %cst_222 = arith.constant dense<0.000000e+00> : vector<32x512xf32>
    %307 = tpu.matmul %253, %306, %cst_222 {dimension_numbers = #tpu.dot_dimension_numbers<[1], [0], [0], [1], [0, 0, 1, 1], [], []>} : vector<32x144xbf16>, vector<144x512xbf16>, vector<32x512xf32> -> vector<32x512xf32>
    %308 = vector.broadcast %255 : vector<32x1xf32> to vector<32x512xf32>
    %309 = arith.addf %307, %308 : vector<32x512xf32>
    %310 = arith.addf %191, %309 : vector<32x512xf32>
    %311 = vector.extract_strided_slice %310 {offsets = [0, 0], sizes = [32, 256], strides = [1, 1]} : vector<32x512xf32> to vector<32x256xf32>
    %cst_223 = arith.constant dense<0.000000e+00> : vector<32xf32>
    %312 = vector.multi_reduction <add>, %311, %cst_223 [1] : vector<32x256xf32> to vector<32xf32>
    %313 = vector.shape_cast %312 : vector<32xf32> to vector<32x1xf32>
    %314 = vector.extract_strided_slice %310 {offsets = [0, 256], sizes = [32, 256], strides = [1, 1]} : vector<32x512xf32> to vector<32x256xf32>
    %cst_224 = arith.constant dense<0.000000e+00> : vector<32xf32>
    %315 = vector.multi_reduction <add>, %314, %cst_224 [1] : vector<32x256xf32> to vector<32xf32>
    %316 = vector.shape_cast %315 : vector<32xf32> to vector<32x1xf32>
    %317 = tpu.concatenate %313, %316 in 1 : vector<32x1xf32>, vector<32x1xf32> -> vector<32x2xf32>
    %cst_225 = arith.constant 3.906250e-03 : f32
    %318 = vector.broadcast %cst_225 : f32 to vector<32x2xf32>
    %319 = arith.mulf %317, %318 : vector<32x2xf32>
    %c0_226 = arith.constant 0 : index
    %c0_227 = arith.constant 0 : index
    %320 = vector.load %arg9[%c0_226, %c0_227] : memref<48x32xf32, #tpu.memory_space<vmem>>, vector<48x32xf32>
    %cst_228 = arith.constant dense<0.000000e+00> : vector<48x2xf32>
    %321 = tpu.matmul %320, %319, %cst_228 {dimension_numbers = #tpu.dot_dimension_numbers<[1], [0], [0], [1], [0, 0, 1, 1], [], []>} : vector<48x32xf32>, vector<32x2xf32>, vector<48x2xf32> -> vector<48x2xf32>
    %c0_229 = arith.constant 0 : index
    %c0_230 = arith.constant 0 : index
    %322 = vector.load %arg10[%c0_229, %c0_230] : memref<48x1xf32, #tpu.memory_space<vmem>>, vector<48x1xf32>
    %323 = vector.broadcast %322 : vector<48x1xf32> to vector<48x2xf32>
    %324 = arith.addf %321, %323 : vector<48x2xf32>
    %c0_231 = arith.constant 0 : index
    %c0_232 = arith.constant 0 : index
    %325 = vector.load %arg11[%c0_231, %c0_232] : memref<16x48xf32, #tpu.memory_space<vmem>>, vector<16x48xf32>
    %cst_233 = arith.constant dense<0.000000e+00> : vector<16x2xf32>
    %326 = tpu.matmul %325, %324, %cst_233 {dimension_numbers = #tpu.dot_dimension_numbers<[1], [0], [0], [1], [0, 0, 1, 1], [], []>} : vector<16x48xf32>, vector<48x2xf32>, vector<16x2xf32> -> vector<16x2xf32>
    %c0_234 = arith.constant 0 : index
    %c0_235 = arith.constant 0 : index
    %327 = vector.load %arg12[%c0_234, %c0_235] : memref<16x1xf32, #tpu.memory_space<vmem>>, vector<16x1xf32>
    %328 = vector.broadcast %327 : vector<16x1xf32> to vector<16x2xf32>
    %329 = arith.addf %326, %328 : vector<16x2xf32>
    %cst_236 = arith.constant dense<0xFF800000> : vector<2xf32>
    %330 = vector.multi_reduction <maximumf>, %329, %cst_236 [0] : vector<16x2xf32> to vector<2xf32>
    %331 = vector.shape_cast %330 : vector<2xf32> to vector<1x2xf32>
    %332 = vector.broadcast %331 : vector<1x2xf32> to vector<16x2xf32>
    %333 = arith.subf %329, %332 : vector<16x2xf32>
    %334 = math.exp %333 : vector<16x2xf32>
    %cst_237 = arith.constant dense<0.000000e+00> : vector<2xf32>
    %335 = vector.multi_reduction <add>, %334, %cst_237 [0] : vector<16x2xf32> to vector<2xf32>
    %336 = vector.shape_cast %335 : vector<2xf32> to vector<1x2xf32>
    %337 = math.log %336 : vector<1x2xf32>
    %338 = vector.broadcast %337 : vector<1x2xf32> to vector<16x2xf32>
    %339 = arith.subf %333, %338 : vector<16x2xf32>
    %c0_238 = arith.constant 0 : index
    %c0_239 = arith.constant 0 : index
    %c0_240 = arith.constant 0 : index
    %340 = vector.load %arg13[%c0_238, %c0_239, %c0_240] : memref<1x16x2xf32, #tpu.memory_space<vmem>>, vector<1x16x2xf32>
    %341 = vector.shape_cast %340 : vector<1x16x2xf32> to vector<16x2xf32>
    %342 = vector.shape_cast %339 : vector<16x2xf32> to vector<1x16x2xf32>
    tpu.vector_store %arg13[%c0_238, %c0_239, %c0_240], %342 {strides = array<i32>} : memref<1x16x2xf32, #tpu.memory_space<vmem>>, vector<1x16x2xf32>,
    return
  }
  func.func @transform_0(%arg0: i32) -> (i32, i32, i32) {
    %c0_i32 = arith.constant 0 : i32
    %c0_i32_0 = arith.constant 0 : i32
    %c0_i32_1 = arith.constant 0 : i32
    return %arg0, %c0_i32, %c0_i32_0 : i32, i32, i32
  }
  func.func @transform_1(%arg0: i32) -> (i32, i32) {
    %c0_i32 = arith.constant 0 : i32
    %c0_i32_0 = arith.constant 0 : i32
    %c0_i32_1 = arith.constant 0 : i32
    return %c0_i32, %c0_i32_0 : i32, i32
  }
  func.func @transform_2(%arg0: i32) -> (i32, i32) {
    %c0_i32 = arith.constant 0 : i32
    %c0_i32_0 = arith.constant 0 : i32
    %c0_i32_1 = arith.constant 0 : i32
    return %c0_i32, %c0_i32_0 : i32, i32
  }
  func.func @transform_3(%arg0: i32) -> (i32, i32) {
    %c0_i32 = arith.constant 0 : i32
    %c0_i32_0 = arith.constant 0 : i32
    %c0_i32_1 = arith.constant 0 : i32
    return %c0_i32, %c0_i32_0 : i32, i32
  }
  func.func @transform_4(%arg0: i32) -> (i32, i32, i32) {
    %c0_i32 = arith.constant 0 : i32
    %c0_i32_0 = arith.constant 0 : i32
    %c0_i32_1 = arith.constant 0 : i32
    %c0_i32_2 = arith.constant 0 : i32
    return %c0_i32, %c0_i32_0, %c0_i32_1 : i32, i32, i32
  }
  func.func @transform_5(%arg0: i32) -> (i32, i32, i32) {
    %c0_i32 = arith.constant 0 : i32
    %c0_i32_0 = arith.constant 0 : i32
    %c0_i32_1 = arith.constant 0 : i32
    %c0_i32_2 = arith.constant 0 : i32
    return %c0_i32, %c0_i32_0, %c0_i32_1 : i32, i32, i32
  }
  func.func @transform_6(%arg0: i32) -> (i32, i32, i32) {
    %c0_i32 = arith.constant 0 : i32
    %c0_i32_0 = arith.constant 0 : i32
    %c0_i32_1 = arith.constant 0 : i32
    %c0_i32_2 = arith.constant 0 : i32
    return %c0_i32, %c0_i32_0, %c0_i32_1 : i32, i32, i32
  }
  func.func @transform_7(%arg0: i32) -> (i32, i32, i32) {
    %c0_i32 = arith.constant 0 : i32
    %c0_i32_0 = arith.constant 0 : i32
    %c0_i32_1 = arith.constant 0 : i32
    %c0_i32_2 = arith.constant 0 : i32
    return %c0_i32, %c0_i32_0, %c0_i32_1 : i32, i32, i32
  }
  func.func @transform_8(%arg0: i32) -> (i32, i32) {
    %c0_i32 = arith.constant 0 : i32
    %c0_i32_0 = arith.constant 0 : i32
    %c0_i32_1 = arith.constant 0 : i32
    return %c0_i32, %c0_i32_0 : i32, i32
  }
  func.func @transform_9(%arg0: i32) -> (i32, i32) {
    %c0_i32 = arith.constant 0 : i32
    %c0_i32_0 = arith.constant 0 : i32
    %c0_i32_1 = arith.constant 0 : i32
    return %c0_i32, %c0_i32_0 : i32, i32
  }
  func.func @transform_10(%arg0: i32) -> (i32, i32) {
    %c0_i32 = arith.constant 0 : i32
    %c0_i32_0 = arith.constant 0 : i32
    %c0_i32_1 = arith.constant 0 : i32
    return %c0_i32, %c0_i32_0 : i32, i32
  }
  func.func @transform_11(%arg0: i32) -> (i32, i32) {
    %c0_i32 = arith.constant 0 : i32
    %c0_i32_0 = arith.constant 0 : i32
    %c0_i32_1 = arith.constant 0 : i32
    return %c0_i32, %c0_i32_0 : i32, i32
  }
  func.func @transform_12(%arg0: i32) -> (i32, i32, i32) {
    %c0_i32 = arith.constant 0 : i32
    %c0_i32_0 = arith.constant 0 : i32
    %c0_i32_1 = arith.constant 0 : i32
    return %arg0, %c0_i32, %c0_i32_0 : i32, i32, i32
  }
}

</mosaic_0001>

<llo_original>
// kernel: edgespeechnet_forward.1
$region0: #{edgespeechnet_forward.1}
  #allocation0 [shape = 'u32[]', space=smem, size = 0x4, offset = 0x4, fixed_abs, tag = 'smem constant byte address 0x4 - core index']
  #allocation1 [shape = 'u32[144,128]{1,0:T(1,128)}', space=vmem, size = 0x12000, scoped, tag = 'internal scratch']
  #allocation2 [shape = 'bf16[288,512]{1,0:T(16,128)(2,1)}', space=vmem, size = 0x48000, scoped, tag = 'scratch operand']
  %s0 = inlined_call_operand.vmem [shape: f32[1,1,512], index: 0, kind: input, shape index: {}]
  %s1 = inlined_call_operand.vmem [shape: f32[9,512], index: 1, kind: input, shape index: {}]
  %s2 = inlined_call_operand.vmem [shape: f32[32,9], index: 2, kind: input, shape index: {}]
  %s3 = inlined_call_operand.vmem [shape: f32[32,1], index: 3, kind: input, shape index: {}]
  %s4 = inlined_call_operand.vmem [shape: bf16[2,16,288], index: 4, kind: input, shape index: {}]
  %s5 = inlined_call_operand.vmem [shape: f32[2,16,1], index: 5, kind: input, shape index: {}]
  %s6 = inlined_call_operand.vmem [shape: bf16[2,32,144], index: 6, kind: input, shape index: {}]
  %s7 = inlined_call_operand.vmem [shape: f32[2,32,1], index: 7, kind: input, shape index: {}]
  %s8 = inlined_call_operand.vmem [shape: f32[48,32], index: 8, kind: input, shape index: {}]
  %s9 = inlined_call_operand.vmem [shape: f32[48,1], index: 9, kind: input, shape index: {}]
  %s10 = inlined_call_operand.vmem [shape: f32[16,48], index: 10, kind: input, shape index: {}]
  %s11 = inlined_call_operand.vmem [shape: f32[16,1], index: 11, kind: input, shape index: {}]
  %s12 = inlined_call_operand.vmem [shape: f32[1,16,2], index: 12, kind: output, shape index: {}]
  %s13 = sld [smem:[#allocation0]]
  $region58: #{edgespeechnet_forward.1} parent=0
    _
  %s15 = ssub.s32 1, %s13
  %s16 = scalar_select 0, %s15, %s13
  // Predicated region
  $region2: #{edgespeechnet_forward.1} parent=0 // pred_check
    _
  $region3: #{edgespeechnet_forward.1} parent=0 // pred_check_branch
    %18 = sbr.rel (0) target = $region5
  $region4: #{edgespeechnet_forward.1} parent=0 // pred_region
    _
  $region5: #{edgespeechnet_forward.1} parent=0 // pred_fallthru
    _
  // Predicated region
  $region6: #{edgespeechnet_forward.1} parent=0 // pred_check
    _
  $region7: #{edgespeechnet_forward.1} parent=0 // pred_check_branch
    %20 = sbr.rel (0) target = $region9
  $region8: #{edgespeechnet_forward.1} parent=0 // pred_region
    _
  $region9: #{edgespeechnet_forward.1} parent=0 // pred_fallthru
    _
  // Predicated region
  $region10: #{edgespeechnet_forward.1} parent=0 // pred_check
    _
  $region11: #{edgespeechnet_forward.1} parent=0 // pred_check_branch
    %22 = sbr.rel (0) target = $region13
  $region12: #{edgespeechnet_forward.1} parent=0 // pred_region
    _
  $region13: #{edgespeechnet_forward.1} parent=0 // pred_fallthru
    _
  // Predicated region
  $region14: #{edgespeechnet_forward.1} parent=0 // pred_check
    _
  $region15: #{edgespeechnet_forward.1} parent=0 // pred_check_branch
    %24 = sbr.rel (0) target = $region17
  $region16: #{edgespeechnet_forward.1} parent=0 // pred_region
    _
  $region17: #{edgespeechnet_forward.1} parent=0 // pred_fallthru
    _
  // Predicated region
  $region18: #{edgespeechnet_forward.1} parent=0 // pred_check
    _
  $region19: #{edgespeechnet_forward.1} parent=0 // pred_check_branch
    %26 = sbr.rel (0) target = $region21
  $region20: #{edgespeechnet_forward.1} parent=0 // pred_region
    _
  $region21: #{edgespeechnet_forward.1} parent=0 // pred_fallthru
    _
  // Predicated region
  $region22: #{edgespeechnet_forward.1} parent=0 // pred_check
    _
  $region23: #{edgespeechnet_forward.1} parent=0 // pred_check_branch
    %28 = sbr.rel (0) target = $region25
  $region24: #{edgespeechnet_forward.1} parent=0 // pred_region
    _
  $region25: #{edgespeechnet_forward.1} parent=0 // pred_fallthru
    _
  // Predicated region
  $region26: #{edgespeechnet_forward.1} parent=0 // pred_check
    _
  $region27: #{edgespeechnet_forward.1} parent=0 // pred_check_branch
    %30 = sbr.rel (0) target = $region29
  $region28: #{edgespeechnet_forward.1} parent=0 // pred_region
    _
  $region29: #{edgespeechnet_forward.1} parent=0 // pred_fallthru
    _
  // Predicated region
  $region30: #{edgespeechnet_forward.1} parent=0 // pred_check
    _
  $region31: #{edgespeechnet_forward.1} parent=0 // pred_check_branch
    %32 = sbr.rel (0) target = $region33
  $region32: #{edgespeechnet_forward.1} parent=0 // pred_region
    _
  $region33: #{edgespeechnet_forward.1} parent=0 // pred_fallthru
    _
  // Predicated region
  $region34: #{edgespeechnet_forward.1} parent=0 // pred_check
    _
  $region35: #{edgespeechnet_forward.1} parent=0 // pred_check_branch
    %34 = sbr.rel (0) target = $region37
  $region36: #{edgespeechnet_forward.1} parent=0 // pred_region
    _
  $region37: #{edgespeechnet_forward.1} parent=0 // pred_fallthru
    _
  // Predicated region
  $region38: #{edgespeechnet_forward.1} parent=0 // pred_check
    _
  $region39: #{edgespeechnet_forward.1} parent=0 // pred_check_branch
    %36 = sbr.rel (0) target = $region41
  $region40: #{edgespeechnet_forward.1} parent=0 // pred_region
    _
  $region41: #{edgespeechnet_forward.1} parent=0 // pred_fallthru
    _
  // Predicated region
  $region42: #{edgespeechnet_forward.1} parent=0 // pred_check
    _
  $region43: #{edgespeechnet_forward.1} parent=0 // pred_check_branch
    %38 = sbr.rel (0) target = $region45
  $region44: #{edgespeechnet_forward.1} parent=0 // pred_region
    _
  $region45: #{edgespeechnet_forward.1} parent=0 // pred_fallthru
    _
  // Predicated region
  $region46: #{edgespeechnet_forward.1} parent=0 // pred_check
    _
  $region47: #{edgespeechnet_forward.1} parent=0 // pred_check_branch
    %40 = sbr.rel (0) target = $region49
  $region48: #{edgespeechnet_forward.1} parent=0 // pred_region
    _
  $region49: #{edgespeechnet_forward.1} parent=0 // pred_fallthru
    _
  %v42 = vld [vmem:[%s0] sm:$0xf]
  %v43 = vld [vmem:[%s2] sm:$0xff]
  %v44 = vld [vmem:[%s2 + $0x8] sm:$0xff]
  %v45 = vld [vmem:[%s2 + $0x10] sm:$0xff]
  %v46 = vld [vmem:[%s2 + $0x18] sm:$0xff]
  %v48 = vlaneseq
  %v49 = vshrl.u32 %v48, 7
  %v50 = vsub.s32 0, %v49
  %v51 = vrot.slane %v42, %v50
  %v52 = vlaneseq
  %v53 = vshrl.u32 %v52, 7
  %v54 = vsub.s32 1, %v53
  %v55 = vrot.slane %v42, %v54
  %v56 = vlaneseq
  %v57 = vshrl.u32 %v56, 7
  %v58 = vsub.s32 2, %v57
  %v59 = vrot.slane %v42, %v58
  %v60 = vlaneseq
  %v61 = vshrl.u32 %v60, 7
  %v62 = vsub.s32 3, %v61
  %v63 = vrot.slane %v42, %v62
  %68 = vrot.lane.b32.xlu0 %v51, 17
  %v69 = vpop.permute.xlu0 %68
  %70 = vrot.lane.b32.xlu0 %v55, 17
  %v71 = vpop.permute.xlu0 %70
  %72 = vrot.lane.b32.xlu0 %v59, 17
  %v73 = vpop.permute.xlu0 %72
  %74 = vrot.lane.b32.xlu0 %v63, 17
  %v75 = vpop.permute.xlu0 %74
  %v76 = vlaneseq
  %v77 = vand.u32 %v76, 127
  %vm78 = vcmp.lt.s32.totalorder %v77, 17
  %v79 = vsel %vm78, %v73, %v75
  %v80 = vsel %vm78, %v71, %v73
  %v81 = vsel %vm78, %v69, %v71
  %v82 = vsel %vm78, %v75, %v69
  %v83 = vld [vmem:[%s1] ss:$8 sm:$0xf]
  %v85 = vlaneseq
  %v86 = vshrl.u32 %v85, 7
  %v87 = vsub.s32 0, %v86
  %v88 = vrot.slane %v83, %v87
  %v89 = vlaneseq
  %v90 = vshrl.u32 %v89, 7
  %v91 = vsub.s32 1, %v90
  %v92 = vrot.slane %v83, %v91
  %v93 = vlaneseq
  %v94 = vshrl.u32 %v93, 7
  %v95 = vsub.s32 2, %v94
  %v96 = vrot.slane %v83, %v95
  %v97 = vlaneseq
  %v98 = vshrl.u32 %v97, 7
  %v99 = vsub.s32 3, %v98
  %v100 = vrot.slane %v83, %v99
  %v105 = vmul.f32 %v82, %v88
  %v106 = vmul.f32 %v81, %v92
  %v107 = vmul.f32 %v80, %v96
  %v108 = vmul.f32 %v79, %v100
  %110 = vset.pattern.permute.xlu0 0
  %111 = vperm.xlu0 %110, %v43
  %v112 = vpop.permute.xlu0 %111
  %115 = vset.pattern.permute.xlu0 0
  %116 = vperm.xlu0 %115, %v44
  %v117 = vpop.permute.xlu0 %116
  %120 = vset.pattern.permute.xlu0 0
  %121 = vperm.xlu0 %120, %v45
  %v122 = vpop.permute.xlu0 %121
  %125 = vset.pattern.permute.xlu0 0
  %126 = vperm.xlu0 %125, %v46
  %v127 = vpop.permute.xlu0 %126
  %v129 = vlaneseq
  %v130 = vshrl.u32 %v129, 7
  %v131 = vsub.s32 0, %v130
  %v132 = vrot.slane %v105, %v131
  %v133 = vlaneseq
  %v134 = vshrl.u32 %v133, 7
  %v135 = vsub.s32 0, %v134
  %v136 = vrot.slane %v106, %v135
  %v137 = vlaneseq
  %v138 = vshrl.u32 %v137, 7
  %v139 = vsub.s32 0, %v138
  %v140 = vrot.slane %v107, %v139
  %v141 = vlaneseq
  %v142 = vshrl.u32 %v141, 7
  %v143 = vsub.s32 0, %v142
  %v144 = vrot.slane %v108, %v143
  %v145 = vmul.f32 %v112, %v132
  %v146 = vmul.f32 %v112, %v136
  %v147 = vmul.f32 %v112, %v140
  %v148 = vmul.f32 %v112, %v144
  %v149 = vmul.f32 %v117, %v132
  %v150 = vmul.f32 %v117, %v136
  %v151 = vmul.f32 %v117, %v140
  %v152 = vmul.f32 %v117, %v144
  %v153 = vmul.f32 %v122, %v132
  %v154 = vmul.f32 %v122, %v136
  %v155 = vmul.f32 %v122, %v140
  %v156 = vmul.f32 %v122, %v144
  %v157 = vmul.f32 %v127, %v132
  %v158 = vmul.f32 %v127, %v136
  %v159 = vmul.f32 %v127, %v140
  %v160 = vmul.f32 %v127, %v144
  %161 = vrot.lane.b32.xlu0 %v51, 16
  %v162 = vpop.permute.xlu0 %161
  %163 = vrot.lane.b32.xlu0 %v55, 16
  %v164 = vpop.permute.xlu0 %163
  %165 = vrot.lane.b32.xlu0 %v59, 16
  %v166 = vpop.permute.xlu0 %165
  %167 = vrot.lane.b32.xlu0 %v63, 16
  %v168 = vpop.permute.xlu0 %167
  %vm169 = vcmp.lt.s32.totalorder %v77, 16
  %v170 = vsel %vm169, %v166, %v168
  %v171 = vsel %vm169, %v164, %v166
  %v172 = vsel %vm169, %v162, %v164
  %v173 = vsel %vm169, %v168, %v162
  %s174 = scalar_lea.vmem %s1, 1
  %v175 = vld [vmem:[%s174] ss:$8 sm:$0xf]
  %v177 = vlaneseq
  %v178 = vshrl.u32 %v177, 7
  %v179 = vsub.s32 0, %v178
  %v180 = vrot.slane %v175, %v179
  %v181 = vlaneseq
  %v182 = vshrl.u32 %v181, 7
  %v183 = vsub.s32 1, %v182
  %v184 = vrot.slane %v175, %v183
  %v185 = vlaneseq
  %v186 = vshrl.u32 %v185, 7
  %v187 = vsub.s32 2, %v186
  %v188 = vrot.slane %v175, %v187
  %v189 = vlaneseq
  %v190 = vshrl.u32 %v189, 7
  %v191 = vsub.s32 3, %v190
  %v192 = vrot.slane %v175, %v191
  %v197 = vmul.f32 %v173, %v180
  %v198 = vmul.f32 %v172, %v184
  %v199 = vmul.f32 %v171, %v188
  %v200 = vmul.f32 %v170, %v192
  %201 = vset.pattern.permute.xlu0 1
  %202 = vperm.xlu0 %201, %v43
  %v203 = vpop.permute.xlu0 %202
  %205 = vset.pattern.permute.xlu0 1
  %206 = vperm.xlu0 %205, %v44
  %v207 = vpop.permute.xlu0 %206
  %209 = vset.pattern.permute.xlu0 1
  %210 = vperm.xlu0 %209, %v45
  %v211 = vpop.permute.xlu0 %210
  %213 = vset.pattern.permute.xlu0 1
  %214 = vperm.xlu0 %213, %v46
  %v215 = vpop.permute.xlu0 %214
  %v217 = vlaneseq
  %v218 = vshrl.u32 %v217, 7
  %v219 = vsub.s32 0, %v218
  %v220 = vrot.slane %v197, %v219
  %v221 = vlaneseq
  %v222 = vshrl.u32 %v221, 7
  %v223 = vsub.s32 0, %v222
  %v224 = vrot.slane %v198, %v223
  %v225 = vlaneseq
  %v226 = vshrl.u32 %v225, 7
  %v227 = vsub.s32 0, %v226
  %v228 = vrot.slane %v199, %v227
  %v229 = vlaneseq
  %v230 = vshrl.u32 %v229, 7
  %v231 = vsub.s32 0, %v230
  %v232 = vrot.slane %v200, %v231
  %v233 = vmul.f32 %v203, %v220
  %v234 = vmul.f32 %v203, %v224
  %v235 = vmul.f32 %v203, %v228
  %v236 = vmul.f32 %v203, %v232
  %v237 = vmul.f32 %v207, %v220
  %v238 = vmul.f32 %v207, %v224
  %v239 = vmul.f32 %v207, %v228
  %v240 = vmul.f32 %v207, %v232
  %v241 = vmul.f32 %v211, %v220
  %v242 = vmul.f32 %v211, %v224
  %v243 = vmul.f32 %v211, %v228
  %v244 = vmul.f32 %v211, %v232
  %v245 = vmul.f32 %v215, %v220
  %v246 = vmul.f32 %v215, %v224
  %v247 = vmul.f32 %v215, %v228
  %v248 = vmul.f32 %v215, %v232
  %v249 = vadd.f32 %v145, %v233
  %v250 = vadd.f32 %v146, %v234
  %v251 = vadd.f32 %v147, %v235
  %v252 = vadd.f32 %v148, %v236
  %v253 = vadd.f32 %v149, %v237
  %v254 = vadd.f32 %v150, %v238
  %v255 = vadd.f32 %v151, %v239
  %v256 = vadd.f32 %v152, %v240
  %v257 = vadd.f32 %v153, %v241
  %v258 = vadd.f32 %v154, %v242
  %v259 = vadd.f32 %v155, %v243
  %v260 = vadd.f32 %v156, %v244
  %v261 = vadd.f32 %v157, %v245
  %v262 = vadd.f32 %v158, %v246
  %v263 = vadd.f32 %v159, %v247
  %v264 = vadd.f32 %v160, %v248
  %265 = vrot.lane.b32.xlu0 %v51, 15
  %v266 = vpop.permute.xlu0 %265
  %267 = vrot.lane.b32.xlu0 %v55, 15
  %v268 = vpop.permute.xlu0 %267
  %269 = vrot.lane.b32.xlu0 %v59, 15
  %v270 = vpop.permute.xlu0 %269
  %271 = vrot.lane.b32.xlu0 %v63, 15
  %v272 = vpop.permute.xlu0 %271
  %vm273 = vcmp.lt.s32.totalorder %v77, 15
  %v274 = vsel %vm273, %v270, %v272
  %v275 = vsel %vm273, %v268, %v270
  %v276 = vsel %vm273, %v266, %v268
  %v277 = vsel %vm273, %v272, %v266
  %s278 = scalar_lea.vmem %s1, 2
  %v279 = vld [vmem:[%s278] ss:$8 sm:$0xf]
  %v281 = vlaneseq
  %v282 = vshrl.u32 %v281, 7
  %v283 = vsub.s32 0, %v282
  %v284 = vrot.slane %v279, %v283
  %v285 = vlaneseq
  %v286 = vshrl.u32 %v285, 7
  %v287 = vsub.s32 1, %v286
  %v288 = vrot.slane %v279, %v287
  %v289 = vlaneseq
  %v290 = vshrl.u32 %v289, 7
  %v291 = vsub.s32 2, %v290
  %v292 = vrot.slane %v279, %v291
  %v293 = vlaneseq
  %v294 = vshrl.u32 %v293, 7
  %v295 = vsub.s32 3, %v294
  %v296 = vrot.slane %v279, %v295
  %v301 = vmul.f32 %v277, %v284
  %v302 = vmul.f32 %v276, %v288
  %v303 = vmul.f32 %v275, %v292
  %v304 = vmul.f32 %v274, %v296
  %305 = vset.pattern.permute.xlu0 2
  %306 = vperm.xlu0 %305, %v43
  %v307 = vpop.permute.xlu0 %306
  %309 = vset.pattern.permute.xlu0 2
  %310 = vperm.xlu0 %309, %v44
  %v311 = vpop.permute.xlu0 %310
  %313 = vset.pattern.permute.xlu0 2
  %314 = vperm.xlu0 %313, %v45
  %v315 = vpop.permute.xlu0 %314
  %317 = vset.pattern.permute.xlu0 2
  %318 = vperm.xlu0 %317, %v46
  %v319 = vpop.permute.xlu0 %318
  %v321 = vlaneseq
  %v322 = vshrl.u32 %v321, 7
  %v323 = vsub.s32 0, %v322
  %v324 = vrot.slane %v301, %v323
  %v325 = vlaneseq
  %v326 = vshrl.u32 %v325, 7
  %v327 = vsub.s32 0, %v326
  %v328 = vrot.slane %v302, %v327
  %v329 = vlaneseq
  %v330 = vshrl.u32 %v329, 7
  %v331 = vsub.s32 0, %v330
  %v332 = vrot.slane %v303, %v331
  %v333 = vlaneseq
  %v334 = vshrl.u32 %v333, 7
  %v335 = vsub.s32 0, %v334
  %v336 = vrot.slane %v304, %v335
  %v337 = vmul.f32 %v307, %v324
  %v338 = vmul.f32 %v307, %v328
  %v339 = vmul.f32 %v307, %v332
  %v340 = vmul.f32 %v307, %v336
  %v341 = vmul.f32 %v311, %v324
  %v342 = vmul.f32 %v311, %v328
  %v343 = vmul.f32 %v311, %v332
  %v344 = vmul.f32 %v311, %v336
  %v345 = vmul.f32 %v315, %v324
  %v346 = vmul.f32 %v315, %v328
  %v347 = vmul.f32 %v315, %v332
  %v348 = vmul.f32 %v315, %v336
  %v349 = vmul.f32 %v319, %v324
  %v350 = vmul.f32 %v319, %v328
  %v351 = vmul.f32 %v319, %v332
  %v352 = vmul.f32 %v319, %v336
  %v353 = vadd.f32 %v249, %v337
  %v354 = vadd.f32 %v250, %v338
  %v355 = vadd.f32 %v251, %v339
  %v356 = vadd.f32 %v252, %v340
  %v357 = vadd.f32 %v253, %v341
  %v358 = vadd.f32 %v254, %v342
  %v359 = vadd.f32 %v255, %v343
  %v360 = vadd.f32 %v256, %v344
  %v361 = vadd.f32 %v257, %v345
  %v362 = vadd.f32 %v258, %v346
  %v363 = vadd.f32 %v259, %v347
  %v364 = vadd.f32 %v260, %v348
  %v365 = vadd.f32 %v261, %v349
  %v366 = vadd.f32 %v262, %v350
  %v367 = vadd.f32 %v263, %v351
  %v368 = vadd.f32 %v264, %v352
  %369 = vrot.lane.b32.xlu0 %v51, 1
  %v370 = vpop.permute.xlu0 %369
  %371 = vrot.lane.b32.xlu0 %v55, 1
  %v372 = vpop.permute.xlu0 %371
  %373 = vrot.lane.b32.xlu0 %v59, 1
  %v374 = vpop.permute.xlu0 %373
  %375 = vrot.lane.b32.xlu0 %v63, 1
  %v376 = vpop.permute.xlu0 %375
  %vm377 = vcmp.lt.s32.totalorder %v77, 1
  %v378 = vsel %vm377, %v374, %v376
  %v379 = vsel %vm377, %v372, %v374
  %v380 = vsel %vm377, %v370, %v372
  %v381 = vsel %vm377, %v376, %v370
  %s382 = scalar_lea.vmem %s1, 3
  %v383 = vld [vmem:[%s382] ss:$8 sm:$0xf]
  %v385 = vlaneseq
  %v386 = vshrl.u32 %v385, 7
  %v387 = vsub.s32 0, %v386
  %v388 = vrot.slane %v383, %v387
  %v389 = vlaneseq
  %v390 = vshrl.u32 %v389, 7
  %v391 = vsub.s32 1, %v390
  %v392 = vrot.slane %v383, %v391
  %v393 = vlaneseq
  %v394 = vshrl.u32 %v393, 7
  %v395 = vsub.s32 2, %v394
  %v396 = vrot.slane %v383, %v395
  %v397 = vlaneseq
  %v398 = vshrl.u32 %v397, 7
  %v399 = vsub.s32 3, %v398
  %v400 = vrot.slane %v383, %v399
  %v405 = vmul.f32 %v381, %v388
  %v406 = vmul.f32 %v380, %v392
  %v407 = vmul.f32 %v379, %v396
  %v408 = vmul.f32 %v378, %v400
  %409 = vset.pattern.permute.xlu0 3
  %410 = vperm.xlu0 %409, %v43
  %v411 = vpop.permute.xlu0 %410
  %413 = vset.pattern.permute.xlu0 3
  %414 = vperm.xlu0 %413, %v44
  %v415 = vpop.permute.xlu0 %414
  %417 = vset.pattern.permute.xlu0 3
  %418 = vperm.xlu0 %417, %v45
  %v419 = vpop.permute.xlu0 %418
  %421 = vset.pattern.permute.xlu0 3
  %422 = vperm.xlu0 %421, %v46
  %v423 = vpop.permute.xlu0 %422
  %v425 = vlaneseq
  %v426 = vshrl.u32 %v425, 7
  %v427 = vsub.s32 0, %v426
  %v428 = vrot.slane %v405, %v427
  %v429 = vlaneseq
  %v430 = vshrl.u32 %v429, 7
  %v431 = vsub.s32 0, %v430
  %v432 = vrot.slane %v406, %v431
  %v433 = vlaneseq
  %v434 = vshrl.u32 %v433, 7
  %v435 = vsub.s32 0, %v434
  %v436 = vrot.slane %v407, %v435
  %v437 = vlaneseq
  %v438 = vshrl.u32 %v437, 7
  %v439 = vsub.s32 0, %v438
  %v440 = vrot.slane %v408, %v439
  %v441 = vmul.f32 %v411, %v428
  %v442 = vmul.f32 %v411, %v432
  %v443 = vmul.f32 %v411, %v436
  %v444 = vmul.f32 %v411, %v440
  %v445 = vmul.f32 %v415, %v428
  %v446 = vmul.f32 %v415, %v432
  %v447 = vmul.f32 %v415, %v436
  %v448 = vmul.f32 %v415, %v440
  %v449 = vmul.f32 %v419, %v428
  %v450 = vmul.f32 %v419, %v432
  %v451 = vmul.f32 %v419, %v436
  %v452 = vmul.f32 %v419, %v440
  %v453 = vmul.f32 %v423, %v428
  %v454 = vmul.f32 %v423, %v432
  %v455 = vmul.f32 %v423, %v436
  %v456 = vmul.f32 %v423, %v440
  %v457 = vadd.f32 %v353, %v441
  %v458 = vadd.f32 %v354, %v442
  %v459 = vadd.f32 %v355, %v443
  %v460 = vadd.f32 %v356, %v444
  %v461 = vadd.f32 %v357, %v445
  %v462 = vadd.f32 %v358, %v446
  %v463 = vadd.f32 %v359, %v447
  %v464 = vadd.f32 %v360, %v448
  %v465 = vadd.f32 %v361, %v449
  %v466 = vadd.f32 %v362, %v450
  %v467 = vadd.f32 %v363, %v451
  %v468 = vadd.f32 %v364, %v452
  %v469 = vadd.f32 %v365, %v453
  %v470 = vadd.f32 %v366, %v454
  %v471 = vadd.f32 %v367, %v455
  %v472 = vadd.f32 %v368, %v456
  %473 = vset.pattern.permute.xlu0 4
  %474 = vperm.xlu0 %473, %v43
  %v475 = vpop.permute.xlu0 %474
  %477 = vset.pattern.permute.xlu0 4
  %478 = vperm.xlu0 %477, %v44
  %v479 = vpop.permute.xlu0 %478
  %481 = vset.pattern.permute.xlu0 4
  %482 = vperm.xlu0 %481, %v45
  %v483 = vpop.permute.xlu0 %482
  %485 = vset.pattern.permute.xlu0 4
  %486 = vperm.xlu0 %485, %v46
  %v487 = vpop.permute.xlu0 %486
  %v489 = vmul.f32 %v475, %v51
  %v490 = vmul.f32 %v475, %v55
  %v491 = vmul.f32 %v475, %v59
  %v492 = vmul.f32 %v475, %v63
  %v493 = vmul.f32 %v479, %v51
  %v494 = vmul.f32 %v479, %v55
  %v495 = vmul.f32 %v479, %v59
  %v496 = vmul.f32 %v479, %v63
  %v497 = vmul.f32 %v483, %v51
  %v498 = vmul.f32 %v483, %v55
  %v499 = vmul.f32 %v483, %v59
  %v500 = vmul.f32 %v483, %v63
  %v501 = vmul.f32 %v487, %v51
  %v502 = vmul.f32 %v487, %v55
  %v503 = vmul.f32 %v487, %v59
  %v504 = vmul.f32 %v487, %v63
  %v505 = vadd.f32 %v457, %v489
  %v506 = vadd.f32 %v458, %v490
  %v507 = vadd.f32 %v459, %v491
  %v508 = vadd.f32 %v460, %v492
  %v509 = vadd.f32 %v461, %v493
  %v510 = vadd.f32 %v462, %v494
  %v511 = vadd.f32 %v463, %v495
  %v512 = vadd.f32 %v464, %v496
  %v513 = vadd.f32 %v465, %v497
  %v514 = vadd.f32 %v466, %v498
  %v515 = vadd.f32 %v467, %v499
  %v516 = vadd.f32 %v468, %v500
  %v517 = vadd.f32 %v469, %v501
  %v518 = vadd.f32 %v470, %v502
  %v519 = vadd.f32 %v471, %v503
  %v520 = vadd.f32 %v472, %v504
  %521 = vrot.lane.b32.xlu0 %v51, 127
  %v522 = vpop.permute.xlu0 %521
  %523 = vrot.lane.b32.xlu0 %v55, 127
  %v524 = vpop.permute.xlu0 %523
  %525 = vrot.lane.b32.xlu0 %v59, 127
  %v526 = vpop.permute.xlu0 %525
  %527 = vrot.lane.b32.xlu0 %v63, 127
  %v528 = vpop.permute.xlu0 %527
  %vm529 = vcmp.lt.s32.totalorder %v77, 127
  %v530 = vsel %vm529, %v526, %v528
  %v531 = vsel %vm529, %v524, %v526
  %v532 = vsel %vm529, %v522, %v524
  %v533 = vsel %vm529, %v528, %v522
  %s534 = scalar_lea.vmem %s1, 5
  %v535 = vld [vmem:[%s534] ss:$8 sm:$0xf]
  %v537 = vlaneseq
  %v538 = vshrl.u32 %v537, 7
  %v539 = vsub.s32 0, %v538
  %v540 = vrot.slane %v535, %v539
  %v541 = vlaneseq
  %v542 = vshrl.u32 %v541, 7
  %v543 = vsub.s32 1, %v542
  %v544 = vrot.slane %v535, %v543
  %v545 = vlaneseq
  %v546 = vshrl.u32 %v545, 7
  %v547 = vsub.s32 2, %v546
  %v548 = vrot.slane %v535, %v547
  %v549 = vlaneseq
  %v550 = vshrl.u32 %v549, 7
  %v551 = vsub.s32 3, %v550
  %v552 = vrot.slane %v535, %v551
  %v557 = vmul.f32 %v532, %v540
  %v558 = vmul.f32 %v531, %v544
  %v559 = vmul.f32 %v530, %v548
  %v560 = vmul.f32 %v533, %v552
  %561 = vset.pattern.permute.xlu0 5
  %562 = vperm.xlu0 %561, %v43
  %v563 = vpop.permute.xlu0 %562
  %565 = vset.pattern.permute.xlu0 5
  %566 = vperm.xlu0 %565, %v44
  %v567 = vpop.permute.xlu0 %566
  %569 = vset.pattern.permute.xlu0 5
  %570 = vperm.xlu0 %569, %v45
  %v571 = vpop.permute.xlu0 %570
  %573 = vset.pattern.permute.xlu0 5
  %574 = vperm.xlu0 %573, %v46
  %v575 = vpop.permute.xlu0 %574
  %v577 = vlaneseq
  %v578 = vshrl.u32 %v577, 7
  %v579 = vsub.s32 0, %v578
  %v580 = vrot.slane %v557, %v579
  %v581 = vlaneseq
  %v582 = vshrl.u32 %v581, 7
  %v583 = vsub.s32 0, %v582
  %v584 = vrot.slane %v558, %v583
  %v585 = vlaneseq
  %v586 = vshrl.u32 %v585, 7
  %v587 = vsub.s32 0, %v586
  %v588 = vrot.slane %v559, %v587
  %v589 = vlaneseq
  %v590 = vshrl.u32 %v589, 7
  %v591 = vsub.s32 0, %v590
  %v592 = vrot.slane %v560, %v591
  %v593 = vmul.f32 %v563, %v580
  %v594 = vmul.f32 %v563, %v584
  %v595 = vmul.f32 %v563, %v588
  %v596 = vmul.f32 %v563, %v592
  %v597 = vmul.f32 %v567, %v580
  %v598 = vmul.f32 %v567, %v584
  %v599 = vmul.f32 %v567, %v588
  %v600 = vmul.f32 %v567, %v592
  %v601 = vmul.f32 %v571, %v580
  %v602 = vmul.f32 %v571, %v584
  %v603 = vmul.f32 %v571, %v588
  %v604 = vmul.f32 %v571, %v592
  %v605 = vmul.f32 %v575, %v580
  %v606 = vmul.f32 %v575, %v584
  %v607 = vmul.f32 %v575, %v588
  %v608 = vmul.f32 %v575, %v592
  %v609 = vadd.f32 %v505, %v593
  %v610 = vadd.f32 %v506, %v594
  %v611 = vadd.f32 %v507, %v595
  %v612 = vadd.f32 %v508, %v596
  %v613 = vadd.f32 %v509, %v597
  %v614 = vadd.f32 %v510, %v598
  %v615 = vadd.f32 %v511, %v599
  %v616 = vadd.f32 %v512, %v600
  %v617 = vadd.f32 %v513, %v601
  %v618 = vadd.f32 %v514, %v602
  %v619 = vadd.f32 %v515, %v603
  %v620 = vadd.f32 %v516, %v604
  %v621 = vadd.f32 %v517, %v605
  %v622 = vadd.f32 %v518, %v606
  %v623 = vadd.f32 %v519, %v607
  %v624 = vadd.f32 %v520, %v608
  %625 = vrot.lane.b32.xlu0 %v51, 113
  %v626 = vpop.permute.xlu0 %625
  %627 = vrot.lane.b32.xlu0 %v55, 113
  %v628 = vpop.permute.xlu0 %627
  %629 = vrot.lane.b32.xlu0 %v59, 113
  %v630 = vpop.permute.xlu0 %629
  %631 = vrot.lane.b32.xlu0 %v63, 113
  %v632 = vpop.permute.xlu0 %631
  %vm633 = vcmp.lt.s32.totalorder %v77, 113
  %v634 = vsel %vm633, %v630, %v632
  %v635 = vsel %vm633, %v628, %v630
  %v636 = vsel %vm633, %v626, %v628
  %v637 = vsel %vm633, %v632, %v626
  %s638 = scalar_lea.vmem %s1, 6
  %v639 = vld [vmem:[%s638] ss:$8 sm:$0xf]
  %v641 = vlaneseq
  %v642 = vshrl.u32 %v641, 7
  %v643 = vsub.s32 0, %v642
  %v644 = vrot.slane %v639, %v643
  %v645 = vlaneseq
  %v646 = vshrl.u32 %v645, 7
  %v647 = vsub.s32 1, %v646
  %v648 = vrot.slane %v639, %v647
  %v649 = vlaneseq
  %v650 = vshrl.u32 %v649, 7
  %v651 = vsub.s32 2, %v650
  %v652 = vrot.slane %v639, %v651
  %v653 = vlaneseq
  %v654 = vshrl.u32 %v653, 7
  %v655 = vsub.s32 3, %v654
  %v656 = vrot.slane %v639, %v655
  %v661 = vmul.f32 %v636, %v644
  %v662 = vmul.f32 %v635, %v648
  %v663 = vmul.f32 %v634, %v652
  %v664 = vmul.f32 %v637, %v656
  %665 = vset.pattern.permute.xlu0 6
  %666 = vperm.xlu0 %665, %v43
  %v667 = vpop.permute.xlu0 %666
  %669 = vset.pattern.permute.xlu0 6
  %670 = vperm.xlu0 %669, %v44
  %v671 = vpop.permute.xlu0 %670
  %673 = vset.pattern.permute.xlu0 6
  %674 = vperm.xlu0 %673, %v45
  %v675 = vpop.permute.xlu0 %674
  %677 = vset.pattern.permute.xlu0 6
  %678 = vperm.xlu0 %677, %v46
  %v679 = vpop.permute.xlu0 %678
  %v681 = vlaneseq
  %v682 = vshrl.u32 %v681, 7
  %v683 = vsub.s32 0, %v682
  %v684 = vrot.slane %v661, %v683
  %v685 = vlaneseq
  %v686 = vshrl.u32 %v685, 7
  %v687 = vsub.s32 0, %v686
  %v688 = vrot.slane %v662, %v687
  %v689 = vlaneseq
  %v690 = vshrl.u32 %v689, 7
  %v691 = vsub.s32 0, %v690
  %v692 = vrot.slane %v663, %v691
  %v693 = vlaneseq
  %v694 = vshrl.u32 %v693, 7
  %v695 = vsub.s32 0, %v694
  %v696 = vrot.slane %v664, %v695
  %v697 = vmul.f32 %v667, %v684
  %v698 = vmul.f32 %v667, %v688
  %v699 = vmul.f32 %v667, %v692
  %v700 = vmul.f32 %v667, %v696
  %v701 = vmul.f32 %v671, %v684
  %v702 = vmul.f32 %v671, %v688
  %v703 = vmul.f32 %v671, %v692
  %v704 = vmul.f32 %v671, %v696
  %v705 = vmul.f32 %v675, %v684
  %v706 = vmul.f32 %v675, %v688
  %v707 = vmul.f32 %v675, %v692
  %v708 = vmul.f32 %v675, %v696
  %v709 = vmul.f32 %v679, %v684
  %v710 = vmul.f32 %v679, %v688
  %v711 = vmul.f32 %v679, %v692
  %v712 = vmul.f32 %v679, %v696
  %v713 = vadd.f32 %v609, %v697
  %v714 = vadd.f32 %v610, %v698
  %v715 = vadd.f32 %v611, %v699
  %v716 = vadd.f32 %v612, %v700
  %v717 = vadd.f32 %v613, %v701
  %v718 = vadd.f32 %v614, %v702
  %v719 = vadd.f32 %v615, %v703
  %v720 = vadd.f32 %v616, %v704
  %v721 = vadd.f32 %v617, %v705
  %v722 = vadd.f32 %v618, %v706
  %v723 = vadd.f32 %v619, %v707
  %v724 = vadd.f32 %v620, %v708
  %v725 = vadd.f32 %v621, %v709
  %v726 = vadd.f32 %v622, %v710
  %v727 = vadd.f32 %v623, %v711
  %v728 = vadd.f32 %v624, %v712
  %729 = vrot.lane.b32.xlu0 %v51, 112
  %v730 = vpop.permute.xlu0 %729
  %731 = vrot.lane.b32.xlu0 %v55, 112
  %v732 = vpop.permute.xlu0 %731
  %733 = vrot.lane.b32.xlu0 %v59, 112
  %v734 = vpop.permute.xlu0 %733
  %735 = vrot.lane.b32.xlu0 %v63, 112
  %v736 = vpop.permute.xlu0 %735
  %vm737 = vcmp.lt.s32.totalorder %v77, 112
  %v738 = vsel %vm737, %v734, %v736
  %v739 = vsel %vm737, %v732, %v734
  %v740 = vsel %vm737, %v730, %v732
  %v741 = vsel %vm737, %v736, %v730
  %s742 = scalar_lea.vmem %s1, 7
  %v743 = vld [vmem:[%s742] ss:$8 sm:$0xf]
  %v745 = vlaneseq
  %v746 = vshrl.u32 %v745, 7
  %v747 = vsub.s32 0, %v746
  %v748 = vrot.slane %v743, %v747
  %v749 = vlaneseq
  %v750 = vshrl.u32 %v749, 7
  %v751 = vsub.s32 1, %v750
  %v752 = vrot.slane %v743, %v751
  %v753 = vlaneseq
  %v754 = vshrl.u32 %v753, 7
  %v755 = vsub.s32 2, %v754
  %v756 = vrot.slane %v743, %v755
  %v757 = vlaneseq
  %v758 = vshrl.u32 %v757, 7
  %v759 = vsub.s32 3, %v758
  %v760 = vrot.slane %v743, %v759
  %v765 = vmul.f32 %v740, %v748
  %v766 = vmul.f32 %v739, %v752
  %v767 = vmul.f32 %v738, %v756
  %v768 = vmul.f32 %v741, %v760
  %769 = vset.pattern.permute.xlu0 7
  %770 = vperm.xlu0 %769, %v43
  %v771 = vpop.permute.xlu0 %770
  %773 = vset.pattern.permute.xlu0 7
  %774 = vperm.xlu0 %773, %v44
  %v775 = vpop.permute.xlu0 %774
  %777 = vset.pattern.permute.xlu0 7
  %778 = vperm.xlu0 %777, %v45
  %v779 = vpop.permute.xlu0 %778
  %781 = vset.pattern.permute.xlu0 7
  %782 = vperm.xlu0 %781, %v46
  %v783 = vpop.permute.xlu0 %782
  %v785 = vlaneseq
  %v786 = vshrl.u32 %v785, 7
  %v787 = vsub.s32 0, %v786
  %v788 = vrot.slane %v765, %v787
  %v789 = vlaneseq
  %v790 = vshrl.u32 %v789, 7
  %v791 = vsub.s32 0, %v790
  %v792 = vrot.slane %v766, %v791
  %v793 = vlaneseq
  %v794 = vshrl.u32 %v793, 7
  %v795 = vsub.s32 0, %v794
  %v796 = vrot.slane %v767, %v795
  %v797 = vlaneseq
  %v798 = vshrl.u32 %v797, 7
  %v799 = vsub.s32 0, %v798
  %v800 = vrot.slane %v768, %v799
  %v801 = vmul.f32 %v771, %v788
  %v802 = vmul.f32 %v771, %v792
  %v803 = vmul.f32 %v771, %v796
  %v804 = vmul.f32 %v771, %v800
  %v805 = vmul.f32 %v775, %v788
  %v806 = vmul.f32 %v775, %v792
  %v807 = vmul.f32 %v775, %v796
  %v808 = vmul.f32 %v775, %v800
  %v809 = vmul.f32 %v779, %v788
  %v810 = vmul.f32 %v779, %v792
  %v811 = vmul.f32 %v779, %v796
  %v812 = vmul.f32 %v779, %v800
  %v813 = vmul.f32 %v783, %v788
  %v814 = vmul.f32 %v783, %v792
  %v815 = vmul.f32 %v783, %v796
  %v816 = vmul.f32 %v783, %v800
  %v817 = vadd.f32 %v713, %v801
  %v818 = vadd.f32 %v714, %v802
  %v819 = vadd.f32 %v715, %v803
  %v820 = vadd.f32 %v716, %v804
  %v821 = vadd.f32 %v717, %v805
  %v822 = vadd.f32 %v718, %v806
  %v823 = vadd.f32 %v719, %v807
  %v824 = vadd.f32 %v720, %v808
  %v825 = vadd.f32 %v721, %v809
  %v826 = vadd.f32 %v722, %v810
  %v827 = vadd.f32 %v723, %v811
  %v828 = vadd.f32 %v724, %v812
  %v829 = vadd.f32 %v725, %v813
  %v830 = vadd.f32 %v726, %v814
  %v831 = vadd.f32 %v727, %v815
  %v832 = vadd.f32 %v728, %v816
  %833 = vrot.lane.b32.xlu0 %v51, 111
  %v834 = vpop.permute.xlu0 %833
  %835 = vrot.lane.b32.xlu0 %v55, 111
  %v836 = vpop.permute.xlu0 %835
  %837 = vrot.lane.b32.xlu0 %v59, 111
  %v838 = vpop.permute.xlu0 %837
  %839 = vrot.lane.b32.xlu0 %v63, 111
  %v840 = vpop.permute.xlu0 %839
  %vm841 = vcmp.lt.s32.totalorder %v77, 111
  %v842 = vsel %vm841, %v838, %v840
  %v843 = vsel %vm841, %v836, %v838
  %v844 = vsel %vm841, %v834, %v836
  %v845 = vsel %vm841, %v840, %v834
  %s846 = scalar_lea.vmem %s1, 32
  %v847 = vld [vmem:[%s846] ss:$8 sm:$0xf]
  %v849 = vlaneseq
  %v850 = vshrl.u32 %v849, 7
  %v851 = vsub.s32 0, %v850
  %v852 = vrot.slane %v847, %v851
  %v853 = vlaneseq
  %v854 = vshrl.u32 %v853, 7
  %v855 = vsub.s32 1, %v854
  %v856 = vrot.slane %v847, %v855
  %v857 = vlaneseq
  %v858 = vshrl.u32 %v857, 7
  %v859 = vsub.s32 2, %v858
  %v860 = vrot.slane %v847, %v859
  %v861 = vlaneseq
  %v862 = vshrl.u32 %v861, 7
  %v863 = vsub.s32 3, %v862
  %v864 = vrot.slane %v847, %v863
  %v869 = vmul.f32 %v844, %v852
  %v870 = vmul.f32 %v843, %v856
  %v871 = vmul.f32 %v842, %v860
  %v872 = vmul.f32 %v845, %v864
  %873 = vset.pattern.permute.xlu0 8
  %874 = vperm.xlu0 %873, %v43
  %v875 = vpop.permute.xlu0 %874
  %877 = vset.pattern.permute.xlu0 8
  %878 = vperm.xlu0 %877, %v44
  %v879 = vpop.permute.xlu0 %878
  %881 = vset.pattern.permute.xlu0 8
  %882 = vperm.xlu0 %881, %v45
  %v883 = vpop.permute.xlu0 %882
  %885 = vset.pattern.permute.xlu0 8
  %886 = vperm.xlu0 %885, %v46
  %v887 = vpop.permute.xlu0 %886
  %v889 = vlaneseq
  %v890 = vshrl.u32 %v889, 7
  %v891 = vsub.s32 0, %v890
  %v892 = vrot.slane %v869, %v891
  %v893 = vlaneseq
  %v894 = vshrl.u32 %v893, 7
  %v895 = vsub.s32 0, %v894
  %v896 = vrot.slane %v870, %v895
  %v897 = vlaneseq
  %v898 = vshrl.u32 %v897, 7
  %v899 = vsub.s32 0, %v898
  %v900 = vrot.slane %v871, %v899
  %v901 = vlaneseq
  %v902 = vshrl.u32 %v901, 7
  %v903 = vsub.s32 0, %v902
  %v904 = vrot.slane %v872, %v903
  %v905 = vmul.f32 %v875, %v892
  %v906 = vmul.f32 %v875, %v896
  %v907 = vmul.f32 %v875, %v900
  %v908 = vmul.f32 %v875, %v904
  %v909 = vmul.f32 %v879, %v892
  %v910 = vmul.f32 %v879, %v896
  %v911 = vmul.f32 %v879, %v900
  %v912 = vmul.f32 %v879, %v904
  %v913 = vmul.f32 %v883, %v892
  %v914 = vmul.f32 %v883, %v896
  %v915 = vmul.f32 %v883, %v900
  %v916 = vmul.f32 %v883, %v904
  %v917 = vmul.f32 %v887, %v892
  %v918 = vmul.f32 %v887, %v896
  %v919 = vmul.f32 %v887, %v900
  %v920 = vmul.f32 %v887, %v904
  %v921 = vadd.f32 %v817, %v905
  %v922 = vadd.f32 %v818, %v906
  %v923 = vadd.f32 %v819, %v907
  %v924 = vadd.f32 %v820, %v908
  %v925 = vadd.f32 %v821, %v909
  %v926 = vadd.f32 %v822, %v910
  %v927 = vadd.f32 %v823, %v911
  %v928 = vadd.f32 %v824, %v912
  %v929 = vadd.f32 %v825, %v913
  %v930 = vadd.f32 %v826, %v914
  %v931 = vadd.f32 %v827, %v915
  %v932 = vadd.f32 %v828, %v916
  %v933 = vadd.f32 %v829, %v917
  %v934 = vadd.f32 %v830, %v918
  %v935 = vadd.f32 %v831, %v919
  %v936 = vadd.f32 %v832, %v920
  %v937 = vld [vmem:[%s3] sm:$0xff]
  %v938 = vld [vmem:[%s3 + $0x8] sm:$0xff]
  %v939 = vld [vmem:[%s3 + $0x10] sm:$0xff]
  %v940 = vld [vmem:[%s3 + $0x18] sm:$0xff]
  %942 = vset.pattern.permute.xlu0 0
  %943 = vperm.xlu0 %942, %v937
  %v944 = vpop.permute.xlu0 %943
  %947 = vset.pattern.permute.xlu0 0
  %948 = vperm.xlu0 %947, %v938
  %v949 = vpop.permute.xlu0 %948
  %952 = vset.pattern.permute.xlu0 0
  %953 = vperm.xlu0 %952, %v939
  %v954 = vpop.permute.xlu0 %953
  %957 = vset.pattern.permute.xlu0 0
  %958 = vperm.xlu0 %957, %v940
  %v959 = vpop.permute.xlu0 %958
  %v961 = vadd.f32 %v921, %v944
  %v962 = vadd.f32 %v922, %v944
  %v963 = vadd.f32 %v923, %v944
  %v964 = vadd.f32 %v924, %v944
  %v965 = vadd.f32 %v925, %v949
  %v966 = vadd.f32 %v926, %v949
  %v967 = vadd.f32 %v927, %v949
  %v968 = vadd.f32 %v928, %v949
  %v969 = vadd.f32 %v929, %v954
  %v970 = vadd.f32 %v930, %v954
  %v971 = vadd.f32 %v931, %v954
  %v972 = vadd.f32 %v932, %v954
  %v973 = vadd.f32 %v933, %v959
  %v974 = vadd.f32 %v934, %v959
  %v975 = vadd.f32 %v935, %v959
  %v976 = vadd.f32 %v936, %v959
  %v977 = vld [vmem:[%s4] sm:$0xff]
  %v978 = vld [vmem:[%s4 + $0x8] sm:$0xf]
  %v979 = vld [vmem:[%s4 + $0xc] sm:$0xff]
  %v980 = vld [vmem:[%s4 + $0x14] sm:$0xf]
  %v981 = vld [vmem:[%s5] sm:$0xff]
  %v982 = vld [vmem:[%s5 + $0x8] sm:$0xff]
  %983 = vrot.lane.b32.xlu0 %v961, 17
  %v984 = vpop.permute.xlu0 %983
  %985 = vrot.lane.b32.xlu0 %v965, 17
  %v986 = vpop.permute.xlu0 %985
  %987 = vrot.lane.b32.xlu0 %v969, 17
  %v988 = vpop.permute.xlu0 %987
  %989 = vrot.lane.b32.xlu0 %v973, 17
  %v990 = vpop.permute.xlu0 %989
  %991 = vrot.lane.b32.xlu0 %v962, 17
  %v992 = vpop.permute.xlu0 %991
  %993 = vrot.lane.b32.xlu0 %v966, 17
  %v994 = vpop.permute.xlu0 %993
  %995 = vrot.lane.b32.xlu0 %v970, 17
  %v996 = vpop.permute.xlu0 %995
  %997 = vrot.lane.b32.xlu0 %v974, 17
  %v998 = vpop.permute.xlu0 %997
  %999 = vrot.lane.b32.xlu0 %v963, 17
  %v1000 = vpop.permute.xlu0 %999
  %1001 = vrot.lane.b32.xlu0 %v967, 17
  %v1002 = vpop.permute.xlu0 %1001
  %1003 = vrot.lane.b32.xlu0 %v971, 17
  %v1004 = vpop.permute.xlu0 %1003
  %1005 = vrot.lane.b32.xlu0 %v975, 17
  %v1006 = vpop.permute.xlu0 %1005
  %1007 = vrot.lane.b32.xlu0 %v964, 17
  %v1008 = vpop.permute.xlu0 %1007
  %1009 = vrot.lane.b32.xlu0 %v968, 17
  %v1010 = vpop.permute.xlu0 %1009
  %1011 = vrot.lane.b32.xlu0 %v972, 17
  %v1012 = vpop.permute.xlu0 %1011
  %1013 = vrot.lane.b32.xlu0 %v976, 17
  %v1014 = vpop.permute.xlu0 %1013
  %v1015 = vsel %vm78, %v1000, %v1008
  %v1016 = vsel %vm78, %v1002, %v1010
  %v1017 = vsel %vm78, %v1004, %v1012
  %v1018 = vsel %vm78, %v1006, %v1014
  %v1019 = vsel %vm78, %v992, %v1000
  %v1020 = vsel %vm78, %v994, %v1002
  %v1021 = vsel %vm78, %v996, %v1004
  %v1022 = vsel %vm78, %v998, %v1006
  %v1023 = vsel %vm78, %v984, %v992
  %v1024 = vsel %vm78, %v986, %v994
  %v1025 = vsel %vm78, %v988, %v996
  %v1026 = vsel %vm78, %v990, %v998
  %v1027 = vsel %vm78, %v1008, %v984
  %v1028 = vsel %vm78, %v1010, %v986
  %v1029 = vsel %vm78, %v1012, %v988
  %v1030 = vsel %vm78, %v1014, %v990
  %v1031 = vmul.f32 %v1027, %v88
  %v1032 = vmul.f32 %v1023, %v92
  %v1033 = vmul.f32 %v1019, %v96
  %v1034 = vmul.f32 %v1015, %v100
  %v1035 = vmul.f32 %v1028, %v88
  %v1036 = vmul.f32 %v1024, %v92
  %v1037 = vmul.f32 %v1020, %v96
  %v1038 = vmul.f32 %v1016, %v100
  %v1039 = vmul.f32 %v1029, %v88
  %v1040 = vmul.f32 %v1025, %v92
  %v1041 = vmul.f32 %v1021, %v96
  %v1042 = vmul.f32 %v1017, %v100
  %v1043 = vmul.f32 %v1030, %v88
  %v1044 = vmul.f32 %v1026, %v92
  %v1045 = vmul.f32 %v1022, %v96
  %v1046 = vmul.f32 %v1018, %v100
  %v1047 = vpack.c.bf16 %v1035, %v1031
  %v1048 = vpack.c.bf16 %v1036, %v1032
  %v1049 = vpack.c.bf16 %v1037, %v1033
  %v1050 = vpack.c.bf16 %v1038, %v1034
  %v1051 = vpack.c.bf16 %v1043, %v1039
  %v1052 = vpack.c.bf16 %v1044, %v1040
  %v1053 = vpack.c.bf16 %v1045, %v1041
  %v1054 = vpack.c.bf16 %v1046, %v1042
  %1055 = vst [vmem:[#allocation2] sm:$0xff] %v1047
  %1056 = vst [vmem:[#allocation2 + $0x8] sm:$0xff] %v1048
  %1057 = vst [vmem:[#allocation2 + $0x10] sm:$0xff] %v1049
  %1058 = vst [vmem:[#allocation2 + $0x18] sm:$0xff] %v1050
  %1059 = vst [vmem:[#allocation2 + $0x20] sm:$0xff] %v1051
  %1060 = vst [vmem:[#allocation2 + $0x28] sm:$0xff] %v1052
  %1061 = vst [vmem:[#allocation2 + $0x30] sm:$0xff] %v1053
  %1062 = vst [vmem:[#allocation2 + $0x38] sm:$0xff] %v1054
  %1063 = vrot.lane.b32.xlu0 %v961, 16
  %v1064 = vpop.permute.xlu0 %1063
  %1065 = vrot.lane.b32.xlu0 %v965, 16
  %v1066 = vpop.permute.xlu0 %1065
  %1067 = vrot.lane.b32.xlu0 %v969, 16
  %v1068 = vpop.permute.xlu0 %1067
  %1069 = vrot.lane.b32.xlu0 %v973, 16
  %v1070 = vpop.permute.xlu0 %1069
  %1071 = vrot.lane.b32.xlu0 %v962, 16
  %v1072 = vpop.permute.xlu0 %1071
  %1073 = vrot.lane.b32.xlu0 %v966, 16
  %v1074 = vpop.permute.xlu0 %1073
  %1075 = vrot.lane.b32.xlu0 %v970, 16
  %v1076 = vpop.permute.xlu0 %1075
  %1077 = vrot.lane.b32.xlu0 %v974, 16
  %v1078 = vpop.permute.xlu0 %1077
  %1079 = vrot.lane.b32.xlu0 %v963, 16
  %v1080 = vpop.permute.xlu0 %1079
  %1081 = vrot.lane.b32.xlu0 %v967, 16
  %v1082 = vpop.permute.xlu0 %1081
  %1083 = vrot.lane.b32.xlu0 %v971, 16
  %v1084 = vpop.permute.xlu0 %1083
  %1085 = vrot.lane.b32.xlu0 %v975, 16
  %v1086 = vpop.permute.xlu0 %1085
  %1087 = vrot.lane.b32.xlu0 %v964, 16
  %v1088 = vpop.permute.xlu0 %1087
  %1089 = vrot.lane.b32.xlu0 %v968, 16
  %v1090 = vpop.permute.xlu0 %1089
  %1091 = vrot.lane.b32.xlu0 %v972, 16
  %v1092 = vpop.permute.xlu0 %1091
  %1093 = vrot.lane.b32.xlu0 %v976, 16
  %v1094 = vpop.permute.xlu0 %1093
  %v1095 = vsel %vm169, %v1080, %v1088
  %v1096 = vsel %vm169, %v1082, %v1090
  %v1097 = vsel %vm169, %v1084, %v1092
  %v1098 = vsel %vm169, %v1086, %v1094
  %v1099 = vsel %vm169, %v1072, %v1080
  %v1100 = vsel %vm169, %v1074, %v1082
  %v1101 = vsel %vm169, %v1076, %v1084
  %v1102 = vsel %vm169, %v1078, %v1086
  %v1103 = vsel %vm169, %v1064, %v1072
  %v1104 = vsel %vm169, %v1066, %v1074
  %v1105 = vsel %vm169, %v1068, %v1076
  %v1106 = vsel %vm169, %v1070, %v1078
  %v1107 = vsel %vm169, %v1088, %v1064
  %v1108 = vsel %vm169, %v1090, %v1066
  %v1109 = vsel %vm169, %v1092, %v1068
  %v1110 = vsel %vm169, %v1094, %v1070
  %v1111 = vld [vmem:[%s174] ss:$8 sm:$0xf]
  %v1113 = vlaneseq
  %v1114 = vshrl.u32 %v1113, 7
  %v1115 = vsub.s32 0, %v1114
  %v1116 = vrot.slane %v1111, %v1115
  %v1117 = vlaneseq
  %v1118 = vshrl.u32 %v1117, 7
  %v1119 = vsub.s32 1, %v1118
  %v1120 = vrot.slane %v1111, %v1119
  %v1121 = vlaneseq
  %v1122 = vshrl.u32 %v1121, 7
  %v1123 = vsub.s32 2, %v1122
  %v1124 = vrot.slane %v1111, %v1123
  %v1125 = vlaneseq
  %v1126 = vshrl.u32 %v1125, 7
  %v1127 = vsub.s32 3, %v1126
  %v1128 = vrot.slane %v1111, %v1127
  %v1133 = vmul.f32 %v1107, %v1116
  %v1134 = vmul.f32 %v1103, %v1120
  %v1135 = vmul.f32 %v1099, %v1124
  %v1136 = vmul.f32 %v1095, %v1128
  %v1137 = vmul.f32 %v1108, %v1116
  %v1138 = vmul.f32 %v1104, %v1120
  %v1139 = vmul.f32 %v1100, %v1124
  %v1140 = vmul.f32 %v1096, %v1128
  %v1141 = vmul.f32 %v1109, %v1116
  %v1142 = vmul.f32 %v1105, %v1120
  %v1143 = vmul.f32 %v1101, %v1124
  %v1144 = vmul.f32 %v1097, %v1128
  %v1145 = vmul.f32 %v1110, %v1116
  %v1146 = vmul.f32 %v1106, %v1120
  %v1147 = vmul.f32 %v1102, %v1124
  %v1148 = vmul.f32 %v1098, %v1128
  %v1149 = vpack.c.bf16 %v1137, %v1133
  %v1150 = vpack.c.bf16 %v1138, %v1134
  %v1151 = vpack.c.bf16 %v1139, %v1135
  %v1152 = vpack.c.bf16 %v1140, %v1136
  %v1153 = vpack.c.bf16 %v1145, %v1141
  %v1154 = vpack.c.bf16 %v1146, %v1142
  %v1155 = vpack.c.bf16 %v1147, %v1143
  %v1156 = vpack.c.bf16 %v1148, %v1144
  %1157 = vst [vmem:[#allocation2 + $0x40] sm:$0xff] %v1149
  %1158 = vst [vmem:[#allocation2 + $0x48] sm:$0xff] %v1150
  %1159 = vst [vmem:[#allocation2 + $0x50] sm:$0xff] %v1151
  %1160 = vst [vmem:[#allocation2 + $0x58] sm:$0xff] %v1152
  %1161 = vst [vmem:[#allocation2 + $0x60] sm:$0xff] %v1153
  %1162 = vst [vmem:[#allocation2 + $0x68] sm:$0xff] %v1154
  %1163 = vst [vmem:[#allocation2 + $0x70] sm:$0xff] %v1155
  %1164 = vst [vmem:[#allocation2 + $0x78] sm:$0xff] %v1156
  %1165 = vrot.lane.b32.xlu0 %v961, 15
  %v1166 = vpop.permute.xlu0 %1165
  %1167 = vrot.lane.b32.xlu0 %v965, 15
  %v1168 = vpop.permute.xlu0 %1167
  %1169 = vrot.lane.b32.xlu0 %v969, 15
  %v1170 = vpop.permute.xlu0 %1169
  %1171 = vrot.lane.b32.xlu0 %v973, 15
  %v1172 = vpop.permute.xlu0 %1171
  %1173 = vrot.lane.b32.xlu0 %v962, 15
  %v1174 = vpop.permute.xlu0 %1173
  %1175 = vrot.lane.b32.xlu0 %v966, 15
  %v1176 = vpop.permute.xlu0 %1175
  %1177 = vrot.lane.b32.xlu0 %v970, 15
  %v1178 = vpop.permute.xlu0 %1177
  %1179 = vrot.lane.b32.xlu0 %v974, 15
  %v1180 = vpop.permute.xlu0 %1179
  %1181 = vrot.lane.b32.xlu0 %v963, 15
  %v1182 = vpop.permute.xlu0 %1181
  %1183 = vrot.lane.b32.xlu0 %v967, 15
  %v1184 = vpop.permute.xlu0 %1183
  %1185 = vrot.lane.b32.xlu0 %v971, 15
  %v1186 = vpop.permute.xlu0 %1185
  %1187 = vrot.lane.b32.xlu0 %v975, 15
  %v1188 = vpop.permute.xlu0 %1187
  %1189 = vrot.lane.b32.xlu0 %v964, 15
  %v1190 = vpop.permute.xlu0 %1189
  %1191 = vrot.lane.b32.xlu0 %v968, 15
  %v1192 = vpop.permute.xlu0 %1191
  %1193 = vrot.lane.b32.xlu0 %v972, 15
  %v1194 = vpop.permute.xlu0 %1193
  %1195 = vrot.lane.b32.xlu0 %v976, 15
  %v1196 = vpop.permute.xlu0 %1195
  %v1197 = vsel %vm273, %v1182, %v1190
  %v1198 = vsel %vm273, %v1184, %v1192
  %v1199 = vsel %vm273, %v1186, %v1194
  %v1200 = vsel %vm273, %v1188, %v1196
  %v1201 = vsel %vm273, %v1174, %v1182
  %v1202 = vsel %vm273, %v1176, %v1184
  %v1203 = vsel %vm273, %v1178, %v1186
  %v1204 = vsel %vm273, %v1180, %v1188
  %v1205 = vsel %vm273, %v1166, %v1174
  %v1206 = vsel %vm273, %v1168, %v1176
  %v1207 = vsel %vm273, %v1170, %v1178
  %v1208 = vsel %vm273, %v1172, %v1180
  %v1209 = vsel %vm273, %v1190, %v1166
  %v1210 = vsel %vm273, %v1192, %v1168
  %v1211 = vsel %vm273, %v1194, %v1170
  %v1212 = vsel %vm273, %v1196, %v1172
  %v1213 = vld [vmem:[%s278] ss:$8 sm:$0xf]
  %v1215 = vlaneseq
  %v1216 = vshrl.u32 %v1215, 7
  %v1217 = vsub.s32 0, %v1216
  %v1218 = vrot.slane %v1213, %v1217
  %v1219 = vlaneseq
  %v1220 = vshrl.u32 %v1219, 7
  %v1221 = vsub.s32 1, %v1220
  %v1222 = vrot.slane %v1213, %v1221
  %v1223 = vlaneseq
  %v1224 = vshrl.u32 %v1223, 7
  %v1225 = vsub.s32 2, %v1224
  %v1226 = vrot.slane %v1213, %v1225
  %v1227 = vlaneseq
  %v1228 = vshrl.u32 %v1227, 7
  %v1229 = vsub.s32 3, %v1228
  %v1230 = vrot.slane %v1213, %v1229
  %v1235 = vmul.f32 %v1209, %v1218
  %v1236 = vmul.f32 %v1205, %v1222
  %v1237 = vmul.f32 %v1201, %v1226
  %v1238 = vmul.f32 %v1197, %v1230
  %v1239 = vmul.f32 %v1210, %v1218
  %v1240 = vmul.f32 %v1206, %v1222
  %v1241 = vmul.f32 %v1202, %v1226
  %v1242 = vmul.f32 %v1198, %v1230
  %v1243 = vmul.f32 %v1211, %v1218
  %v1244 = vmul.f32 %v1207, %v1222
  %v1245 = vmul.f32 %v1203, %v1226
  %v1246 = vmul.f32 %v1199, %v1230
  %v1247 = vmul.f32 %v1212, %v1218
  %v1248 = vmul.f32 %v1208, %v1222
  %v1249 = vmul.f32 %v1204, %v1226
  %v1250 = vmul.f32 %v1200, %v1230
  %v1251 = vpack.c.bf16 %v1239, %v1235
  %v1252 = vpack.c.bf16 %v1240, %v1236
  %v1253 = vpack.c.bf16 %v1241, %v1237
  %v1254 = vpack.c.bf16 %v1242, %v1238
  %v1255 = vpack.c.bf16 %v1247, %v1243
  %v1256 = vpack.c.bf16 %v1248, %v1244
  %v1257 = vpack.c.bf16 %v1249, %v1245
  %v1258 = vpack.c.bf16 %v1250, %v1246
  %1259 = vst [vmem:[#allocation2 + $0x80] sm:$0xff] %v1251
  %1260 = vst [vmem:[#allocation2 + $0x88] sm:$0xff] %v1252
  %1261 = vst [vmem:[#allocation2 + $0x90] sm:$0xff] %v1253
  %1262 = vst [vmem:[#allocation2 + $0x98] sm:$0xff] %v1254
  %1263 = vst [vmem:[#allocation2 + $0xa0] sm:$0xff] %v1255
  %1264 = vst [vmem:[#allocation2 + $0xa8] sm:$0xff] %v1256
  %1265 = vst [vmem:[#allocation2 + $0xb0] sm:$0xff] %v1257
  %1266 = vst [vmem:[#allocation2 + $0xb8] sm:$0xff] %v1258
  %1267 = vrot.lane.b32.xlu0 %v961, 1
  %v1268 = vpop.permute.xlu0 %1267
  %1269 = vrot.lane.b32.xlu0 %v965, 1
  %v1270 = vpop.permute.xlu0 %1269
  %1271 = vrot.lane.b32.xlu0 %v969, 1
  %v1272 = vpop.permute.xlu0 %1271
  %1273 = vrot.lane.b32.xlu0 %v973, 1
  %v1274 = vpop.permute.xlu0 %1273
  %1275 = vrot.lane.b32.xlu0 %v962, 1
  %v1276 = vpop.permute.xlu0 %1275
  %1277 = vrot.lane.b32.xlu0 %v966, 1
  %v1278 = vpop.permute.xlu0 %1277
  %1279 = vrot.lane.b32.xlu0 %v970, 1
  %v1280 = vpop.permute.xlu0 %1279
  %1281 = vrot.lane.b32.xlu0 %v974, 1
  %v1282 = vpop.permute.xlu0 %1281
  %1283 = vrot.lane.b32.xlu0 %v963, 1
  %v1284 = vpop.permute.xlu0 %1283
  %1285 = vrot.lane.b32.xlu0 %v967, 1
  %v1286 = vpop.permute.xlu0 %1285
  %1287 = vrot.lane.b32.xlu0 %v971, 1
  %v1288 = vpop.permute.xlu0 %1287
  %1289 = vrot.lane.b32.xlu0 %v975, 1
  %v1290 = vpop.permute.xlu0 %1289
  %1291 = vrot.lane.b32.xlu0 %v964, 1
  %v1292 = vpop.permute.xlu0 %1291
  %1293 = vrot.lane.b32.xlu0 %v968, 1
  %v1294 = vpop.permute.xlu0 %1293
  %1295 = vrot.lane.b32.xlu0 %v972, 1
  %v1296 = vpop.permute.xlu0 %1295
  %1297 = vrot.lane.b32.xlu0 %v976, 1
  %v1298 = vpop.permute.xlu0 %1297
  %v1299 = vsel %vm377, %v1284, %v1292
  %v1300 = vsel %vm377, %v1286, %v1294
  %v1301 = vsel %vm377, %v1288, %v1296
  %v1302 = vsel %vm377, %v1290, %v1298
  %v1303 = vsel %vm377, %v1276, %v1284
  %v1304 = vsel %vm377, %v1278, %v1286
  %v1305 = vsel %vm377, %v1280, %v1288
  %v1306 = vsel %vm377, %v1282, %v1290
  %v1307 = vsel %vm377, %v1268, %v1276
  %v1308 = vsel %vm377, %v1270, %v1278
  %v1309 = vsel %vm377, %v1272, %v1280
  %v1310 = vsel %vm377, %v1274, %v1282
  %v1311 = vsel %vm377, %v1292, %v1268
  %v1312 = vsel %vm377, %v1294, %v1270
  %v1313 = vsel %vm377, %v1296, %v1272
  %v1314 = vsel %vm377, %v1298, %v1274
  %v1315 = vld [vmem:[%s382] ss:$8 sm:$0xf]
  %v1317 = vlaneseq
  %v1318 = vshrl.u32 %v1317, 7
  %v1319 = vsub.s32 0, %v1318
  %v1320 = vrot.slane %v1315, %v1319
  %v1321 = vlaneseq
  %v1322 = vshrl.u32 %v1321, 7
  %v1323 = vsub.s32 1, %v1322
  %v1324 = vrot.slane %v1315, %v1323
  %v1325 = vlaneseq
  %v1326 = vshrl.u32 %v1325, 7
  %v1327 = vsub.s32 2, %v1326
  %v1328 = vrot.slane %v1315, %v1327
  %v1329 = vlaneseq
  %v1330 = vshrl.u32 %v1329, 7
  %v1331 = vsub.s32 3, %v1330
  %v1332 = vrot.slane %v1315, %v1331
  %v1337 = vmul.f32 %v1311, %v1320
  %v1338 = vmul.f32 %v1307, %v1324
  %v1339 = vmul.f32 %v1303, %v1328
  %v1340 = vmul.f32 %v1299, %v1332
  %v1341 = vmul.f32 %v1312, %v1320
  %v1342 = vmul.f32 %v1308, %v1324
  %v1343 = vmul.f32 %v1304, %v1328
  %v1344 = vmul.f32 %v1300, %v1332
  %v1345 = vmul.f32 %v1313, %v1320
  %v1346 = vmul.f32 %v1309, %v1324
  %v1347 = vmul.f32 %v1305, %v1328
  %v1348 = vmul.f32 %v1301, %v1332
  %v1349 = vmul.f32 %v1314, %v1320
  %v1350 = vmul.f32 %v1310, %v1324
  %v1351 = vmul.f32 %v1306, %v1328
  %v1352 = vmul.f32 %v1302, %v1332
  %v1353 = vpack.c.bf16 %v1341, %v1337
  %v1354 = vpack.c.bf16 %v1342, %v1338
  %v1355 = vpack.c.bf16 %v1343, %v1339
  %v1356 = vpack.c.bf16 %v1344, %v1340
  %v1357 = vpack.c.bf16 %v1349, %v1345
  %v1358 = vpack.c.bf16 %v1350, %v1346
  %v1359 = vpack.c.bf16 %v1351, %v1347
  %v1360 = vpack.c.bf16 %v1352, %v1348
  %1361 = vst [vmem:[#allocation2 + $0xc0] sm:$0xff] %v1353
  %1362 = vst [vmem:[#allocation2 + $0xc8] sm:$0xff] %v1354
  %1363 = vst [vmem:[#allocation2 + $0xd0] sm:$0xff] %v1355
  %1364 = vst [vmem:[#allocation2 + $0xd8] sm:$0xff] %v1356
  %1365 = vst [vmem:[#allocation2 + $0xe0] sm:$0xff] %v1357
  %1366 = vst [vmem:[#allocation2 + $0xe8] sm:$0xff] %v1358
  %1367 = vst [vmem:[#allocation2 + $0xf0] sm:$0xff] %v1359
  %1368 = vst [vmem:[#allocation2 + $0xf8] sm:$0xff] %v1360
  %v1369 = vpack.c.bf16 %v965, %v961
  %v1370 = vpack.c.bf16 %v966, %v962
  %v1371 = vpack.c.bf16 %v967, %v963
  %v1372 = vpack.c.bf16 %v968, %v964
  %v1373 = vpack.c.bf16 %v973, %v969
  %v1374 = vpack.c.bf16 %v974, %v970
  %v1375 = vpack.c.bf16 %v975, %v971
  %v1376 = vpack.c.bf16 %v976, %v972
  %1377 = vst [vmem:[#allocation2 + $0x100] sm:$0xff] %v1369
  %1378 = vst [vmem:[#allocation2 + $0x108] sm:$0xff] %v1370
  %1379 = vst [vmem:[#allocation2 + $0x110] sm:$0xff] %v1371
  %1380 = vst [vmem:[#allocation2 + $0x118] sm:$0xff] %v1372
  %1381 = vst [vmem:[#allocation2 + $0x120] sm:$0xff] %v1373
  %1382 = vst [vmem:[#allocation2 + $0x128] sm:$0xff] %v1374
  %1383 = vst [vmem:[#allocation2 + $0x130] sm:$0xff] %v1375
  %1384 = vst [vmem:[#allocation2 + $0x138] sm:$0xff] %v1376
  %1385 = vrot.lane.b32.xlu0 %v961, 127
  %v1386 = vpop.permute.xlu0 %1385
  %1387 = vrot.lane.b32.xlu0 %v965, 127
  %v1388 = vpop.permute.xlu0 %1387
  %1389 = vrot.lane.b32.xlu0 %v969, 127
  %v1390 = vpop.permute.xlu0 %1389
  %1391 = vrot.lane.b32.xlu0 %v973, 127
  %v1392 = vpop.permute.xlu0 %1391
  %1393 = vrot.lane.b32.xlu0 %v962, 127
  %v1394 = vpop.permute.xlu0 %1393
  %1395 = vrot.lane.b32.xlu0 %v966, 127
  %v1396 = vpop.permute.xlu0 %1395
  %1397 = vrot.lane.b32.xlu0 %v970, 127
  %v1398 = vpop.permute.xlu0 %1397
  %1399 = vrot.lane.b32.xlu0 %v974, 127
  %v1400 = vpop.permute.xlu0 %1399
  %1401 = vrot.lane.b32.xlu0 %v963, 127
  %v1402 = vpop.permute.xlu0 %1401
  %1403 = vrot.lane.b32.xlu0 %v967, 127
  %v1404 = vpop.permute.xlu0 %1403
  %1405 = vrot.lane.b32.xlu0 %v971, 127
  %v1406 = vpop.permute.xlu0 %1405
  %1407 = vrot.lane.b32.xlu0 %v975, 127
  %v1408 = vpop.permute.xlu0 %1407
  %1409 = vrot.lane.b32.xlu0 %v964, 127
  %v1410 = vpop.permute.xlu0 %1409
  %1411 = vrot.lane.b32.xlu0 %v968, 127
  %v1412 = vpop.permute.xlu0 %1411
  %1413 = vrot.lane.b32.xlu0 %v972, 127
  %v1414 = vpop.permute.xlu0 %1413
  %1415 = vrot.lane.b32.xlu0 %v976, 127
  %v1416 = vpop.permute.xlu0 %1415
  %v1417 = vsel %vm529, %v1402, %v1410
  %v1418 = vsel %vm529, %v1404, %v1412
  %v1419 = vsel %vm529, %v1406, %v1414
  %v1420 = vsel %vm529, %v1408, %v1416
  %v1421 = vsel %vm529, %v1394, %v1402
  %v1422 = vsel %vm529, %v1396, %v1404
  %v1423 = vsel %vm529, %v1398, %v1406
  %v1424 = vsel %vm529, %v1400, %v1408
  %v1425 = vsel %vm529, %v1386, %v1394
  %v1426 = vsel %vm529, %v1388, %v1396
  %v1427 = vsel %vm529, %v1390, %v1398
  %v1428 = vsel %vm529, %v1392, %v1400
  %v1429 = vsel %vm529, %v1410, %v1386
  %v1430 = vsel %vm529, %v1412, %v1388
  %v1431 = vsel %vm529, %v1414, %v1390
  %v1432 = vsel %vm529, %v1416, %v1392
  %v1433 = vld [vmem:[%s534] ss:$8 sm:$0xf]
  %v1435 = vlaneseq
  %v1436 = vshrl.u32 %v1435, 7
  %v1437 = vsub.s32 0, %v1436
  %v1438 = vrot.slane %v1433, %v1437
  %v1439 = vlaneseq
  %v1440 = vshrl.u32 %v1439, 7
  %v1441 = vsub.s32 1, %v1440
  %v1442 = vrot.slane %v1433, %v1441
  %v1443 = vlaneseq
  %v1444 = vshrl.u32 %v1443, 7
  %v1445 = vsub.s32 2, %v1444
  %v1446 = vrot.slane %v1433, %v1445
  %v1447 = vlaneseq
  %v1448 = vshrl.u32 %v1447, 7
  %v1449 = vsub.s32 3, %v1448
  %v1450 = vrot.slane %v1433, %v1449
  %v1455 = vmul.f32 %v1425, %v1438
  %v1456 = vmul.f32 %v1421, %v1442
  %v1457 = vmul.f32 %v1417, %v1446
  %v1458 = vmul.f32 %v1429, %v1450
  %v1459 = vmul.f32 %v1426, %v1438
  %v1460 = vmul.f32 %v1422, %v1442
  %v1461 = vmul.f32 %v1418, %v1446
  %v1462 = vmul.f32 %v1430, %v1450
  %v1463 = vmul.f32 %v1427, %v1438
  %v1464 = vmul.f32 %v1423, %v1442
  %v1465 = vmul.f32 %v1419, %v1446
  %v1466 = vmul.f32 %v1431, %v1450
  %v1467 = vmul.f32 %v1428, %v1438
  %v1468 = vmul.f32 %v1424, %v1442
  %v1469 = vmul.f32 %v1420, %v1446
  %v1470 = vmul.f32 %v1432, %v1450
  %v1471 = vpack.c.bf16 %v1459, %v1455
  %v1472 = vpack.c.bf16 %v1460, %v1456
  %v1473 = vpack.c.bf16 %v1461, %v1457
  %v1474 = vpack.c.bf16 %v1462, %v1458
  %v1475 = vpack.c.bf16 %v1467, %v1463
  %v1476 = vpack.c.bf16 %v1468, %v1464
  %v1477 = vpack.c.bf16 %v1469, %v1465
  %v1478 = vpack.c.bf16 %v1470, %v1466
  %1479 = vst [vmem:[#allocation2 + $0x140] sm:$0xff] %v1471
  %1480 = vst [vmem:[#allocation2 + $0x148] sm:$0xff] %v1472
  %1481 = vst [vmem:[#allocation2 + $0x150] sm:$0xff] %v1473
  %1482 = vst [vmem:[#allocation2 + $0x158] sm:$0xff] %v1474
  %1483 = vst [vmem:[#allocation2 + $0x160] sm:$0xff] %v1475
  %1484 = vst [vmem:[#allocation2 + $0x168] sm:$0xff] %v1476
  %1485 = vst [vmem:[#allocation2 + $0x170] sm:$0xff] %v1477
  %1486 = vst [vmem:[#allocation2 + $0x178] sm:$0xff] %v1478
  %1487 = vrot.lane.b32.xlu0 %v961, 113
  %v1488 = vpop.permute.xlu0 %1487
  %1489 = vrot.lane.b32.xlu0 %v965, 113
  %v1490 = vpop.permute.xlu0 %1489
  %1491 = vrot.lane.b32.xlu0 %v969, 113
  %v1492 = vpop.permute.xlu0 %1491
  %1493 = vrot.lane.b32.xlu0 %v973, 113
  %v1494 = vpop.permute.xlu0 %1493
  %1495 = vrot.lane.b32.xlu0 %v962, 113
  %v1496 = vpop.permute.xlu0 %1495
  %1497 = vrot.lane.b32.xlu0 %v966, 113
  %v1498 = vpop.permute.xlu0 %1497
  %1499 = vrot.lane.b32.xlu0 %v970, 113
  %v1500 = vpop.permute.xlu0 %1499
  %1501 = vrot.lane.b32.xlu0 %v974, 113
  %v1502 = vpop.permute.xlu0 %1501
  %1503 = vrot.lane.b32.xlu0 %v963, 113
  %v1504 = vpop.permute.xlu0 %1503
  %1505 = vrot.lane.b32.xlu0 %v967, 113
  %v1506 = vpop.permute.xlu0 %1505
  %1507 = vrot.lane.b32.xlu0 %v971, 113
  %v1508 = vpop.permute.xlu0 %1507
  %1509 = vrot.lane.b32.xlu0 %v975, 113
  %v1510 = vpop.permute.xlu0 %1509
  %1511 = vrot.lane.b32.xlu0 %v964, 113
  %v1512 = vpop.permute.xlu0 %1511
  %1513 = vrot.lane.b32.xlu0 %v968, 113
  %v1514 = vpop.permute.xlu0 %1513
  %1515 = vrot.lane.b32.xlu0 %v972, 113
  %v1516 = vpop.permute.xlu0 %1515
  %1517 = vrot.lane.b32.xlu0 %v976, 113
  %v1518 = vpop.permute.xlu0 %1517
  %v1519 = vsel %vm633, %v1504, %v1512
  %v1520 = vsel %vm633, %v1506, %v1514
  %v1521 = vsel %vm633, %v1508, %v1516
  %v1522 = vsel %vm633, %v1510, %v1518
  %v1523 = vsel %vm633, %v1496, %v1504
  %v1524 = vsel %vm633, %v1498, %v1506
  %v1525 = vsel %vm633, %v1500, %v1508
  %v1526 = vsel %vm633, %v1502, %v1510
  %v1527 = vsel %vm633, %v1488, %v1496
  %v1528 = vsel %vm633, %v1490, %v1498
  %v1529 = vsel %vm633, %v1492, %v1500
  %v1530 = vsel %vm633, %v1494, %v1502
  %v1531 = vsel %vm633, %v1512, %v1488
  %v1532 = vsel %vm633, %v1514, %v1490
  %v1533 = vsel %vm633, %v1516, %v1492
  %v1534 = vsel %vm633, %v1518, %v1494
  %v1535 = vld [vmem:[%s638] ss:$8 sm:$0xf]
  %v1537 = vlaneseq
  %v1538 = vshrl.u32 %v1537, 7
  %v1539 = vsub.s32 0, %v1538
  %v1540 = vrot.slane %v1535, %v1539
  %v1541 = vlaneseq
  %v1542 = vshrl.u32 %v1541, 7
  %v1543 = vsub.s32 1, %v1542
  %v1544 = vrot.slane %v1535, %v1543
  %v1545 = vlaneseq
  %v1546 = vshrl.u32 %v1545, 7
  %v1547 = vsub.s32 2, %v1546
  %v1548 = vrot.slane %v1535, %v1547
  %v1549 = vlaneseq
  %v1550 = vshrl.u32 %v1549, 7
  %v1551 = vsub.s32 3, %v1550
  %v1552 = vrot.slane %v1535, %v1551
  %v1557 = vmul.f32 %v1527, %v1540
  %v1558 = vmul.f32 %v1523, %v1544
  %v1559 = vmul.f32 %v1519, %v1548
  %v1560 = vmul.f32 %v1531, %v1552
  %v1561 = vmul.f32 %v1528, %v1540
  %v1562 = vmul.f32 %v1524, %v1544
  %v1563 = vmul.f32 %v1520, %v1548
  %v1564 = vmul.f32 %v1532, %v1552
  %v1565 = vmul.f32 %v1529, %v1540
  %v1566 = vmul.f32 %v1525, %v1544
  %v1567 = vmul.f32 %v1521, %v1548
  %v1568 = vmul.f32 %v1533, %v1552
  %v1569 = vmul.f32 %v1530, %v1540
  %v1570 = vmul.f32 %v1526, %v1544
  %v1571 = vmul.f32 %v1522, %v1548
  %v1572 = vmul.f32 %v1534, %v1552
  %v1573 = vpack.c.bf16 %v1561, %v1557
  %v1574 = vpack.c.bf16 %v1562, %v1558
  %v1575 = vpack.c.bf16 %v1563, %v1559
  %v1576 = vpack.c.bf16 %v1564, %v1560
  %v1577 = vpack.c.bf16 %v1569, %v1565
  %v1578 = vpack.c.bf16 %v1570, %v1566
  %v1579 = vpack.c.bf16 %v1571, %v1567
  %v1580 = vpack.c.bf16 %v1572, %v1568
  %1581 = vst [vmem:[#allocation2 + $0x180] sm:$0xff] %v1573
  %1582 = vst [vmem:[#allocation2 + $0x188] sm:$0xff] %v1574
  %1583 = vst [vmem:[#allocation2 + $0x190] sm:$0xff] %v1575
  %1584 = vst [vmem:[#allocation2 + $0x198] sm:$0xff] %v1576
  %1585 = vst [vmem:[#allocation2 + $0x1a0] sm:$0xff] %v1577
  %1586 = vst [vmem:[#allocation2 + $0x1a8] sm:$0xff] %v1578
  %1587 = vst [vmem:[#allocation2 + $0x1b0] sm:$0xff] %v1579
  %1588 = vst [vmem:[#allocation2 + $0x1b8] sm:$0xff] %v1580
  %1589 = vrot.lane.b32.xlu0 %v961, 112
  %v1590 = vpop.permute.xlu0 %1589
  %1591 = vrot.lane.b32.xlu0 %v965, 112
  %v1592 = vpop.permute.xlu0 %1591
  %1593 = vrot.lane.b32.xlu0 %v969, 112
  %v1594 = vpop.permute.xlu0 %1593
  %1595 = vrot.lane.b32.xlu0 %v973, 112
  %v1596 = vpop.permute.xlu0 %1595
  %1597 = vrot.lane.b32.xlu0 %v962, 112
  %v1598 = vpop.permute.xlu0 %1597
  %1599 = vrot.lane.b32.xlu0 %v966, 112
  %v1600 = vpop.permute.xlu0 %1599
  %1601 = vrot.lane.b32.xlu0 %v970, 112
  %v1602 = vpop.permute.xlu0 %1601
  %1603 = vrot.lane.b32.xlu0 %v974, 112
  %v1604 = vpop.permute.xlu0 %1603
  %1605 = vrot.lane.b32.xlu0 %v963, 112
  %v1606 = vpop.permute.xlu0 %1605
  %1607 = vrot.lane.b32.xlu0 %v967, 112
  %v1608 = vpop.permute.xlu0 %1607
  %1609 = vrot.lane.b32.xlu0 %v971, 112
  %v1610 = vpop.permute.xlu0 %1609
  %1611 = vrot.lane.b32.xlu0 %v975, 112
  %v1612 = vpop.permute.xlu0 %1611
  %1613 = vrot.lane.b32.xlu0 %v964, 112
  %v1614 = vpop.permute.xlu0 %1613
  %1615 = vrot.lane.b32.xlu0 %v968, 112
  %v1616 = vpop.permute.xlu0 %1615
  %1617 = vrot.lane.b32.xlu0 %v972, 112
  %v1618 = vpop.permute.xlu0 %1617
  %1619 = vrot.lane.b32.xlu0 %v976, 112
  %v1620 = vpop.permute.xlu0 %1619
  %v1621 = vsel %vm737, %v1606, %v1614
  %v1622 = vsel %vm737, %v1608, %v1616
  %v1623 = vsel %vm737, %v1610, %v1618
  %v1624 = vsel %vm737, %v1612, %v1620
  %v1625 = vsel %vm737, %v1598, %v1606
  %v1626 = vsel %vm737, %v1600, %v1608
  %v1627 = vsel %vm737, %v1602, %v1610
  %v1628 = vsel %vm737, %v1604, %v1612
  %v1629 = vsel %vm737, %v1590, %v1598
  %v1630 = vsel %vm737, %v1592, %v1600
  %v1631 = vsel %vm737, %v1594, %v1602
  %v1632 = vsel %vm737, %v1596, %v1604
  %v1633 = vsel %vm737, %v1614, %v1590
  %v1634 = vsel %vm737, %v1616, %v1592
  %v1635 = vsel %vm737, %v1618, %v1594
  %v1636 = vsel %vm737, %v1620, %v1596
  %v1637 = vld [vmem:[%s742] ss:$8 sm:$0xf]
  %v1639 = vlaneseq
  %v1640 = vshrl.u32 %v1639, 7
  %v1641 = vsub.s32 0, %v1640
  %v1642 = vrot.slane %v1637, %v1641
  %v1643 = vlaneseq
  %v1644 = vshrl.u32 %v1643, 7
  %v1645 = vsub.s32 1, %v1644
  %v1646 = vrot.slane %v1637, %v1645
  %v1647 = vlaneseq
  %v1648 = vshrl.u32 %v1647, 7
  %v1649 = vsub.s32 2, %v1648
  %v1650 = vrot.slane %v1637, %v1649
  %v1651 = vlaneseq
  %v1652 = vshrl.u32 %v1651, 7
  %v1653 = vsub.s32 3, %v1652
  %v1654 = vrot.slane %v1637, %v1653
  %v1659 = vmul.f32 %v1629, %v1642
  %v1660 = vmul.f32 %v1625, %v1646
  %v1661 = vmul.f32 %v1621, %v1650
  %v1662 = vmul.f32 %v1633, %v1654
  %v1663 = vmul.f32 %v1630, %v1642
  %v1664 = vmul.f32 %v1626, %v1646
  %v1665 = vmul.f32 %v1622, %v1650
  %v1666 = vmul.f32 %v1634, %v1654
  %v1667 = vmul.f32 %v1631, %v1642
  %v1668 = vmul.f32 %v1627, %v1646
  %v1669 = vmul.f32 %v1623, %v1650
  %v1670 = vmul.f32 %v1635, %v1654
  %v1671 = vmul.f32 %v1632, %v1642
  %v1672 = vmul.f32 %v1628, %v1646
  %v1673 = vmul.f32 %v1624, %v1650
  %v1674 = vmul.f32 %v1636, %v1654
  %v1675 = vpack.c.bf16 %v1663, %v1659
  %v1676 = vpack.c.bf16 %v1664, %v1660
  %v1677 = vpack.c.bf16 %v1665, %v1661
  %v1678 = vpack.c.bf16 %v1666, %v1662
  %v1679 = vpack.c.bf16 %v1671, %v1667
  %v1680 = vpack.c.bf16 %v1672, %v1668
  %v1681 = vpack.c.bf16 %v1673, %v1669
  %v1682 = vpack.c.bf16 %v1674, %v1670
  %1683 = vst [vmem:[#allocation2 + $0x1c0] sm:$0xff] %v1675
  %1684 = vst [vmem:[#allocation2 + $0x1c8] sm:$0xff] %v1676
  %1685 = vst [vmem:[#allocation2 + $0x1d0] sm:$0xff] %v1677
  %1686 = vst [vmem:[#allocation2 + $0x1d8] sm:$0xff] %v1678
  %1687 = vst [vmem:[#allocation2 + $0x1e0] sm:$0xff] %v1679
  %1688 = vst [vmem:[#allocation2 + $0x1e8] sm:$0xff] %v1680
  %1689 = vst [vmem:[#allocation2 + $0x1f0] sm:$0xff] %v1681
  %1690 = vst [vmem:[#allocation2 + $0x1f8] sm:$0xff] %v1682
  %1691 = vrot.lane.b32.xlu0 %v961, 111
  %v1692 = vpop.permute.xlu0 %1691
  %1693 = vrot.lane.b32.xlu0 %v965, 111
  %v1694 = vpop.permute.xlu0 %1693
  %1695 = vrot.lane.b32.xlu0 %v969, 111
  %v1696 = vpop.permute.xlu0 %1695
  %1697 = vrot.lane.b32.xlu0 %v973, 111
  %v1698 = vpop.permute.xlu0 %1697
  %1699 = vrot.lane.b32.xlu0 %v962, 111
  %v1700 = vpop.permute.xlu0 %1699
  %1701 = vrot.lane.b32.xlu0 %v966, 111
  %v1702 = vpop.permute.xlu0 %1701
  %1703 = vrot.lane.b32.xlu0 %v970, 111
  %v1704 = vpop.permute.xlu0 %1703
  %1705 = vrot.lane.b32.xlu0 %v974, 111
  %v1706 = vpop.permute.xlu0 %1705
  %1707 = vrot.lane.b32.xlu0 %v963, 111
  %v1708 = vpop.permute.xlu0 %1707
  %1709 = vrot.lane.b32.xlu0 %v967, 111
  %v1710 = vpop.permute.xlu0 %1709
  %1711 = vrot.lane.b32.xlu0 %v971, 111
  %v1712 = vpop.permute.xlu0 %1711
  %1713 = vrot.lane.b32.xlu0 %v975, 111
  %v1714 = vpop.permute.xlu0 %1713
  %1715 = vrot.lane.b32.xlu0 %v964, 111
  %v1716 = vpop.permute.xlu0 %1715
  %1717 = vrot.lane.b32.xlu0 %v968, 111
  %v1718 = vpop.permute.xlu0 %1717
  %1719 = vrot.lane.b32.xlu0 %v972, 111
  %v1720 = vpop.permute.xlu0 %1719
  %1721 = vrot.lane.b32.xlu0 %v976, 111
  %v1722 = vpop.permute.xlu0 %1721
  %v1723 = vsel %vm841, %v1708, %v1716
  %v1724 = vsel %vm841, %v1710, %v1718
  %v1725 = vsel %vm841, %v1712, %v1720
  %v1726 = vsel %vm841, %v1714, %v1722
  %v1727 = vsel %vm841, %v1700, %v1708
  %v1728 = vsel %vm841, %v1702, %v1710
  %v1729 = vsel %vm841, %v1704, %v1712
  %v1730 = vsel %vm841, %v1706, %v1714
  %v1731 = vsel %vm841, %v1692, %v1700
  %v1732 = vsel %vm841, %v1694, %v1702
  %v1733 = vsel %vm841, %v1696, %v1704
  %v1734 = vsel %vm841, %v1698, %v1706
  %v1735 = vsel %vm841, %v1716, %v1692
  %v1736 = vsel %vm841, %v1718, %v1694
  %v1737 = vsel %vm841, %v1720, %v1696
  %v1738 = vsel %vm841, %v1722, %v1698
  %v1739 = vld [vmem:[%s846] ss:$8 sm:$0xf]
  %v1741 = vlaneseq
  %v1742 = vshrl.u32 %v1741, 7
  %v1743 = vsub.s32 0, %v1742
  %v1744 = vrot.slane %v1739, %v1743
  %v1745 = vlaneseq
  %v1746 = vshrl.u32 %v1745, 7
  %v1747 = vsub.s32 1, %v1746
  %v1748 = vrot.slane %v1739, %v1747
  %v1749 = vlaneseq
  %v1750 = vshrl.u32 %v1749, 7
  %v1751 = vsub.s32 2, %v1750
  %v1752 = vrot.slane %v1739, %v1751
  %v1753 = vlaneseq
  %v1754 = vshrl.u32 %v1753, 7
  %v1755 = vsub.s32 3, %v1754
  %v1756 = vrot.slane %v1739, %v1755
  %v1761 = vmul.f32 %v1731, %v1744
  %v1762 = vmul.f32 %v1727, %v1748
  %v1763 = vmul.f32 %v1723, %v1752
  %v1764 = vmul.f32 %v1735, %v1756
  %v1765 = vmul.f32 %v1732, %v1744
  %v1766 = vmul.f32 %v1728, %v1748
  %v1767 = vmul.f32 %v1724, %v1752
  %v1768 = vmul.f32 %v1736, %v1756
  %v1769 = vmul.f32 %v1733, %v1744
  %v1770 = vmul.f32 %v1729, %v1748
  %v1771 = vmul.f32 %v1725, %v1752
  %v1772 = vmul.f32 %v1737, %v1756
  %v1773 = vmul.f32 %v1734, %v1744
  %v1774 = vmul.f32 %v1730, %v1748
  %v1775 = vmul.f32 %v1726, %v1752
  %v1776 = vmul.f32 %v1738, %v1756
  %v1777 = vpack.c.bf16 %v1765, %v1761
  %v1778 = vpack.c.bf16 %v1766, %v1762
  %v1779 = vpack.c.bf16 %v1767, %v1763
  %v1780 = vpack.c.bf16 %v1768, %v1764
  %v1781 = vpack.c.bf16 %v1773, %v1769
  %v1782 = vpack.c.bf16 %v1774, %v1770
  %v1783 = vpack.c.bf16 %v1775, %v1771
  %v1784 = vpack.c.bf16 %v1776, %v1772
  %1785 = vst [vmem:[#allocation2 + $0x200] sm:$0xff] %v1777
  %1786 = vst [vmem:[#allocation2 + $0x208] sm:$0xff] %v1778
  %1787 = vst [vmem:[#allocation2 + $0x210] sm:$0xff] %v1779
  %1788 = vst [vmem:[#allocation2 + $0x218] sm:$0xff] %v1780
  %1789 = vst [vmem:[#allocation2 + $0x220] sm:$0xff] %v1781
  %1790 = vst [vmem:[#allocation2 + $0x228] sm:$0xff] %v1782
  %1791 = vst [vmem:[#allocation2 + $0x230] sm:$0xff] %v1783
  %1792 = vst [vmem:[#allocation2 + $0x238] sm:$0xff] %v1784
  %v1793 = vld [vmem:[#allocation2] sm:$0xff]
  %v1794 = vld [vmem:[#allocation2 + $0x8] sm:$0xff]
  %v1795 = vld [vmem:[#allocation2 + $0x10] sm:$0xff]
  %v1796 = vld [vmem:[#allocation2 + $0x18] sm:$0xff]
  %v1797 = vld [vmem:[#allocation2 + $0x20] sm:$0xff]
  %v1798 = vld [vmem:[#allocation2 + $0x28] sm:$0xff]
  %v1799 = vld [vmem:[#allocation2 + $0x30] sm:$0xff]
  %v1800 = vld [vmem:[#allocation2 + $0x38] sm:$0xff]
  %v1801 = vld [vmem:[#allocation2 + $0x40] sm:$0xff]
  %v1802 = vld [vmem:[#allocation2 + $0x48] sm:$0xff]
  %v1803 = vld [vmem:[#allocation2 + $0x50] sm:$0xff]
  %v1804 = vld [vmem:[#allocation2 + $0x58] sm:$0xff]
  %v1805 = vld [vmem:[#allocation2 + $0x60] sm:$0xff]
  %v1806 = vld [vmem:[#allocation2 + $0x68] sm:$0xff]
  %v1807 = vld [vmem:[#allocation2 + $0x70] sm:$0xff]
  %v1808 = vld [vmem:[#allocation2 + $0x78] sm:$0xff]
  %v1809 = vld [vmem:[#allocation2 + $0x80] sm:$0xff]
  %v1810 = vld [vmem:[#allocation2 + $0x88] sm:$0xff]
  %v1811 = vld [vmem:[#allocation2 + $0x90] sm:$0xff]
  %v1812 = vld [vmem:[#allocation2 + $0x98] sm:$0xff]
  %v1813 = vld [vmem:[#allocation2 + $0xa0] sm:$0xff]
  %v1814 = vld [vmem:[#allocation2 + $0xa8] sm:$0xff]
  %v1815 = vld [vmem:[#allocation2 + $0xb0] sm:$0xff]
  %v1816 = vld [vmem:[#allocation2 + $0xb8] sm:$0xff]
  %v1817 = vld [vmem:[#allocation2 + $0xc0] sm:$0xff]
  %v1818 = vld [vmem:[#allocation2 + $0xc8] sm:$0xff]
  %v1819 = vld [vmem:[#allocation2 + $0xd0] sm:$0xff]
  %v1820 = vld [vmem:[#allocation2 + $0xd8] sm:$0xff]
  %v1821 = vld [vmem:[#allocation2 + $0xe0] sm:$0xff]
  %v1822 = vld [vmem:[#allocation2 + $0xe8] sm:$0xff]
  %v1823 = vld [vmem:[#allocation2 + $0xf0] sm:$0xff]
  %v1824 = vld [vmem:[#allocation2 + $0xf8] sm:$0xff]
  %v1825 = vld [vmem:[#allocation2 + $0x100] sm:$0xff]
  %v1826 = vld [vmem:[#allocation2 + $0x108] sm:$0xff]
  %v1827 = vld [vmem:[#allocation2 + $0x110] sm:$0xff]
  %v1828 = vld [vmem:[#allocation2 + $0x118] sm:$0xff]
  %v1829 = vld [vmem:[#allocation2 + $0x120] sm:$0xff]
  %v1830 = vld [vmem:[#allocation2 + $0x128] sm:$0xff]
  %v1831 = vld [vmem:[#allocation2 + $0x130] sm:$0xff]
  %v1832 = vld [vmem:[#allocation2 + $0x138] sm:$0xff]
  %v1833 = vld [vmem:[#allocation2 + $0x140] sm:$0xff]
  %v1834 = vld [vmem:[#allocation2 + $0x148] sm:$0xff]
  %v1835 = vld [vmem:[#allocation2 + $0x150] sm:$0xff]
  %v1836 = vld [vmem:[#allocation2 + $0x158] sm:$0xff]
  %v1837 = vld [vmem:[#allocation2 + $0x160] sm:$0xff]
  %v1838 = vld [vmem:[#allocation2 + $0x168] sm:$0xff]
  %v1839 = vld [vmem:[#allocation2 + $0x170] sm:$0xff]
  %v1840 = vld [vmem:[#allocation2 + $0x178] sm:$0xff]
  %v1841 = vld [vmem:[#allocation2 + $0x180] sm:$0xff]
  %v1842 = vld [vmem:[#allocation2 + $0x188] sm:$0xff]
  %v1843 = vld [vmem:[#allocation2 + $0x190] sm:$0xff]
  %v1844 = vld [vmem:[#allocation2 + $0x198] sm:$0xff]
  %v1845 = vld [vmem:[#allocation2 + $0x1a0] sm:$0xff]
  %v1846 = vld [vmem:[#allocation2 + $0x1a8] sm:$0xff]
  %v1847 = vld [vmem:[#allocation2 + $0x1b0] sm:$0xff]
  %v1848 = vld [vmem:[#allocation2 + $0x1b8] sm:$0xff]
  %v1849 = vld [vmem:[#allocation2 + $0x1c0] sm:$0xff]
  %v1850 = vld [vmem:[#allocation2 + $0x1c8] sm:$0xff]
  %v1851 = vld [vmem:[#allocation2 + $0x1d0] sm:$0xff]
  %v1852 = vld [vmem:[#allocation2 + $0x1d8] sm:$0xff]
  %v1853 = vld [vmem:[#allocation2 + $0x1e0] sm:$0xff]
  %v1854 = vld [vmem:[#allocation2 + $0x1e8] sm:$0xff]
  %v1855 = vld [vmem:[#allocation2 + $0x1f0] sm:$0xff]
  %v1856 = vld [vmem:[#allocation2 + $0x1f8] sm:$0xff]
  %v1857 = vld [vmem:[#allocation2 + $0x200] sm:$0xff]
  %v1858 = vld [vmem:[#allocation2 + $0x208] sm:$0xff]
  %v1859 = vld [vmem:[#allocation2 + $0x210] sm:$0xff]
  %v1860 = vld [vmem:[#allocation2 + $0x218] sm:$0xff]
  %v1861 = vld [vmem:[#allocation2 + $0x220] sm:$0xff]
  %v1862 = vld [vmem:[#allocation2 + $0x228] sm:$0xff]
  %v1863 = vld [vmem:[#allocation2 + $0x230] sm:$0xff]
  %v1864 = vld [vmem:[#allocation2 + $0x238] sm:$0xff]
  %1866 = vset.pattern.permute.xlu0 0
  %1867 = vperm.xlu0 %1866, %v981
  %v1868 = vpop.permute.xlu0 %1867
  %1871 = vset.pattern.permute.xlu0 0
  %1872 = vperm.xlu0 %1871, %v982
  %v1873 = vpop.permute.xlu0 %1872
  %v1879 = vunpack.c.l.b16 %v977
  %v1880 = vunpack.c.h.b16 %v977
  %v1881 = vunpack.c.l.b16 %v978
  %v1882 = vunpack.c.l.b16 %v979
  %v1883 = vunpack.c.h.b16 %v979
  %v1884 = vunpack.c.l.b16 %v980
  %v1885 = vpack.c.b16 %v1882, %v1879
  %v1886 = vpack.c.b16 %v1883, %v1880
  %v1887 = vpack.c.b16 %v1884, %v1881
  %vm1890 = vcmask 261120
  %v1892 = vsel %vm1890, %v1887, 0
  %1894 = vmatprep.subr.bf16.mxu0 %v1794
  %1895 = vmatpush1.bf16.msra.mxu0 %v1793
  %1896 = vmatprep.subr.bf16.mxu0 %v1798
  %1897 = vmatpush1.bf16.msra.mxu0 %v1797
  %1898 = vmatprep.subr.bf16.mxu0 %v1802
  %1899 = vmatpush1.bf16.msra.mxu0 %v1801
  %1900 = vmatprep.subr.bf16.mxu0 %v1806
  %1901 = vmatpush1.bf16.msra.mxu0 %v1805
  %1902 = vmatprep.subr.bf16.mxu0 %v1810
  %1903 = vmatpush1.bf16.msra.mxu0 %v1809
  %1904 = vmatprep.subr.bf16.mxu0 %v1814
  %1905 = vmatpush1.bf16.msra.mxu0 %v1813
  %1906 = vmatprep.subr.bf16.mxu0 %v1818
  %1907 = vmatpush1.bf16.msra.mxu0 %v1817
  %1908 = vmatprep.subr.bf16.mxu0 %v1822
  %1909 = vmatpush1.bf16.msra.mxu0 %v1821
  %1910 = vmatprep.subr.bf16.mxu0 %v1826
  %1911 = vmatpush1.bf16.msra.mxu0 %v1825
  %1912 = vmatprep.subr.bf16.mxu0 %v1830
  %1913 = vmatpush1.bf16.msra.mxu0 %v1829
  %1914 = vmatprep.subr.bf16.mxu0 %v1834
  %1915 = vmatpush1.bf16.msra.mxu0 %v1833
  %1916 = vmatprep.subr.bf16.mxu0 %v1838
  %1917 = vmatpush1.bf16.msra.mxu0 %v1837
  %1918 = vmatprep.subr.bf16.mxu0 %v1842
  %1919 = vmatpush1.bf16.msra.mxu0 %v1841
  %1920 = vmatprep.subr.bf16.mxu0 %v1846
  %1921 = vmatpush1.bf16.msra.mxu0 %v1845
  %1922 = vmatprep.subr.bf16.mxu0 %v1850
  %1923 = vmatpush1.bf16.msra.mxu0 %v1849
  %1924 = vmatprep.subr.bf16.mxu0 %v1854
  %1925 = vmatpush1.bf16.msra.mxu0 %v1853
  %1926 = vmatprep.mubr.bf16.mxu0 %v1886
  %1927 = vmatmul.mubr.bf16.gmra.mrb[0].mxu0 %v1885
  %v1928 = vpop.f32.mrb[0].mxu0
  %v1929 = vadd.f32 %v1868, %v1928
  %v1930 = vpop.f32.mrb[0].mxu0
  %v1931 = vadd.f32 %v1868, %v1930
  %v1932 = vpop.f32.mrb[0].mxu0
  %v1933 = vadd.f32 %v1873, %v1932
  %v1934 = vpop.f32.mrb[0].mxu0
  %v1935 = vadd.f32 %v1873, %v1934
  %1936 = vdwg.mxu0
  %1937 = vmatprep.subr.bf16.mxu0 %v1858
  %1938 = vmatpush1.bf16.msra.mxu0 %v1857
  %1939 = vmatprep.subr.bf16.mxu0 %v1862
  %1940 = vmatpush1.bf16.msra.mxu0 %v1861
  %1941 = vmatprep.subr.bf16.mxu0 0
  %1942 = vmatpush1.bf16.msra.mxu0 0
  %1943 = vmatprep.subr.bf16.mxu0 0
  %1944 = vmatpush1.bf16.msra.mxu0 0
  %1945 = vmatprep.subr.bf16.mxu0 0
  %1946 = vmatpush1.bf16.msra.mxu0 0
  %1947 = vmatprep.subr.bf16.mxu0 0
  %1948 = vmatpush1.bf16.msra.mxu0 0
  %1949 = vmatprep.subr.bf16.mxu0 0
  %1950 = vmatpush1.bf16.msra.mxu0 0
  %1951 = vmatprep.subr.bf16.mxu0 0
  %1952 = vmatpush1.bf16.msra.mxu0 0
  %1953 = vmatprep.subr.bf16.mxu0 0
  %1954 = vmatpush1.bf16.msra.mxu0 0
  %1955 = vmatprep.subr.bf16.mxu0 0
  %1956 = vmatpush1.bf16.msra.mxu0 0
  %1957 = vmatprep.subr.bf16.mxu0 0
  %1958 = vmatpush1.bf16.msra.mxu0 0
  %1959 = vmatprep.subr.bf16.mxu0 0
  %1960 = vmatpush1.bf16.msra.mxu0 0
  %1961 = vmatprep.subr.bf16.mxu0 0
  %1962 = vmatpush1.bf16.msra.mxu0 0
  %1963 = vmatprep.subr.bf16.mxu0 0
  %1964 = vmatpush1.bf16.msra.mxu0 0
  %1965 = vmatprep.subr.bf16.mxu0 0
  %1966 = vmatpush1.bf16.msra.mxu0 0
  %1967 = vmatprep.subr.bf16.mxu0 0
  %1968 = vmatpush1.bf16.msra.mxu0 0
  %1969 = vmatprep.mubr.bf16.mxu0 0
  %1970 = vmatmul.mubr.bf16.gmra.mrb[0].mxu0 %v1892
  %v1971 = vpop.f32.mrb[0].mxu0
  %v1972 = vadd.f32 %v1929, %v1971
  %v1973 = vpop.f32.mrb[0].mxu0
  %v1974 = vadd.f32 %v1931, %v1973
  %v1975 = vpop.f32.mrb[0].mxu0
  %v1976 = vadd.f32 %v1933, %v1975
  %v1977 = vpop.f32.mrb[0].mxu0
  %v1978 = vadd.f32 %v1935, %v1977
  %1979 = vdwg.mxu0
  %1980 = vmatprep.subr.bf16.mxu0 %v1796
  %1981 = vmatpush1.bf16.msra.mxu0 %v1795
  %1982 = vmatprep.subr.bf16.mxu0 %v1800
  %1983 = vmatpush1.bf16.msra.mxu0 %v1799
  %1984 = vmatprep.subr.bf16.mxu0 %v1804
  %1985 = vmatpush1.bf16.msra.mxu0 %v1803
  %1986 = vmatprep.subr.bf16.mxu0 %v1808
  %1987 = vmatpush1.bf16.msra.mxu0 %v1807
  %1988 = vmatprep.subr.bf16.mxu0 %v1812
  %1989 = vmatpush1.bf16.msra.mxu0 %v1811
  %1990 = vmatprep.subr.bf16.mxu0 %v1816
  %1991 = vmatpush1.bf16.msra.mxu0 %v1815
  %1992 = vmatprep.subr.bf16.mxu0 %v1820
  %1993 = vmatpush1.bf16.msra.mxu0 %v1819
  %1994 = vmatprep.subr.bf16.mxu0 %v1824
  %1995 = vmatpush1.bf16.msra.mxu0 %v1823
  %1996 = vmatprep.subr.bf16.mxu0 %v1828
  %1997 = vmatpush1.bf16.msra.mxu0 %v1827
  %1998 = vmatprep.subr.bf16.mxu0 %v1832
  %1999 = vmatpush1.bf16.msra.mxu0 %v1831
  %2000 = vmatprep.subr.bf16.mxu0 %v1836
  %2001 = vmatpush1.bf16.msra.mxu0 %v1835
  %2002 = vmatprep.subr.bf16.mxu0 %v1840
  %2003 = vmatpush1.bf16.msra.mxu0 %v1839
  %2004 = vmatprep.subr.bf16.mxu0 %v1844
  %2005 = vmatpush1.bf16.msra.mxu0 %v1843
  %2006 = vmatprep.subr.bf16.mxu0 %v1848
  %2007 = vmatpush1.bf16.msra.mxu0 %v1847
  %2008 = vmatprep.subr.bf16.mxu0 %v1852
  %2009 = vmatpush1.bf16.msra.mxu0 %v1851
  %2010 = vmatprep.subr.bf16.mxu0 %v1856
  %2011 = vmatpush1.bf16.msra.mxu0 %v1855
  %2012 = vmatprep.mubr.bf16.mxu0 %v1886
  %2013 = vmatmul.mubr.bf16.gmra.mrb[0].mxu0 %v1885
  %v2014 = vpop.f32.mrb[0].mxu0
  %v2015 = vadd.f32 %v1868, %v2014
  %v2016 = vpop.f32.mrb[0].mxu0
  %v2017 = vadd.f32 %v1868, %v2016
  %v2018 = vpop.f32.mrb[0].mxu0
  %v2019 = vadd.f32 %v1873, %v2018
  %v2020 = vpop.f32.mrb[0].mxu0
  %v2021 = vadd.f32 %v1873, %v2020
  %2022 = vdwg.mxu0
  %2023 = vmatprep.subr.bf16.mxu0 %v1860
  %2024 = vmatpush1.bf16.msra.mxu0 %v1859
  %2025 = vmatprep.subr.bf16.mxu0 %v1864
  %2026 = vmatpush1.bf16.msra.mxu0 %v1863
  %2027 = vmatprep.subr.bf16.mxu0 0
  %2028 = vmatpush1.bf16.msra.mxu0 0
  %2029 = vmatprep.subr.bf16.mxu0 0
  %2030 = vmatpush1.bf16.msra.mxu0 0
  %2031 = vmatprep.subr.bf16.mxu0 0
  %2032 = vmatpush1.bf16.msra.mxu0 0
  %2033 = vmatprep.subr.bf16.mxu0 0
  %2034 = vmatpush1.bf16.msra.mxu0 0
  %2035 = vmatprep.subr.bf16.mxu0 0
  %2036 = vmatpush1.bf16.msra.mxu0 0
  %2037 = vmatprep.subr.bf16.mxu0 0
  %2038 = vmatpush1.bf16.msra.mxu0 0
  %2039 = vmatprep.subr.bf16.mxu0 0
  %2040 = vmatpush1.bf16.msra.mxu0 0
  %2041 = vmatprep.subr.bf16.mxu0 0
  %2042 = vmatpush1.bf16.msra.mxu0 0
  %2043 = vmatprep.subr.bf16.mxu0 0
  %2044 = vmatpush1.bf16.msra.mxu0 0
  %2045 = vmatprep.subr.bf16.mxu0 0
  %2046 = vmatpush1.bf16.msra.mxu0 0
  %2047 = vmatprep.subr.bf16.mxu0 0
  %2048 = vmatpush1.bf16.msra.mxu0 0
  %2049 = vmatprep.subr.bf16.mxu0 0
  %2050 = vmatpush1.bf16.msra.mxu0 0
  %2051 = vmatprep.subr.bf16.mxu0 0
  %2052 = vmatpush1.bf16.msra.mxu0 0
  %2053 = vmatprep.subr.bf16.mxu0 0
  %2054 = vmatpush1.bf16.msra.mxu0 0
  %2055 = vmatprep.mubr.bf16.mxu0 0
  %2056 = vmatmul.mubr.bf16.gmra.mrb[0].mxu0 %v1892
  %v2057 = vpop.f32.mrb[0].mxu0
  %v2058 = vadd.f32 %v2015, %v2057
  %v2059 = vpop.f32.mrb[0].mxu0
  %v2060 = vadd.f32 %v2017, %v2059
  %v2061 = vpop.f32.mrb[0].mxu0
  %v2062 = vadd.f32 %v2019, %v2061
  %v2063 = vpop.f32.mrb[0].mxu0
  %v2064 = vadd.f32 %v2021, %v2063
  %2065 = vdwg.mxu0
  %v2066 = vmax.f32 %v1972, 0.0
  %v2067 = vmax.f32 %v1974, 0.0
  %v2068 = vmax.f32 %v2058, 0.0
  %v2069 = vmax.f32 %v2060, 0.0
  %v2070 = vmax.f32 %v1976, 0.0
  %v2071 = vmax.f32 %v1978, 0.0
  %v2072 = vmax.f32 %v2062, 0.0
  %v2073 = vmax.f32 %v2064, 0.0
  %v2074 = vld [vmem:[%s6] sm:$0xff]
  %v2075 = vld [vmem:[%s6 + $0x8] sm:$0xff]
  %v2076 = vld [vmem:[%s6 + $0x10] sm:$0xff]
  %v2077 = vld [vmem:[%s6 + $0x18] sm:$0xff]
  %v2078 = vld [vmem:[%s7] sm:$0xff]
  %v2079 = vld [vmem:[%s7 + $0x8] sm:$0xff]
  %v2080 = vld [vmem:[%s7 + $0x10] sm:$0xff]
  %v2081 = vld [vmem:[%s7 + $0x18] sm:$0xff]
  %2082 = vrot.lane.b32.xlu0 %v2066, 17
  %v2083 = vpop.permute.xlu0 %2082
  %2084 = vrot.lane.b32.xlu0 %v2070, 17
  %v2085 = vpop.permute.xlu0 %2084
  %2086 = vrot.lane.b32.xlu0 %v2067, 17
  %v2087 = vpop.permute.xlu0 %2086
  %2088 = vrot.lane.b32.xlu0 %v2071, 17
  %v2089 = vpop.permute.xlu0 %2088
  %2090 = vrot.lane.b32.xlu0 %v2068, 17
  %v2091 = vpop.permute.xlu0 %2090
  %2092 = vrot.lane.b32.xlu0 %v2072, 17
  %v2093 = vpop.permute.xlu0 %2092
  %2094 = vrot.lane.b32.xlu0 %v2069, 17
  %v2095 = vpop.permute.xlu0 %2094
  %2096 = vrot.lane.b32.xlu0 %v2073, 17
  %v2097 = vpop.permute.xlu0 %2096
  %v2098 = vsel %vm78, %v2091, %v2095
  %v2099 = vsel %vm78, %v2093, %v2097
  %v2100 = vsel %vm78, %v2087, %v2091
  %v2101 = vsel %vm78, %v2089, %v2093
  %v2102 = vsel %vm78, %v2083, %v2087
  %v2103 = vsel %vm78, %v2085, %v2089
  %v2104 = vsel %vm78, %v2095, %v2083
  %v2105 = vsel %vm78, %v2097, %v2085
  %v2106 = vld [vmem:[%s1] ss:$8 sm:$0xf]
  %v2108 = vlaneseq
  %v2109 = vshrl.u32 %v2108, 7
  %v2110 = vsub.s32 0, %v2109
  %v2111 = vrot.slane %v2106, %v2110
  %v2112 = vlaneseq
  %v2113 = vshrl.u32 %v2112, 7
  %v2114 = vsub.s32 1, %v2113
  %v2115 = vrot.slane %v2106, %v2114
  %v2116 = vlaneseq
  %v2117 = vshrl.u32 %v2116, 7
  %v2118 = vsub.s32 2, %v2117
  %v2119 = vrot.slane %v2106, %v2118
  %v2120 = vlaneseq
  %v2121 = vshrl.u32 %v2120, 7
  %v2122 = vsub.s32 3, %v2121
  %v2123 = vrot.slane %v2106, %v2122
  %v2128 = vmul.f32 %v2104, %v2111
  %v2129 = vmul.f32 %v2102, %v2115
  %v2130 = vmul.f32 %v2100, %v2119
  %v2131 = vmul.f32 %v2098, %v2123
  %v2132 = vmul.f32 %v2105, %v2111
  %v2133 = vmul.f32 %v2103, %v2115
  %v2134 = vmul.f32 %v2101, %v2119
  %v2135 = vmul.f32 %v2099, %v2123
  %v2136 = vpack.c.bf16 %v2132, %v2128
  %v2137 = vpack.c.bf16 %v2133, %v2129
  %v2138 = vpack.c.bf16 %v2134, %v2130
  %v2139 = vpack.c.bf16 %v2135, %v2131
  %2140 = vst [vmem:[#allocation2] sm:$0xff] %v2136
  %2141 = vst [vmem:[#allocation2 + $0x8] sm:$0xff] %v2137
  %2142 = vst [vmem:[#allocation2 + $0x10] sm:$0xff] %v2138
  %2143 = vst [vmem:[#allocation2 + $0x18] sm:$0xff] %v2139
  %2144 = vrot.lane.b32.xlu0 %v2066, 16
  %v2145 = vpop.permute.xlu0 %2144
  %2146 = vrot.lane.b32.xlu0 %v2070, 16
  %v2147 = vpop.permute.xlu0 %2146
  %2148 = vrot.lane.b32.xlu0 %v2067, 16
  %v2149 = vpop.permute.xlu0 %2148
  %2150 = vrot.lane.b32.xlu0 %v2071, 16
  %v2151 = vpop.permute.xlu0 %2150
  %2152 = vrot.lane.b32.xlu0 %v2068, 16
  %v2153 = vpop.permute.xlu0 %2152
  %2154 = vrot.lane.b32.xlu0 %v2072, 16
  %v2155 = vpop.permute.xlu0 %2154
  %2156 = vrot.lane.b32.xlu0 %v2069, 16
  %v2157 = vpop.permute.xlu0 %2156
  %2158 = vrot.lane.b32.xlu0 %v2073, 16
  %v2159 = vpop.permute.xlu0 %2158
  %v2160 = vsel %vm169, %v2153, %v2157
  %v2161 = vsel %vm169, %v2155, %v2159
  %v2162 = vsel %vm169, %v2149, %v2153
  %v2163 = vsel %vm169, %v2151, %v2155
  %v2164 = vsel %vm169, %v2145, %v2149
  %v2165 = vsel %vm169, %v2147, %v2151
  %v2166 = vsel %vm169, %v2157, %v2145
  %v2167 = vsel %vm169, %v2159, %v2147
  %v2168 = vld [vmem:[%s174] ss:$8 sm:$0xf]
  %v2170 = vlaneseq
  %v2171 = vshrl.u32 %v2170, 7
  %v2172 = vsub.s32 0, %v2171
  %v2173 = vrot.slane %v2168, %v2172
  %v2174 = vlaneseq
  %v2175 = vshrl.u32 %v2174, 7
  %v2176 = vsub.s32 1, %v2175
  %v2177 = vrot.slane %v2168, %v2176
  %v2178 = vlaneseq
  %v2179 = vshrl.u32 %v2178, 7
  %v2180 = vsub.s32 2, %v2179
  %v2181 = vrot.slane %v2168, %v2180
  %v2182 = vlaneseq
  %v2183 = vshrl.u32 %v2182, 7
  %v2184 = vsub.s32 3, %v2183
  %v2185 = vrot.slane %v2168, %v2184
  %v2190 = vmul.f32 %v2166, %v2173
  %v2191 = vmul.f32 %v2164, %v2177
  %v2192 = vmul.f32 %v2162, %v2181
  %v2193 = vmul.f32 %v2160, %v2185
  %v2194 = vmul.f32 %v2167, %v2173
  %v2195 = vmul.f32 %v2165, %v2177
  %v2196 = vmul.f32 %v2163, %v2181
  %v2197 = vmul.f32 %v2161, %v2185
  %v2198 = vpack.c.bf16 %v2194, %v2190
  %v2199 = vpack.c.bf16 %v2195, %v2191
  %v2200 = vpack.c.bf16 %v2196, %v2192
  %v2201 = vpack.c.bf16 %v2197, %v2193
  %2202 = vst [vmem:[#allocation2 + $0x20] sm:$0xff] %v2198
  %2203 = vst [vmem:[#allocation2 + $0x28] sm:$0xff] %v2199
  %2204 = vst [vmem:[#allocation2 + $0x30] sm:$0xff] %v2200
  %2205 = vst [vmem:[#allocation2 + $0x38] sm:$0xff] %v2201
  %2206 = vrot.lane.b32.xlu0 %v2066, 15
  %v2207 = vpop.permute.xlu0 %2206
  %2208 = vrot.lane.b32.xlu0 %v2070, 15
  %v2209 = vpop.permute.xlu0 %2208
  %2210 = vrot.lane.b32.xlu0 %v2067, 15
  %v2211 = vpop.permute.xlu0 %2210
  %2212 = vrot.lane.b32.xlu0 %v2071, 15
  %v2213 = vpop.permute.xlu0 %2212
  %2214 = vrot.lane.b32.xlu0 %v2068, 15
  %v2215 = vpop.permute.xlu0 %2214
  %2216 = vrot.lane.b32.xlu0 %v2072, 15
  %v2217 = vpop.permute.xlu0 %2216
  %2218 = vrot.lane.b32.xlu0 %v2069, 15
  %v2219 = vpop.permute.xlu0 %2218
  %2220 = vrot.lane.b32.xlu0 %v2073, 15
  %v2221 = vpop.permute.xlu0 %2220
  %v2222 = vsel %vm273, %v2215, %v2219
  %v2223 = vsel %vm273, %v2217, %v2221
  %v2224 = vsel %vm273, %v2211, %v2215
  %v2225 = vsel %vm273, %v2213, %v2217
  %v2226 = vsel %vm273, %v2207, %v2211
  %v2227 = vsel %vm273, %v2209, %v2213
  %v2228 = vsel %vm273, %v2219, %v2207
  %v2229 = vsel %vm273, %v2221, %v2209
  %v2230 = vld [vmem:[%s278] ss:$8 sm:$0xf]
  %v2232 = vlaneseq
  %v2233 = vshrl.u32 %v2232, 7
  %v2234 = vsub.s32 0, %v2233
  %v2235 = vrot.slane %v2230, %v2234
  %v2236 = vlaneseq
  %v2237 = vshrl.u32 %v2236, 7
  %v2238 = vsub.s32 1, %v2237
  %v2239 = vrot.slane %v2230, %v2238
  %v2240 = vlaneseq
  %v2241 = vshrl.u32 %v2240, 7
  %v2242 = vsub.s32 2, %v2241
  %v2243 = vrot.slane %v2230, %v2242
  %v2244 = vlaneseq
  %v2245 = vshrl.u32 %v2244, 7
  %v2246 = vsub.s32 3, %v2245
  %v2247 = vrot.slane %v2230, %v2246
  %v2252 = vmul.f32 %v2228, %v2235
  %v2253 = vmul.f32 %v2226, %v2239
  %v2254 = vmul.f32 %v2224, %v2243
  %v2255 = vmul.f32 %v2222, %v2247
  %v2256 = vmul.f32 %v2229, %v2235
  %v2257 = vmul.f32 %v2227, %v2239
  %v2258 = vmul.f32 %v2225, %v2243
  %v2259 = vmul.f32 %v2223, %v2247
  %v2260 = vpack.c.bf16 %v2256, %v2252
  %v2261 = vpack.c.bf16 %v2257, %v2253
  %v2262 = vpack.c.bf16 %v2258, %v2254
  %v2263 = vpack.c.bf16 %v2259, %v2255
  %2264 = vst [vmem:[#allocation2 + $0x40] sm:$0xff] %v2260
  %2265 = vst [vmem:[#allocation2 + $0x48] sm:$0xff] %v2261
  %2266 = vst [vmem:[#allocation2 + $0x50] sm:$0xff] %v2262
  %2267 = vst [vmem:[#allocation2 + $0x58] sm:$0xff] %v2263
  %2268 = vrot.lane.b32.xlu0 %v2066, 1
  %v2269 = vpop.permute.xlu0 %2268
  %2270 = vrot.lane.b32.xlu0 %v2070, 1
  %v2271 = vpop.permute.xlu0 %2270
  %2272 = vrot.lane.b32.xlu0 %v2067, 1
  %v2273 = vpop.permute.xlu0 %2272
  %2274 = vrot.lane.b32.xlu0 %v2071, 1
  %v2275 = vpop.permute.xlu0 %2274
  %2276 = vrot.lane.b32.xlu0 %v2068, 1
  %v2277 = vpop.permute.xlu0 %2276
  %2278 = vrot.lane.b32.xlu0 %v2072, 1
  %v2279 = vpop.permute.xlu0 %2278
  %2280 = vrot.lane.b32.xlu0 %v2069, 1
  %v2281 = vpop.permute.xlu0 %2280
  %2282 = vrot.lane.b32.xlu0 %v2073, 1
  %v2283 = vpop.permute.xlu0 %2282
  %v2284 = vsel %vm377, %v2277, %v2281
  %v2285 = vsel %vm377, %v2279, %v2283
  %v2286 = vsel %vm377, %v2273, %v2277
  %v2287 = vsel %vm377, %v2275, %v2279
  %v2288 = vsel %vm377, %v2269, %v2273
  %v2289 = vsel %vm377, %v2271, %v2275
  %v2290 = vsel %vm377, %v2281, %v2269
  %v2291 = vsel %vm377, %v2283, %v2271
  %v2292 = vld [vmem:[%s382] ss:$8 sm:$0xf]
  %v2294 = vlaneseq
  %v2295 = vshrl.u32 %v2294, 7
  %v2296 = vsub.s32 0, %v2295
  %v2297 = vrot.slane %v2292, %v2296
  %v2298 = vlaneseq
  %v2299 = vshrl.u32 %v2298, 7
  %v2300 = vsub.s32 1, %v2299
  %v2301 = vrot.slane %v2292, %v2300
  %v2302 = vlaneseq
  %v2303 = vshrl.u32 %v2302, 7
  %v2304 = vsub.s32 2, %v2303
  %v2305 = vrot.slane %v2292, %v2304
  %v2306 = vlaneseq
  %v2307 = vshrl.u32 %v2306, 7
  %v2308 = vsub.s32 3, %v2307
  %v2309 = vrot.slane %v2292, %v2308
  %v2314 = vmul.f32 %v2290, %v2297
  %v2315 = vmul.f32 %v2288, %v2301
  %v2316 = vmul.f32 %v2286, %v2305
  %v2317 = vmul.f32 %v2284, %v2309
  %v2318 = vmul.f32 %v2291, %v2297
  %v2319 = vmul.f32 %v2289, %v2301
  %v2320 = vmul.f32 %v2287, %v2305
  %v2321 = vmul.f32 %v2285, %v2309
  %v2322 = vpack.c.bf16 %v2318, %v2314
  %v2323 = vpack.c.bf16 %v2319, %v2315
  %v2324 = vpack.c.bf16 %v2320, %v2316
  %v2325 = vpack.c.bf16 %v2321, %v2317
  %2326 = vst [vmem:[#allocation2 + $0x60] sm:$0xff] %v2322
  %2327 = vst [vmem:[#allocation2 + $0x68] sm:$0xff] %v2323
  %2328 = vst [vmem:[#allocation2 + $0x70] sm:$0xff] %v2324
  %2329 = vst [vmem:[#allocation2 + $0x78] sm:$0xff] %v2325
  %v2330 = vpack.c.bf16 %v2070, %v2066
  %v2331 = vpack.c.bf16 %v2071, %v2067
  %v2332 = vpack.c.bf16 %v2072, %v2068
  %v2333 = vpack.c.bf16 %v2073, %v2069
  %2334 = vst [vmem:[#allocation2 + $0x80] sm:$0xff] %v2330
  %2335 = vst [vmem:[#allocation2 + $0x88] sm:$0xff] %v2331
  %2336 = vst [vmem:[#allocation2 + $0x90] sm:$0xff] %v2332
  %2337 = vst [vmem:[#allocation2 + $0x98] sm:$0xff] %v2333
  %2338 = vrot.lane.b32.xlu0 %v2066, 127
  %v2339 = vpop.permute.xlu0 %2338
  %2340 = vrot.lane.b32.xlu0 %v2070, 127
  %v2341 = vpop.permute.xlu0 %2340
  %2342 = vrot.lane.b32.xlu0 %v2067, 127
  %v2343 = vpop.permute.xlu0 %2342
  %2344 = vrot.lane.b32.xlu0 %v2071, 127
  %v2345 = vpop.permute.xlu0 %2344
  %2346 = vrot.lane.b32.xlu0 %v2068, 127
  %v2347 = vpop.permute.xlu0 %2346
  %2348 = vrot.lane.b32.xlu0 %v2072, 127
  %v2349 = vpop.permute.xlu0 %2348
  %2350 = vrot.lane.b32.xlu0 %v2069, 127
  %v2351 = vpop.permute.xlu0 %2350
  %2352 = vrot.lane.b32.xlu0 %v2073, 127
  %v2353 = vpop.permute.xlu0 %2352
  %v2354 = vsel %vm529, %v2347, %v2351
  %v2355 = vsel %vm529, %v2349, %v2353
  %v2356 = vsel %vm529, %v2343, %v2347
  %v2357 = vsel %vm529, %v2345, %v2349
  %v2358 = vsel %vm529, %v2339, %v2343
  %v2359 = vsel %vm529, %v2341, %v2345
  %v2360 = vsel %vm529, %v2351, %v2339
  %v2361 = vsel %vm529, %v2353, %v2341
  %v2362 = vld [vmem:[%s534] ss:$8 sm:$0xf]
  %v2364 = vlaneseq
  %v2365 = vshrl.u32 %v2364, 7
  %v2366 = vsub.s32 0, %v2365
  %v2367 = vrot.slane %v2362, %v2366
  %v2368 = vlaneseq
  %v2369 = vshrl.u32 %v2368, 7
  %v2370 = vsub.s32 1, %v2369
  %v2371 = vrot.slane %v2362, %v2370
  %v2372 = vlaneseq
  %v2373 = vshrl.u32 %v2372, 7
  %v2374 = vsub.s32 2, %v2373
  %v2375 = vrot.slane %v2362, %v2374
  %v2376 = vlaneseq
  %v2377 = vshrl.u32 %v2376, 7
  %v2378 = vsub.s32 3, %v2377
  %v2379 = vrot.slane %v2362, %v2378
  %v2384 = vmul.f32 %v2358, %v2367
  %v2385 = vmul.f32 %v2356, %v2371
  %v2386 = vmul.f32 %v2354, %v2375
  %v2387 = vmul.f32 %v2360, %v2379
  %v2388 = vmul.f32 %v2359, %v2367
  %v2389 = vmul.f32 %v2357, %v2371
  %v2390 = vmul.f32 %v2355, %v2375
  %v2391 = vmul.f32 %v2361, %v2379
  %v2392 = vpack.c.bf16 %v2388, %v2384
  %v2393 = vpack.c.bf16 %v2389, %v2385
  %v2394 = vpack.c.bf16 %v2390, %v2386
  %v2395 = vpack.c.bf16 %v2391, %v2387
  %2396 = vst [vmem:[#allocation2 + $0xa0] sm:$0xff] %v2392
  %2397 = vst [vmem:[#allocation2 + $0xa8] sm:$0xff] %v2393
  %2398 = vst [vmem:[#allocation2 + $0xb0] sm:$0xff] %v2394
  %2399 = vst [vmem:[#allocation2 + $0xb8] sm:$0xff] %v2395
  %2400 = vrot.lane.b32.xlu0 %v2066, 113
  %v2401 = vpop.permute.xlu0 %2400
  %2402 = vrot.lane.b32.xlu0 %v2070, 113
  %v2403 = vpop.permute.xlu0 %2402
  %2404 = vrot.lane.b32.xlu0 %v2067, 113
  %v2405 = vpop.permute.xlu0 %2404
  %2406 = vrot.lane.b32.xlu0 %v2071, 113
  %v2407 = vpop.permute.xlu0 %2406
  %2408 = vrot.lane.b32.xlu0 %v2068, 113
  %v2409 = vpop.permute.xlu0 %2408
  %2410 = vrot.lane.b32.xlu0 %v2072, 113
  %v2411 = vpop.permute.xlu0 %2410
  %2412 = vrot.lane.b32.xlu0 %v2069, 113
  %v2413 = vpop.permute.xlu0 %2412
  %2414 = vrot.lane.b32.xlu0 %v2073, 113
  %v2415 = vpop.permute.xlu0 %2414
  %v2416 = vsel %vm633, %v2409, %v2413
  %v2417 = vsel %vm633, %v2411, %v2415
  %v2418 = vsel %vm633, %v2405, %v2409
  %v2419 = vsel %vm633, %v2407, %v2411
  %v2420 = vsel %vm633, %v2401, %v2405
  %v2421 = vsel %vm633, %v2403, %v2407
  %v2422 = vsel %vm633, %v2413, %v2401
  %v2423 = vsel %vm633, %v2415, %v2403
  %v2424 = vld [vmem:[%s638] ss:$8 sm:$0xf]
  %v2426 = vlaneseq
  %v2427 = vshrl.u32 %v2426, 7
  %v2428 = vsub.s32 0, %v2427
  %v2429 = vrot.slane %v2424, %v2428
  %v2430 = vlaneseq
  %v2431 = vshrl.u32 %v2430, 7
  %v2432 = vsub.s32 1, %v2431
  %v2433 = vrot.slane %v2424, %v2432
  %v2434 = vlaneseq
  %v2435 = vshrl.u32 %v2434, 7
  %v2436 = vsub.s32 2, %v2435
  %v2437 = vrot.slane %v2424, %v2436
  %v2438 = vlaneseq
  %v2439 = vshrl.u32 %v2438, 7
  %v2440 = vsub.s32 3, %v2439
  %v2441 = vrot.slane %v2424, %v2440
  %v2446 = vmul.f32 %v2420, %v2429
  %v2447 = vmul.f32 %v2418, %v2433
  %v2448 = vmul.f32 %v2416, %v2437
  %v2449 = vmul.f32 %v2422, %v2441
  %v2450 = vmul.f32 %v2421, %v2429
  %v2451 = vmul.f32 %v2419, %v2433
  %v2452 = vmul.f32 %v2417, %v2437
  %v2453 = vmul.f32 %v2423, %v2441
  %v2454 = vpack.c.bf16 %v2450, %v2446
  %v2455 = vpack.c.bf16 %v2451, %v2447
  %v2456 = vpack.c.bf16 %v2452, %v2448
  %v2457 = vpack.c.bf16 %v2453, %v2449
  %2458 = vst [vmem:[#allocation2 + $0xc0] sm:$0xff] %v2454
  %2459 = vst [vmem:[#allocation2 + $0xc8] sm:$0xff] %v2455
  %2460 = vst [vmem:[#allocation2 + $0xd0] sm:$0xff] %v2456
  %2461 = vst [vmem:[#allocation2 + $0xd8] sm:$0xff] %v2457
  %2462 = vrot.lane.b32.xlu0 %v2066, 112
  %v2463 = vpop.permute.xlu0 %2462
  %2464 = vrot.lane.b32.xlu0 %v2070, 112
  %v2465 = vpop.permute.xlu0 %2464
  %2466 = vrot.lane.b32.xlu0 %v2067, 112
  %v2467 = vpop.permute.xlu0 %2466
  %2468 = vrot.lane.b32.xlu0 %v2071, 112
  %v2469 = vpop.permute.xlu0 %2468
  %2470 = vrot.lane.b32.xlu0 %v2068, 112
  %v2471 = vpop.permute.xlu0 %2470
  %2472 = vrot.lane.b32.xlu0 %v2072, 112
  %v2473 = vpop.permute.xlu0 %2472
  %2474 = vrot.lane.b32.xlu0 %v2069, 112
  %v2475 = vpop.permute.xlu0 %2474
  %2476 = vrot.lane.b32.xlu0 %v2073, 112
  %v2477 = vpop.permute.xlu0 %2476
  %v2478 = vsel %vm737, %v2471, %v2475
  %v2479 = vsel %vm737, %v2473, %v2477
  %v2480 = vsel %vm737, %v2467, %v2471
  %v2481 = vsel %vm737, %v2469, %v2473
  %v2482 = vsel %vm737, %v2463, %v2467
  %v2483 = vsel %vm737, %v2465, %v2469
  %v2484 = vsel %vm737, %v2475, %v2463
  %v2485 = vsel %vm737, %v2477, %v2465
  %v2486 = vld [vmem:[%s742] ss:$8 sm:$0xf]
  %v2488 = vlaneseq
  %v2489 = vshrl.u32 %v2488, 7
  %v2490 = vsub.s32 0, %v2489
  %v2491 = vrot.slane %v2486, %v2490
  %v2492 = vlaneseq
  %v2493 = vshrl.u32 %v2492, 7
  %v2494 = vsub.s32 1, %v2493
  %v2495 = vrot.slane %v2486, %v2494
  %v2496 = vlaneseq
  %v2497 = vshrl.u32 %v2496, 7
  %v2498 = vsub.s32 2, %v2497
  %v2499 = vrot.slane %v2486, %v2498
  %v2500 = vlaneseq
  %v2501 = vshrl.u32 %v2500, 7
  %v2502 = vsub.s32 3, %v2501
  %v2503 = vrot.slane %v2486, %v2502
  %v2508 = vmul.f32 %v2482, %v2491
  %v2509 = vmul.f32 %v2480, %v2495
  %v2510 = vmul.f32 %v2478, %v2499
  %v2511 = vmul.f32 %v2484, %v2503
  %v2512 = vmul.f32 %v2483, %v2491
  %v2513 = vmul.f32 %v2481, %v2495
  %v2514 = vmul.f32 %v2479, %v2499
  %v2515 = vmul.f32 %v2485, %v2503
  %v2516 = vpack.c.bf16 %v2512, %v2508
  %v2517 = vpack.c.bf16 %v2513, %v2509
  %v2518 = vpack.c.bf16 %v2514, %v2510
  %v2519 = vpack.c.bf16 %v2515, %v2511
  %2520 = vst [vmem:[#allocation2 + $0xe0] sm:$0xff] %v2516
  %2521 = vst [vmem:[#allocation2 + $0xe8] sm:$0xff] %v2517
  %2522 = vst [vmem:[#allocation2 + $0xf0] sm:$0xff] %v2518
  %2523 = vst [vmem:[#allocation2 + $0xf8] sm:$0xff] %v2519
  %2524 = vrot.lane.b32.xlu0 %v2066, 111
  %v2525 = vpop.permute.xlu0 %2524
  %2526 = vrot.lane.b32.xlu0 %v2070, 111
  %v2527 = vpop.permute.xlu0 %2526
  %2528 = vrot.lane.b32.xlu0 %v2067, 111
  %v2529 = vpop.permute.xlu0 %2528
  %2530 = vrot.lane.b32.xlu0 %v2071, 111
  %v2531 = vpop.permute.xlu0 %2530
  %2532 = vrot.lane.b32.xlu0 %v2068, 111
  %v2533 = vpop.permute.xlu0 %2532
  %2534 = vrot.lane.b32.xlu0 %v2072, 111
  %v2535 = vpop.permute.xlu0 %2534
  %2536 = vrot.lane.b32.xlu0 %v2069, 111
  %v2537 = vpop.permute.xlu0 %2536
  %2538 = vrot.lane.b32.xlu0 %v2073, 111
  %v2539 = vpop.permute.xlu0 %2538
  %v2540 = vsel %vm841, %v2533, %v2537
  %v2541 = vsel %vm841, %v2535, %v2539
  %v2542 = vsel %vm841, %v2529, %v2533
  %v2543 = vsel %vm841, %v2531, %v2535
  %v2544 = vsel %vm841, %v2525, %v2529
  %v2545 = vsel %vm841, %v2527, %v2531
  %v2546 = vsel %vm841, %v2537, %v2525
  %v2547 = vsel %vm841, %v2539, %v2527
  %v2548 = vld [vmem:[%s846] ss:$8 sm:$0xf]
  %v2550 = vlaneseq
  %v2551 = vshrl.u32 %v2550, 7
  %v2552 = vsub.s32 0, %v2551
  %v2553 = vrot.slane %v2548, %v2552
  %v2554 = vlaneseq
  %v2555 = vshrl.u32 %v2554, 7
  %v2556 = vsub.s32 1, %v2555
  %v2557 = vrot.slane %v2548, %v2556
  %v2558 = vlaneseq
  %v2559 = vshrl.u32 %v2558, 7
  %v2560 = vsub.s32 2, %v2559
  %v2561 = vrot.slane %v2548, %v2560
  %v2562 = vlaneseq
  %v2563 = vshrl.u32 %v2562, 7
  %v2564 = vsub.s32 3, %v2563
  %v2565 = vrot.slane %v2548, %v2564
  %v2570 = vmul.f32 %v2544, %v2553
  %v2571 = vmul.f32 %v2542, %v2557
  %v2572 = vmul.f32 %v2540, %v2561
  %v2573 = vmul.f32 %v2546, %v2565
  %v2574 = vmul.f32 %v2545, %v2553
  %v2575 = vmul.f32 %v2543, %v2557
  %v2576 = vmul.f32 %v2541, %v2561
  %v2577 = vmul.f32 %v2547, %v2565
  %v2578 = vpack.c.bf16 %v2574, %v2570
  %v2579 = vpack.c.bf16 %v2575, %v2571
  %v2580 = vpack.c.bf16 %v2576, %v2572
  %v2581 = vpack.c.bf16 %v2577, %v2573
  %2582 = vst [vmem:[#allocation2 + $0x100] sm:$0xff] %v2578
  %2583 = vst [vmem:[#allocation2 + $0x108] sm:$0xff] %v2579
  %2584 = vst [vmem:[#allocation2 + $0x110] sm:$0xff] %v2580
  %2585 = vst [vmem:[#allocation2 + $0x118] sm:$0xff] %v2581
  %v2586 = vld [vmem:[#allocation2] sm:$0xff]
  %v2587 = vld [vmem:[#allocation2 + $0x8] sm:$0xff]
  %v2588 = vld [vmem:[#allocation2 + $0x10] sm:$0xff]
  %v2589 = vld [vmem:[#allocation2 + $0x18] sm:$0xff]
  %v2590 = vld [vmem:[#allocation2 + $0x20] sm:$0xff]
  %v2591 = vld [vmem:[#allocation2 + $0x28] sm:$0xff]
  %v2592 = vld [vmem:[#allocation2 + $0x30] sm:$0xff]
  %v2593 = vld [vmem:[#allocation2 + $0x38] sm:$0xff]
  %v2594 = vld [vmem:[#allocation2 + $0x40] sm:$0xff]
  %v2595 = vld [vmem:[#allocation2 + $0x48] sm:$0xff]
  %v2596 = vld [vmem:[#allocation2 + $0x50] sm:$0xff]
  %v2597 = vld [vmem:[#allocation2 + $0x58] sm:$0xff]
  %v2598 = vld [vmem:[#allocation2 + $0x60] sm:$0xff]
  %v2599 = vld [vmem:[#allocation2 + $0x68] sm:$0xff]
  %v2600 = vld [vmem:[#allocation2 + $0x70] sm:$0xff]
  %v2601 = vld [vmem:[#allocation2 + $0x78] sm:$0xff]
  %v2602 = vld [vmem:[#allocation2 + $0x80] sm:$0xff]
  %v2603 = vld [vmem:[#allocation2 + $0x88] sm:$0xff]
  %v2604 = vld [vmem:[#allocation2 + $0x90] sm:$0xff]
  %v2605 = vld [vmem:[#allocation2 + $0x98] sm:$0xff]
  %v2606 = vld [vmem:[#allocation2 + $0xa0] sm:$0xff]
  %v2607 = vld [vmem:[#allocation2 + $0xa8] sm:$0xff]
  %v2608 = vld [vmem:[#allocation2 + $0xb0] sm:$0xff]
  %v2609 = vld [vmem:[#allocation2 + $0xb8] sm:$0xff]
  %v2610 = vld [vmem:[#allocation2 + $0xc0] sm:$0xff]
  %v2611 = vld [vmem:[#allocation2 + $0xc8] sm:$0xff]
  %v2612 = vld [vmem:[#allocation2 + $0xd0] sm:$0xff]
  %v2613 = vld [vmem:[#allocation2 + $0xd8] sm:$0xff]
  %v2614 = vld [vmem:[#allocation2 + $0xe0] sm:$0xff]
  %v2615 = vld [vmem:[#allocation2 + $0xe8] sm:$0xff]
  %v2616 = vld [vmem:[#allocation2 + $0xf0] sm:$0xff]
  %v2617 = vld [vmem:[#allocation2 + $0xf8] sm:$0xff]
  %v2618 = vld [vmem:[#allocation2 + $0x100] sm:$0xff]
  %v2619 = vld [vmem:[#allocation2 + $0x108] sm:$0xff]
  %v2620 = vld [vmem:[#allocation2 + $0x110] sm:$0xff]
  %v2621 = vld [vmem:[#allocation2 + $0x118] sm:$0xff]
  %2623 = vset.pattern.permute.xlu0 0
  %2624 = vperm.xlu0 %2623, %v2078
  %v2625 = vpop.permute.xlu0 %2624
  %2628 = vset.pattern.permute.xlu0 0
  %2629 = vperm.xlu0 %2628, %v2079
  %v2630 = vpop.permute.xlu0 %2629
  %2633 = vset.pattern.permute.xlu0 0
  %2634 = vperm.xlu0 %2633, %v2080
  %v2635 = vpop.permute.xlu0 %2634
  %2638 = vset.pattern.permute.xlu0 0
  %2639 = vperm.xlu0 %2638, %v2081
  %v2640 = vpop.permute.xlu0 %2639
  %v2646 = vunpack.c.l.b16 %v2074
  %v2647 = vunpack.c.h.b16 %v2074
  %v2648 = vunpack.c.l.b16 %v2075
  %v2649 = vunpack.c.h.b16 %v2075
  %v2650 = vunpack.c.l.b16 %v2076
  %v2651 = vunpack.c.h.b16 %v2076
  %v2652 = vunpack.c.l.b16 %v2077
  %v2653 = vunpack.c.h.b16 %v2077
  %v2654 = vpack.c.b16 %v2648, %v2646
  %v2655 = vpack.c.b16 %v2649, %v2647
  %v2656 = vpack.c.b16 %v2652, %v2650
  %v2657 = vpack.c.b16 %v2653, %v2651
  %vm2660 = vcmask 130048
  %v2662 = vsel %vm2660, %v2655, 0
  %v2665 = vsel %vm2660, %v2657, 0
  %2667 = vmatprep.subr.bf16.mxu0 %v2587
  %2668 = vmatpush1.bf16.msra.mxu0 %v2586
  %2669 = vmatprep.subr.bf16.mxu0 %v2591
  %2670 = vmatpush1.bf16.msra.mxu0 %v2590
  %2671 = vmatprep.subr.bf16.mxu0 %v2595
  %2672 = vmatpush1.bf16.msra.mxu0 %v2594
  %2673 = vmatprep.subr.bf16.mxu0 %v2599
  %2674 = vmatpush1.bf16.msra.mxu0 %v2598
  %2675 = vmatprep.subr.bf16.mxu0 %v2603
  %2676 = vmatpush1.bf16.msra.mxu0 %v2602
  %2677 = vmatprep.subr.bf16.mxu0 %v2607
  %2678 = vmatpush1.bf16.msra.mxu0 %v2606
  %2679 = vmatprep.subr.bf16.mxu0 %v2611
  %2680 = vmatpush1.bf16.msra.mxu0 %v2610
  %2681 = vmatprep.subr.bf16.mxu0 %v2615
  %2682 = vmatpush1.bf16.msra.mxu0 %v2614
  %2683 = vmatprep.subr.bf16.mxu0 %v2619
  %2684 = vmatpush1.bf16.msra.mxu0 %v2618
  %2685 = vmatprep.subr.bf16.mxu0 0
  %2686 = vmatpush1.bf16.msra.mxu0 0
  %2687 = vmatprep.subr.bf16.mxu0 0
  %2688 = vmatpush1.bf16.msra.mxu0 0
  %2689 = vmatprep.subr.bf16.mxu0 0
  %2690 = vmatpush1.bf16.msra.mxu0 0
  %2691 = vmatprep.subr.bf16.mxu0 0
  %2692 = vmatpush1.bf16.msra.mxu0 0
  %2693 = vmatprep.subr.bf16.mxu0 0
  %2694 = vmatpush1.bf16.msra.mxu0 0
  %2695 = vmatprep.subr.bf16.mxu0 0
  %2696 = vmatpush1.bf16.msra.mxu0 0
  %2697 = vmatprep.subr.bf16.mxu0 0
  %2698 = vmatpush1.bf16.msra.mxu0 0
  %2699 = vmatprep.mubr.bf16.mxu0 %v2662
  %2700 = vmatmul.mubr.bf16.gmra.mrb[0].mxu0 %v2654
  %v2701 = vpop.f32.mrb[0].mxu0
  %v2702 = vadd.f32 %v2625, %v2701
  %v2703 = vpop.f32.mrb[0].mxu0
  %v2704 = vadd.f32 %v2625, %v2703
  %v2705 = vpop.f32.mrb[0].mxu0
  %v2706 = vadd.f32 %v2630, %v2705
  %v2707 = vpop.f32.mrb[0].mxu0
  %v2708 = vadd.f32 %v2630, %v2707
  %2709 = vmatprep.mubr.bf16.mxu0 %v2665
  %2710 = vmatmul.mubr.bf16.gmra.mrb[0].mxu0 %v2656
  %v2711 = vpop.f32.mrb[0].mxu0
  %v2712 = vadd.f32 %v2635, %v2711
  %v2713 = vpop.f32.mrb[0].mxu0
  %v2714 = vadd.f32 %v2635, %v2713
  %v2715 = vpop.f32.mrb[0].mxu0
  %v2716 = vadd.f32 %v2640, %v2715
  %v2717 = vpop.f32.mrb[0].mxu0
  %v2718 = vadd.f32 %v2640, %v2717
  %2719 = vdwg.mxu0
  %2720 = vmatprep.subr.bf16.mxu0 %v2589
  %2721 = vmatpush1.bf16.msra.mxu0 %v2588
  %2722 = vmatprep.subr.bf16.mxu0 %v2593
  %2723 = vmatpush1.bf16.msra.mxu0 %v2592
  %2724 = vmatprep.subr.bf16.mxu0 %v2597
  %2725 = vmatpush1.bf16.msra.mxu0 %v2596
  %2726 = vmatprep.subr.bf16.mxu0 %v2601
  %2727 = vmatpush1.bf16.msra.mxu0 %v2600
  %2728 = vmatprep.subr.bf16.mxu0 %v2605
  %2729 = vmatpush1.bf16.msra.mxu0 %v2604
  %2730 = vmatprep.subr.bf16.mxu0 %v2609
  %2731 = vmatpush1.bf16.msra.mxu0 %v2608
  %2732 = vmatprep.subr.bf16.mxu0 %v2613
  %2733 = vmatpush1.bf16.msra.mxu0 %v2612
  %2734 = vmatprep.subr.bf16.mxu0 %v2617
  %2735 = vmatpush1.bf16.msra.mxu0 %v2616
  %2736 = vmatprep.subr.bf16.mxu0 %v2621
  %2737 = vmatpush1.bf16.msra.mxu0 %v2620
  %2738 = vmatprep.subr.bf16.mxu0 0
  %2739 = vmatpush1.bf16.msra.mxu0 0
  %2740 = vmatprep.subr.bf16.mxu0 0
  %2741 = vmatpush1.bf16.msra.mxu0 0
  %2742 = vmatprep.subr.bf16.mxu0 0
  %2743 = vmatpush1.bf16.msra.mxu0 0
  %2744 = vmatprep.subr.bf16.mxu0 0
  %2745 = vmatpush1.bf16.msra.mxu0 0
  %2746 = vmatprep.subr.bf16.mxu0 0
  %2747 = vmatpush1.bf16.msra.mxu0 0
  %2748 = vmatprep.subr.bf16.mxu0 0
  %2749 = vmatpush1.bf16.msra.mxu0 0
  %2750 = vmatprep.subr.bf16.mxu0 0
  %2751 = vmatpush1.bf16.msra.mxu0 0
  %2752 = vmatprep.mubr.bf16.mxu0 %v2662
  %2753 = vmatmul.mubr.bf16.gmra.mrb[0].mxu0 %v2654
  %v2754 = vpop.f32.mrb[0].mxu0
  %v2755 = vadd.f32 %v2625, %v2754
  %v2756 = vpop.f32.mrb[0].mxu0
  %v2757 = vadd.f32 %v2625, %v2756
  %v2758 = vpop.f32.mrb[0].mxu0
  %v2759 = vadd.f32 %v2630, %v2758
  %v2760 = vpop.f32.mrb[0].mxu0
  %v2761 = vadd.f32 %v2630, %v2760
  %2762 = vmatprep.mubr.bf16.mxu0 %v2665
  %2763 = vmatmul.mubr.bf16.gmra.mrb[0].mxu0 %v2656
  %v2764 = vpop.f32.mrb[0].mxu0
  %v2765 = vadd.f32 %v2635, %v2764
  %v2766 = vpop.f32.mrb[0].mxu0
  %v2767 = vadd.f32 %v2635, %v2766
  %v2768 = vpop.f32.mrb[0].mxu0
  %v2769 = vadd.f32 %v2640, %v2768
  %v2770 = vpop.f32.mrb[0].mxu0
  %v2771 = vadd.f32 %v2640, %v2770
  %2772 = vdwg.mxu0
  %v2773 = vadd.f32 %v961, %v2702
  %v2774 = vadd.f32 %v962, %v2704
  %v2775 = vadd.f32 %v963, %v2755
  %v2776 = vadd.f32 %v964, %v2757
  %v2777 = vadd.f32 %v965, %v2706
  %v2778 = vadd.f32 %v966, %v2708
  %v2779 = vadd.f32 %v967, %v2759
  %v2780 = vadd.f32 %v968, %v2761
  %v2781 = vadd.f32 %v969, %v2712
  %v2782 = vadd.f32 %v970, %v2714
  %v2783 = vadd.f32 %v971, %v2765
  %v2784 = vadd.f32 %v972, %v2767
  %v2785 = vadd.f32 %v973, %v2716
  %v2786 = vadd.f32 %v974, %v2718
  %v2787 = vadd.f32 %v975, %v2769
  %v2788 = vadd.f32 %v976, %v2771
  %s2789 = scalar_lea.vmem %s4, 24
  %v2790 = vld [vmem:[%s2789] sm:$0xff]
  %v2791 = vld [vmem:[%s2789 + $0x8] sm:$0xf]
  %v2792 = vld [vmem:[%s2789 + $0xc] sm:$0xff]
  %v2793 = vld [vmem:[%s2789 + $0x14] sm:$0xf]
  %s2794 = scalar_lea.vmem %s5, 16
  %v2795 = vld [vmem:[%s2794] sm:$0xff]
  %v2796 = vld [vmem:[%s2794 + $0x8] sm:$0xff]
  %2797 = vrot.lane.b32.xlu0 %v2773, 17
  %v2798 = vpop.permute.xlu0 %2797
  %2799 = vrot.lane.b32.xlu0 %v2777, 17
  %v2800 = vpop.permute.xlu0 %2799
  %2801 = vrot.lane.b32.xlu0 %v2781, 17
  %v2802 = vpop.permute.xlu0 %2801
  %2803 = vrot.lane.b32.xlu0 %v2785, 17
  %v2804 = vpop.permute.xlu0 %2803
  %2805 = vrot.lane.b32.xlu0 %v2774, 17
  %v2806 = vpop.permute.xlu0 %2805
  %2807 = vrot.lane.b32.xlu0 %v2778, 17
  %v2808 = vpop.permute.xlu0 %2807
  %2809 = vrot.lane.b32.xlu0 %v2782, 17
  %v2810 = vpop.permute.xlu0 %2809
  %2811 = vrot.lane.b32.xlu0 %v2786, 17
  %v2812 = vpop.permute.xlu0 %2811
  %2813 = vrot.lane.b32.xlu0 %v2775, 17
  %v2814 = vpop.permute.xlu0 %2813
  %2815 = vrot.lane.b32.xlu0 %v2779, 17
  %v2816 = vpop.permute.xlu0 %2815
  %2817 = vrot.lane.b32.xlu0 %v2783, 17
  %v2818 = vpop.permute.xlu0 %2817
  %2819 = vrot.lane.b32.xlu0 %v2787, 17
  %v2820 = vpop.permute.xlu0 %2819
  %2821 = vrot.lane.b32.xlu0 %v2776, 17
  %v2822 = vpop.permute.xlu0 %2821
  %2823 = vrot.lane.b32.xlu0 %v2780, 17
  %v2824 = vpop.permute.xlu0 %2823
  %2825 = vrot.lane.b32.xlu0 %v2784, 17
  %v2826 = vpop.permute.xlu0 %2825
  %2827 = vrot.lane.b32.xlu0 %v2788, 17
  %v2828 = vpop.permute.xlu0 %2827
  %v2829 = vsel %vm78, %v2814, %v2822
  %v2830 = vsel %vm78, %v2816, %v2824
  %v2831 = vsel %vm78, %v2818, %v2826
  %v2832 = vsel %vm78, %v2820, %v2828
  %v2833 = vsel %vm78, %v2806, %v2814
  %v2834 = vsel %vm78, %v2808, %v2816
  %v2835 = vsel %vm78, %v2810, %v2818
  %v2836 = vsel %vm78, %v2812, %v2820
  %v2837 = vsel %vm78, %v2798, %v2806
  %v2838 = vsel %vm78, %v2800, %v2808
  %v2839 = vsel %vm78, %v2802, %v2810
  %v2840 = vsel %vm78, %v2804, %v2812
  %v2841 = vsel %vm78, %v2822, %v2798
  %v2842 = vsel %vm78, %v2824, %v2800
  %v2843 = vsel %vm78, %v2826, %v2802
  %v2844 = vsel %vm78, %v2828, %v2804
  %v2845 = vld [vmem:[%s1] ss:$8 sm:$0xf]
  %v2847 = vlaneseq
  %v2848 = vshrl.u32 %v2847, 7
  %v2849 = vsub.s32 0, %v2848
  %v2850 = vrot.slane %v2845, %v2849
  %v2851 = vlaneseq
  %v2852 = vshrl.u32 %v2851, 7
  %v2853 = vsub.s32 1, %v2852
  %v2854 = vrot.slane %v2845, %v2853
  %v2855 = vlaneseq
  %v2856 = vshrl.u32 %v2855, 7
  %v2857 = vsub.s32 2, %v2856
  %v2858 = vrot.slane %v2845, %v2857
  %v2859 = vlaneseq
  %v2860 = vshrl.u32 %v2859, 7
  %v2861 = vsub.s32 3, %v2860
  %v2862 = vrot.slane %v2845, %v2861
  %v2867 = vmul.f32 %v2841, %v2850
  %v2868 = vmul.f32 %v2837, %v2854
  %v2869 = vmul.f32 %v2833, %v2858
  %v2870 = vmul.f32 %v2829, %v2862
  %v2871 = vmul.f32 %v2842, %v2850
  %v2872 = vmul.f32 %v2838, %v2854
  %v2873 = vmul.f32 %v2834, %v2858
  %v2874 = vmul.f32 %v2830, %v2862
  %v2875 = vmul.f32 %v2843, %v2850
  %v2876 = vmul.f32 %v2839, %v2854
  %v2877 = vmul.f32 %v2835, %v2858
  %v2878 = vmul.f32 %v2831, %v2862
  %v2879 = vmul.f32 %v2844, %v2850
  %v2880 = vmul.f32 %v2840, %v2854
  %v2881 = vmul.f32 %v2836, %v2858
  %v2882 = vmul.f32 %v2832, %v2862
  %v2883 = vpack.c.bf16 %v2871, %v2867
  %v2884 = vpack.c.bf16 %v2872, %v2868
  %v2885 = vpack.c.bf16 %v2873, %v2869
  %v2886 = vpack.c.bf16 %v2874, %v2870
  %v2887 = vpack.c.bf16 %v2879, %v2875
  %v2888 = vpack.c.bf16 %v2880, %v2876
  %v2889 = vpack.c.bf16 %v2881, %v2877
  %v2890 = vpack.c.bf16 %v2882, %v2878
  %2891 = vst [vmem:[#allocation2] sm:$0xff] %v2883
  %2892 = vst [vmem:[#allocation2 + $0x8] sm:$0xff] %v2884
  %2893 = vst [vmem:[#allocation2 + $0x10] sm:$0xff] %v2885
  %2894 = vst [vmem:[#allocation2 + $0x18] sm:$0xff] %v2886
  %2895 = vst [vmem:[#allocation2 + $0x20] sm:$0xff] %v2887
  %2896 = vst [vmem:[#allocation2 + $0x28] sm:$0xff] %v2888
  %2897 = vst [vmem:[#allocation2 + $0x30] sm:$0xff] %v2889
  %2898 = vst [vmem:[#allocation2 + $0x38] sm:$0xff] %v2890
  %2899 = vrot.lane.b32.xlu0 %v2773, 16
  %v2900 = vpop.permute.xlu0 %2899
  %2901 = vrot.lane.b32.xlu0 %v2777, 16
  %v2902 = vpop.permute.xlu0 %2901
  %2903 = vrot.lane.b32.xlu0 %v2781, 16
  %v2904 = vpop.permute.xlu0 %2903
  %2905 = vrot.lane.b32.xlu0 %v2785, 16
  %v2906 = vpop.permute.xlu0 %2905
  %2907 = vrot.lane.b32.xlu0 %v2774, 16
  %v2908 = vpop.permute.xlu0 %2907
  %2909 = vrot.lane.b32.xlu0 %v2778, 16
  %v2910 = vpop.permute.xlu0 %2909
  %2911 = vrot.lane.b32.xlu0 %v2782, 16
  %v2912 = vpop.permute.xlu0 %2911
  %2913 = vrot.lane.b32.xlu0 %v2786, 16
  %v2914 = vpop.permute.xlu0 %2913
  %2915 = vrot.lane.b32.xlu0 %v2775, 16
  %v2916 = vpop.permute.xlu0 %2915
  %2917 = vrot.lane.b32.xlu0 %v2779, 16
  %v2918 = vpop.permute.xlu0 %2917
  %2919 = vrot.lane.b32.xlu0 %v2783, 16
  %v2920 = vpop.permute.xlu0 %2919
  %2921 = vrot.lane.b32.xlu0 %v2787, 16
  %v2922 = vpop.permute.xlu0 %2921
  %2923 = vrot.lane.b32.xlu0 %v2776, 16
  %v2924 = vpop.permute.xlu0 %2923
  %2925 = vrot.lane.b32.xlu0 %v2780, 16
  %v2926 = vpop.permute.xlu0 %2925
  %2927 = vrot.lane.b32.xlu0 %v2784, 16
  %v2928 = vpop.permute.xlu0 %2927
  %2929 = vrot.lane.b32.xlu0 %v2788, 16
  %v2930 = vpop.permute.xlu0 %2929
  %v2931 = vsel %vm169, %v2916, %v2924
  %v2932 = vsel %vm169, %v2918, %v2926
  %v2933 = vsel %vm169, %v2920, %v2928
  %v2934 = vsel %vm169, %v2922, %v2930
  %v2935 = vsel %vm169, %v2908, %v2916
  %v2936 = vsel %vm169, %v2910, %v2918
  %v2937 = vsel %vm169, %v2912, %v2920
  %v2938 = vsel %vm169, %v2914, %v2922
  %v2939 = vsel %vm169, %v2900, %v2908
  %v2940 = vsel %vm169, %v2902, %v2910
  %v2941 = vsel %vm169, %v2904, %v2912
  %v2942 = vsel %vm169, %v2906, %v2914
  %v2943 = vsel %vm169, %v2924, %v2900
  %v2944 = vsel %vm169, %v2926, %v2902
  %v2945 = vsel %vm169, %v2928, %v2904
  %v2946 = vsel %vm169, %v2930, %v2906
  %v2947 = vld [vmem:[%s174] ss:$8 sm:$0xf]
  %v2949 = vlaneseq
  %v2950 = vshrl.u32 %v2949, 7
  %v2951 = vsub.s32 0, %v2950
  %v2952 = vrot.slane %v2947, %v2951
  %v2953 = vlaneseq
  %v2954 = vshrl.u32 %v2953, 7
  %v2955 = vsub.s32 1, %v2954
  %v2956 = vrot.slane %v2947, %v2955
  %v2957 = vlaneseq
  %v2958 = vshrl.u32 %v2957, 7
  %v2959 = vsub.s32 2, %v2958
  %v2960 = vrot.slane %v2947, %v2959
  %v2961 = vlaneseq
  %v2962 = vshrl.u32 %v2961, 7
  %v2963 = vsub.s32 3, %v2962
  %v2964 = vrot.slane %v2947, %v2963
  %v2969 = vmul.f32 %v2943, %v2952
  %v2970 = vmul.f32 %v2939, %v2956
  %v2971 = vmul.f32 %v2935, %v2960
  %v2972 = vmul.f32 %v2931, %v2964
  %v2973 = vmul.f32 %v2944, %v2952
  %v2974 = vmul.f32 %v2940, %v2956
  %v2975 = vmul.f32 %v2936, %v2960
  %v2976 = vmul.f32 %v2932, %v2964
  %v2977 = vmul.f32 %v2945, %v2952
  %v2978 = vmul.f32 %v2941, %v2956
  %v2979 = vmul.f32 %v2937, %v2960
  %v2980 = vmul.f32 %v2933, %v2964
  %v2981 = vmul.f32 %v2946, %v2952
  %v2982 = vmul.f32 %v2942, %v2956
  %v2983 = vmul.f32 %v2938, %v2960
  %v2984 = vmul.f32 %v2934, %v2964
  %v2985 = vpack.c.bf16 %v2973, %v2969
  %v2986 = vpack.c.bf16 %v2974, %v2970
  %v2987 = vpack.c.bf16 %v2975, %v2971
  %v2988 = vpack.c.bf16 %v2976, %v2972
  %v2989 = vpack.c.bf16 %v2981, %v2977
  %v2990 = vpack.c.bf16 %v2982, %v2978
  %v2991 = vpack.c.bf16 %v2983, %v2979
  %v2992 = vpack.c.bf16 %v2984, %v2980
  %2993 = vst [vmem:[#allocation2 + $0x40] sm:$0xff] %v2985
  %2994 = vst [vmem:[#allocation2 + $0x48] sm:$0xff] %v2986
  %2995 = vst [vmem:[#allocation2 + $0x50] sm:$0xff] %v2987
  %2996 = vst [vmem:[#allocation2 + $0x58] sm:$0xff] %v2988
  %2997 = vst [vmem:[#allocation2 + $0x60] sm:$0xff] %v2989
  %2998 = vst [vmem:[#allocation2 + $0x68] sm:$0xff] %v2990
  %2999 = vst [vmem:[#allocation2 + $0x70] sm:$0xff] %v2991
  %3000 = vst [vmem:[#allocation2 + $0x78] sm:$0xff] %v2992
  %3001 = vrot.lane.b32.xlu0 %v2773, 15
  %v3002 = vpop.permute.xlu0 %3001
  %3003 = vrot.lane.b32.xlu0 %v2777, 15
  %v3004 = vpop.permute.xlu0 %3003
  %3005 = vrot.lane.b32.xlu0 %v2781, 15
  %v3006 = vpop.permute.xlu0 %3005
  %3007 = vrot.lane.b32.xlu0 %v2785, 15
  %v3008 = vpop.permute.xlu0 %3007
  %3009 = vrot.lane.b32.xlu0 %v2774, 15
  %v3010 = vpop.permute.xlu0 %3009
  %3011 = vrot.lane.b32.xlu0 %v2778, 15
  %v3012 = vpop.permute.xlu0 %3011
  %3013 = vrot.lane.b32.xlu0 %v2782, 15
  %v3014 = vpop.permute.xlu0 %3013
  %3015 = vrot.lane.b32.xlu0 %v2786, 15
  %v3016 = vpop.permute.xlu0 %3015
  %3017 = vrot.lane.b32.xlu0 %v2775, 15
  %v3018 = vpop.permute.xlu0 %3017
  %3019 = vrot.lane.b32.xlu0 %v2779, 15
  %v3020 = vpop.permute.xlu0 %3019
  %3021 = vrot.lane.b32.xlu0 %v2783, 15
  %v3022 = vpop.permute.xlu0 %3021
  %3023 = vrot.lane.b32.xlu0 %v2787, 15
  %v3024 = vpop.permute.xlu0 %3023
  %3025 = vrot.lane.b32.xlu0 %v2776, 15
  %v3026 = vpop.permute.xlu0 %3025
  %3027 = vrot.lane.b32.xlu0 %v2780, 15
  %v3028 = vpop.permute.xlu0 %3027
  %3029 = vrot.lane.b32.xlu0 %v2784, 15
  %v3030 = vpop.permute.xlu0 %3029
  %3031 = vrot.lane.b32.xlu0 %v2788, 15
  %v3032 = vpop.permute.xlu0 %3031
  %v3033 = vsel %vm273, %v3018, %v3026
  %v3034 = vsel %vm273, %v3020, %v3028
  %v3035 = vsel %vm273, %v3022, %v3030
  %v3036 = vsel %vm273, %v3024, %v3032
  %v3037 = vsel %vm273, %v3010, %v3018
  %v3038 = vsel %vm273, %v3012, %v3020
  %v3039 = vsel %vm273, %v3014, %v3022
  %v3040 = vsel %vm273, %v3016, %v3024
  %v3041 = vsel %vm273, %v3002, %v3010
  %v3042 = vsel %vm273, %v3004, %v3012
  %v3043 = vsel %vm273, %v3006, %v3014
  %v3044 = vsel %vm273, %v3008, %v3016
  %v3045 = vsel %vm273, %v3026, %v3002
  %v3046 = vsel %vm273, %v3028, %v3004
  %v3047 = vsel %vm273, %v3030, %v3006
  %v3048 = vsel %vm273, %v3032, %v3008
  %v3049 = vld [vmem:[%s278] ss:$8 sm:$0xf]
  %v3051 = vlaneseq
  %v3052 = vshrl.u32 %v3051, 7
  %v3053 = vsub.s32 0, %v3052
  %v3054 = vrot.slane %v3049, %v3053
  %v3055 = vlaneseq
  %v3056 = vshrl.u32 %v3055, 7
  %v3057 = vsub.s32 1, %v3056
  %v3058 = vrot.slane %v3049, %v3057
  %v3059 = vlaneseq
  %v3060 = vshrl.u32 %v3059, 7
  %v3061 = vsub.s32 2, %v3060
  %v3062 = vrot.slane %v3049, %v3061
  %v3063 = vlaneseq
  %v3064 = vshrl.u32 %v3063, 7
  %v3065 = vsub.s32 3, %v3064
  %v3066 = vrot.slane %v3049, %v3065
  %v3071 = vmul.f32 %v3045, %v3054
  %v3072 = vmul.f32 %v3041, %v3058
  %v3073 = vmul.f32 %v3037, %v3062
  %v3074 = vmul.f32 %v3033, %v3066
  %v3075 = vmul.f32 %v3046, %v3054
  %v3076 = vmul.f32 %v3042, %v3058
  %v3077 = vmul.f32 %v3038, %v3062
  %v3078 = vmul.f32 %v3034, %v3066
  %v3079 = vmul.f32 %v3047, %v3054
  %v3080 = vmul.f32 %v3043, %v3058
  %v3081 = vmul.f32 %v3039, %v3062
  %v3082 = vmul.f32 %v3035, %v3066
  %v3083 = vmul.f32 %v3048, %v3054
  %v3084 = vmul.f32 %v3044, %v3058
  %v3085 = vmul.f32 %v3040, %v3062
  %v3086 = vmul.f32 %v3036, %v3066
  %v3087 = vpack.c.bf16 %v3075, %v3071
  %v3088 = vpack.c.bf16 %v3076, %v3072
  %v3089 = vpack.c.bf16 %v3077, %v3073
  %v3090 = vpack.c.bf16 %v3078, %v3074
  %v3091 = vpack.c.bf16 %v3083, %v3079
  %v3092 = vpack.c.bf16 %v3084, %v3080
  %v3093 = vpack.c.bf16 %v3085, %v3081
  %v3094 = vpack.c.bf16 %v3086, %v3082
  %3095 = vst [vmem:[#allocation2 + $0x80] sm:$0xff] %v3087
  %3096 = vst [vmem:[#allocation2 + $0x88] sm:$0xff] %v3088
  %3097 = vst [vmem:[#allocation2 + $0x90] sm:$0xff] %v3089
  %3098 = vst [vmem:[#allocation2 + $0x98] sm:$0xff] %v3090
  %3099 = vst [vmem:[#allocation2 + $0xa0] sm:$0xff] %v3091
  %3100 = vst [vmem:[#allocation2 + $0xa8] sm:$0xff] %v3092
  %3101 = vst [vmem:[#allocation2 + $0xb0] sm:$0xff] %v3093
  %3102 = vst [vmem:[#allocation2 + $0xb8] sm:$0xff] %v3094
  %3103 = vrot.lane.b32.xlu0 %v2773, 1
  %v3104 = vpop.permute.xlu0 %3103
  %3105 = vrot.lane.b32.xlu0 %v2777, 1
  %v3106 = vpop.permute.xlu0 %3105
  %3107 = vrot.lane.b32.xlu0 %v2781, 1
  %v3108 = vpop.permute.xlu0 %3107
  %3109 = vrot.lane.b32.xlu0 %v2785, 1
  %v3110 = vpop.permute.xlu0 %3109
  %3111 = vrot.lane.b32.xlu0 %v2774, 1
  %v3112 = vpop.permute.xlu0 %3111
  %3113 = vrot.lane.b32.xlu0 %v2778, 1
  %v3114 = vpop.permute.xlu0 %3113
  %3115 = vrot.lane.b32.xlu0 %v2782, 1
  %v3116 = vpop.permute.xlu0 %3115
  %3117 = vrot.lane.b32.xlu0 %v2786, 1
  %v3118 = vpop.permute.xlu0 %3117
  %3119 = vrot.lane.b32.xlu0 %v2775, 1
  %v3120 = vpop.permute.xlu0 %3119
  %3121 = vrot.lane.b32.xlu0 %v2779, 1
  %v3122 = vpop.permute.xlu0 %3121
  %3123 = vrot.lane.b32.xlu0 %v2783, 1
  %v3124 = vpop.permute.xlu0 %3123
  %3125 = vrot.lane.b32.xlu0 %v2787, 1
  %v3126 = vpop.permute.xlu0 %3125
  %3127 = vrot.lane.b32.xlu0 %v2776, 1
  %v3128 = vpop.permute.xlu0 %3127
  %3129 = vrot.lane.b32.xlu0 %v2780, 1
  %v3130 = vpop.permute.xlu0 %3129
  %3131 = vrot.lane.b32.xlu0 %v2784, 1
  %v3132 = vpop.permute.xlu0 %3131
  %3133 = vrot.lane.b32.xlu0 %v2788, 1
  %v3134 = vpop.permute.xlu0 %3133
  %v3135 = vsel %vm377, %v3120, %v3128
  %v3136 = vsel %vm377, %v3122, %v3130
  %v3137 = vsel %vm377, %v3124, %v3132
  %v3138 = vsel %vm377, %v3126, %v3134
  %v3139 = vsel %vm377, %v3112, %v3120
  %v3140 = vsel %vm377, %v3114, %v3122
  %v3141 = vsel %vm377, %v3116, %v3124
  %v3142 = vsel %vm377, %v3118, %v3126
  %v3143 = vsel %vm377, %v3104, %v3112
  %v3144 = vsel %vm377, %v3106, %v3114
  %v3145 = vsel %vm377, %v3108, %v3116
  %v3146 = vsel %vm377, %v3110, %v3118
  %v3147 = vsel %vm377, %v3128, %v3104
  %v3148 = vsel %vm377, %v3130, %v3106
  %v3149 = vsel %vm377, %v3132, %v3108
  %v3150 = vsel %vm377, %v3134, %v3110
  %v3151 = vld [vmem:[%s382] ss:$8 sm:$0xf]
  %v3153 = vlaneseq
  %v3154 = vshrl.u32 %v3153, 7
  %v3155 = vsub.s32 0, %v3154
  %v3156 = vrot.slane %v3151, %v3155
  %v3157 = vlaneseq
  %v3158 = vshrl.u32 %v3157, 7
  %v3159 = vsub.s32 1, %v3158
  %v3160 = vrot.slane %v3151, %v3159
  %v3161 = vlaneseq
  %v3162 = vshrl.u32 %v3161, 7
  %v3163 = vsub.s32 2, %v3162
  %v3164 = vrot.slane %v3151, %v3163
  %v3165 = vlaneseq
  %v3166 = vshrl.u32 %v3165, 7
  %v3167 = vsub.s32 3, %v3166
  %v3168 = vrot.slane %v3151, %v3167
  %v3173 = vmul.f32 %v3147, %v3156
  %v3174 = vmul.f32 %v3143, %v3160
  %v3175 = vmul.f32 %v3139, %v3164
  %v3176 = vmul.f32 %v3135, %v3168
  %v3177 = vmul.f32 %v3148, %v3156
  %v3178 = vmul.f32 %v3144, %v3160
  %v3179 = vmul.f32 %v3140, %v3164
  %v3180 = vmul.f32 %v3136, %v3168
  %v3181 = vmul.f32 %v3149, %v3156
  %v3182 = vmul.f32 %v3145, %v3160
  %v3183 = vmul.f32 %v3141, %v3164
  %v3184 = vmul.f32 %v3137, %v3168
  %v3185 = vmul.f32 %v3150, %v3156
  %v3186 = vmul.f32 %v3146, %v3160
  %v3187 = vmul.f32 %v3142, %v3164
  %v3188 = vmul.f32 %v3138, %v3168
  %v3189 = vpack.c.bf16 %v3177, %v3173
  %v3190 = vpack.c.bf16 %v3178, %v3174
  %v3191 = vpack.c.bf16 %v3179, %v3175
  %v3192 = vpack.c.bf16 %v3180, %v3176
  %v3193 = vpack.c.bf16 %v3185, %v3181
  %v3194 = vpack.c.bf16 %v3186, %v3182
  %v3195 = vpack.c.bf16 %v3187, %v3183
  %v3196 = vpack.c.bf16 %v3188, %v3184
  %3197 = vst [vmem:[#allocation2 + $0xc0] sm:$0xff] %v3189
  %3198 = vst [vmem:[#allocation2 + $0xc8] sm:$0xff] %v3190
  %3199 = vst [vmem:[#allocation2 + $0xd0] sm:$0xff] %v3191
  %3200 = vst [vmem:[#allocation2 + $0xd8] sm:$0xff] %v3192
  %3201 = vst [vmem:[#allocation2 + $0xe0] sm:$0xff] %v3193
  %3202 = vst [vmem:[#allocation2 + $0xe8] sm:$0xff] %v3194
  %3203 = vst [vmem:[#allocation2 + $0xf0] sm:$0xff] %v3195
  %3204 = vst [vmem:[#allocation2 + $0xf8] sm:$0xff] %v3196
  %v3205 = vpack.c.bf16 %v2777, %v2773
  %v3206 = vpack.c.bf16 %v2778, %v2774
  %v3207 = vpack.c.bf16 %v2779, %v2775
  %v3208 = vpack.c.bf16 %v2780, %v2776
  %v3209 = vpack.c.bf16 %v2785, %v2781
  %v3210 = vpack.c.bf16 %v2786, %v2782
  %v3211 = vpack.c.bf16 %v2787, %v2783
  %v3212 = vpack.c.bf16 %v2788, %v2784
  %3213 = vst [vmem:[#allocation2 + $0x100] sm:$0xff] %v3205
  %3214 = vst [vmem:[#allocation2 + $0x108] sm:$0xff] %v3206
  %3215 = vst [vmem:[#allocation2 + $0x110] sm:$0xff] %v3207
  %3216 = vst [vmem:[#allocation2 + $0x118] sm:$0xff] %v3208
  %3217 = vst [vmem:[#allocation2 + $0x120] sm:$0xff] %v3209
  %3218 = vst [vmem:[#allocation2 + $0x128] sm:$0xff] %v3210
  %3219 = vst [vmem:[#allocation2 + $0x130] sm:$0xff] %v3211
  %3220 = vst [vmem:[#allocation2 + $0x138] sm:$0xff] %v3212
  %3221 = vrot.lane.b32.xlu0 %v2773, 127
  %v3222 = vpop.permute.xlu0 %3221
  %3223 = vrot.lane.b32.xlu0 %v2777, 127
  %v3224 = vpop.permute.xlu0 %3223
  %3225 = vrot.lane.b32.xlu0 %v2781, 127
  %v3226 = vpop.permute.xlu0 %3225
  %3227 = vrot.lane.b32.xlu0 %v2785, 127
  %v3228 = vpop.permute.xlu0 %3227
  %3229 = vrot.lane.b32.xlu0 %v2774, 127
  %v3230 = vpop.permute.xlu0 %3229
  %3231 = vrot.lane.b32.xlu0 %v2778, 127
  %v3232 = vpop.permute.xlu0 %3231
  %3233 = vrot.lane.b32.xlu0 %v2782, 127
  %v3234 = vpop.permute.xlu0 %3233
  %3235 = vrot.lane.b32.xlu0 %v2786, 127
  %v3236 = vpop.permute.xlu0 %3235
  %3237 = vrot.lane.b32.xlu0 %v2775, 127
  %v3238 = vpop.permute.xlu0 %3237
  %3239 = vrot.lane.b32.xlu0 %v2779, 127
  %v3240 = vpop.permute.xlu0 %3239
  %3241 = vrot.lane.b32.xlu0 %v2783, 127
  %v3242 = vpop.permute.xlu0 %3241
  %3243 = vrot.lane.b32.xlu0 %v2787, 127
  %v3244 = vpop.permute.xlu0 %3243
  %3245 = vrot.lane.b32.xlu0 %v2776, 127
  %v3246 = vpop.permute.xlu0 %3245
  %3247 = vrot.lane.b32.xlu0 %v2780, 127
  %v3248 = vpop.permute.xlu0 %3247
  %3249 = vrot.lane.b32.xlu0 %v2784, 127
  %v3250 = vpop.permute.xlu0 %3249
  %3251 = vrot.lane.b32.xlu0 %v2788, 127
  %v3252 = vpop.permute.xlu0 %3251
  %v3253 = vsel %vm529, %v3238, %v3246
  %v3254 = vsel %vm529, %v3240, %v3248
  %v3255 = vsel %vm529, %v3242, %v3250
  %v3256 = vsel %vm529, %v3244, %v3252
  %v3257 = vsel %vm529, %v3230, %v3238
  %v3258 = vsel %vm529, %v3232, %v3240
  %v3259 = vsel %vm529, %v3234, %v3242
  %v3260 = vsel %vm529, %v3236, %v3244
  %v3261 = vsel %vm529, %v3222, %v3230
  %v3262 = vsel %vm529, %v3224, %v3232
  %v3263 = vsel %vm529, %v3226, %v3234
  %v3264 = vsel %vm529, %v3228, %v3236
  %v3265 = vsel %vm529, %v3246, %v3222
  %v3266 = vsel %vm529, %v3248, %v3224
  %v3267 = vsel %vm529, %v3250, %v3226
  %v3268 = vsel %vm529, %v3252, %v3228
  %v3269 = vld [vmem:[%s534] ss:$8 sm:$0xf]
  %v3271 = vlaneseq
  %v3272 = vshrl.u32 %v3271, 7
  %v3273 = vsub.s32 0, %v3272
  %v3274 = vrot.slane %v3269, %v3273
  %v3275 = vlaneseq
  %v3276 = vshrl.u32 %v3275, 7
  %v3277 = vsub.s32 1, %v3276
  %v3278 = vrot.slane %v3269, %v3277
  %v3279 = vlaneseq
  %v3280 = vshrl.u32 %v3279, 7
  %v3281 = vsub.s32 2, %v3280
  %v3282 = vrot.slane %v3269, %v3281
  %v3283 = vlaneseq
  %v3284 = vshrl.u32 %v3283, 7
  %v3285 = vsub.s32 3, %v3284
  %v3286 = vrot.slane %v3269, %v3285
  %v3291 = vmul.f32 %v3261, %v3274
  %v3292 = vmul.f32 %v3257, %v3278
  %v3293 = vmul.f32 %v3253, %v3282
  %v3294 = vmul.f32 %v3265, %v3286
  %v3295 = vmul.f32 %v3262, %v3274
  %v3296 = vmul.f32 %v3258, %v3278
  %v3297 = vmul.f32 %v3254, %v3282
  %v3298 = vmul.f32 %v3266, %v3286
  %v3299 = vmul.f32 %v3263, %v3274
  %v3300 = vmul.f32 %v3259, %v3278
  %v3301 = vmul.f32 %v3255, %v3282
  %v3302 = vmul.f32 %v3267, %v3286
  %v3303 = vmul.f32 %v3264, %v3274
  %v3304 = vmul.f32 %v3260, %v3278
  %v3305 = vmul.f32 %v3256, %v3282
  %v3306 = vmul.f32 %v3268, %v3286
  %v3307 = vpack.c.bf16 %v3295, %v3291
  %v3308 = vpack.c.bf16 %v3296, %v3292
  %v3309 = vpack.c.bf16 %v3297, %v3293
  %v3310 = vpack.c.bf16 %v3298, %v3294
  %v3311 = vpack.c.bf16 %v3303, %v3299
  %v3312 = vpack.c.bf16 %v3304, %v3300
  %v3313 = vpack.c.bf16 %v3305, %v3301
  %v3314 = vpack.c.bf16 %v3306, %v3302
  %3315 = vst [vmem:[#allocation2 + $0x140] sm:$0xff] %v3307
  %3316 = vst [vmem:[#allocation2 + $0x148] sm:$0xff] %v3308
  %3317 = vst [vmem:[#allocation2 + $0x150] sm:$0xff] %v3309
  %3318 = vst [vmem:[#allocation2 + $0x158] sm:$0xff] %v3310
  %3319 = vst [vmem:[#allocation2 + $0x160] sm:$0xff] %v3311
  %3320 = vst [vmem:[#allocation2 + $0x168] sm:$0xff] %v3312
  %3321 = vst [vmem:[#allocation2 + $0x170] sm:$0xff] %v3313
  %3322 = vst [vmem:[#allocation2 + $0x178] sm:$0xff] %v3314
  %3323 = vrot.lane.b32.xlu0 %v2773, 113
  %v3324 = vpop.permute.xlu0 %3323
  %3325 = vrot.lane.b32.xlu0 %v2777, 113
  %v3326 = vpop.permute.xlu0 %3325
  %3327 = vrot.lane.b32.xlu0 %v2781, 113
  %v3328 = vpop.permute.xlu0 %3327
  %3329 = vrot.lane.b32.xlu0 %v2785, 113
  %v3330 = vpop.permute.xlu0 %3329
  %3331 = vrot.lane.b32.xlu0 %v2774, 113
  %v3332 = vpop.permute.xlu0 %3331
  %3333 = vrot.lane.b32.xlu0 %v2778, 113
  %v3334 = vpop.permute.xlu0 %3333
  %3335 = vrot.lane.b32.xlu0 %v2782, 113
  %v3336 = vpop.permute.xlu0 %3335
  %3337 = vrot.lane.b32.xlu0 %v2786, 113
  %v3338 = vpop.permute.xlu0 %3337
  %3339 = vrot.lane.b32.xlu0 %v2775, 113
  %v3340 = vpop.permute.xlu0 %3339
  %3341 = vrot.lane.b32.xlu0 %v2779, 113
  %v3342 = vpop.permute.xlu0 %3341
  %3343 = vrot.lane.b32.xlu0 %v2783, 113
  %v3344 = vpop.permute.xlu0 %3343
  %3345 = vrot.lane.b32.xlu0 %v2787, 113
  %v3346 = vpop.permute.xlu0 %3345
  %3347 = vrot.lane.b32.xlu0 %v2776, 113
  %v3348 = vpop.permute.xlu0 %3347
  %3349 = vrot.lane.b32.xlu0 %v2780, 113
  %v3350 = vpop.permute.xlu0 %3349
  %3351 = vrot.lane.b32.xlu0 %v2784, 113
  %v3352 = vpop.permute.xlu0 %3351
  %3353 = vrot.lane.b32.xlu0 %v2788, 113
  %v3354 = vpop.permute.xlu0 %3353
  %v3355 = vsel %vm633, %v3340, %v3348
  %v3356 = vsel %vm633, %v3342, %v3350
  %v3357 = vsel %vm633, %v3344, %v3352
  %v3358 = vsel %vm633, %v3346, %v3354
  %v3359 = vsel %vm633, %v3332, %v3340
  %v3360 = vsel %vm633, %v3334, %v3342
  %v3361 = vsel %vm633, %v3336, %v3344
  %v3362 = vsel %vm633, %v3338, %v3346
  %v3363 = vsel %vm633, %v3324, %v3332
  %v3364 = vsel %vm633, %v3326, %v3334
  %v3365 = vsel %vm633, %v3328, %v3336
  %v3366 = vsel %vm633, %v3330, %v3338
  %v3367 = vsel %vm633, %v3348, %v3324
  %v3368 = vsel %vm633, %v3350, %v3326
  %v3369 = vsel %vm633, %v3352, %v3328
  %v3370 = vsel %vm633, %v3354, %v3330
  %v3371 = vld [vmem:[%s638] ss:$8 sm:$0xf]
  %v3373 = vlaneseq
  %v3374 = vshrl.u32 %v3373, 7
  %v3375 = vsub.s32 0, %v3374
  %v3376 = vrot.slane %v3371, %v3375
  %v3377 = vlaneseq
  %v3378 = vshrl.u32 %v3377, 7
  %v3379 = vsub.s32 1, %v3378
  %v3380 = vrot.slane %v3371, %v3379
  %v3381 = vlaneseq
  %v3382 = vshrl.u32 %v3381, 7
  %v3383 = vsub.s32 2, %v3382
  %v3384 = vrot.slane %v3371, %v3383
  %v3385 = vlaneseq
  %v3386 = vshrl.u32 %v3385, 7
  %v3387 = vsub.s32 3, %v3386
  %v3388 = vrot.slane %v3371, %v3387
  %v3393 = vmul.f32 %v3363, %v3376
  %v3394 = vmul.f32 %v3359, %v3380
  %v3395 = vmul.f32 %v3355, %v3384
  %v3396 = vmul.f32 %v3367, %v3388
  %v3397 = vmul.f32 %v3364, %v3376
  %v3398 = vmul.f32 %v3360, %v3380
  %v3399 = vmul.f32 %v3356, %v3384
  %v3400 = vmul.f32 %v3368, %v3388
  %v3401 = vmul.f32 %v3365, %v3376
  %v3402 = vmul.f32 %v3361, %v3380
  %v3403 = vmul.f32 %v3357, %v3384
  %v3404 = vmul.f32 %v3369, %v3388
  %v3405 = vmul.f32 %v3366, %v3376
  %v3406 = vmul.f32 %v3362, %v3380
  %v3407 = vmul.f32 %v3358, %v3384
  %v3408 = vmul.f32 %v3370, %v3388
  %v3409 = vpack.c.bf16 %v3397, %v3393
  %v3410 = vpack.c.bf16 %v3398, %v3394
  %v3411 = vpack.c.bf16 %v3399, %v3395
  %v3412 = vpack.c.bf16 %v3400, %v3396
  %v3413 = vpack.c.bf16 %v3405, %v3401
  %v3414 = vpack.c.bf16 %v3406, %v3402
  %v3415 = vpack.c.bf16 %v3407, %v3403
  %v3416 = vpack.c.bf16 %v3408, %v3404
  %3417 = vst [vmem:[#allocation2 + $0x180] sm:$0xff] %v3409
  %3418 = vst [vmem:[#allocation2 + $0x188] sm:$0xff] %v3410
  %3419 = vst [vmem:[#allocation2 + $0x190] sm:$0xff] %v3411
  %3420 = vst [vmem:[#allocation2 + $0x198] sm:$0xff] %v3412
  %3421 = vst [vmem:[#allocation2 + $0x1a0] sm:$0xff] %v3413
  %3422 = vst [vmem:[#allocation2 + $0x1a8] sm:$0xff] %v3414
  %3423 = vst [vmem:[#allocation2 + $0x1b0] sm:$0xff] %v3415
  %3424 = vst [vmem:[#allocation2 + $0x1b8] sm:$0xff] %v3416
  %3425 = vrot.lane.b32.xlu0 %v2773, 112
  %v3426 = vpop.permute.xlu0 %3425
  %3427 = vrot.lane.b32.xlu0 %v2777, 112
  %v3428 = vpop.permute.xlu0 %3427
  %3429 = vrot.lane.b32.xlu0 %v2781, 112
  %v3430 = vpop.permute.xlu0 %3429
  %3431 = vrot.lane.b32.xlu0 %v2785, 112
  %v3432 = vpop.permute.xlu0 %3431
  %3433 = vrot.lane.b32.xlu0 %v2774, 112
  %v3434 = vpop.permute.xlu0 %3433
  %3435 = vrot.lane.b32.xlu0 %v2778, 112
  %v3436 = vpop.permute.xlu0 %3435
  %3437 = vrot.lane.b32.xlu0 %v2782, 112
  %v3438 = vpop.permute.xlu0 %3437
  %3439 = vrot.lane.b32.xlu0 %v2786, 112
  %v3440 = vpop.permute.xlu0 %3439
  %3441 = vrot.lane.b32.xlu0 %v2775, 112
  %v3442 = vpop.permute.xlu0 %3441
  %3443 = vrot.lane.b32.xlu0 %v2779, 112
  %v3444 = vpop.permute.xlu0 %3443
  %3445 = vrot.lane.b32.xlu0 %v2783, 112
  %v3446 = vpop.permute.xlu0 %3445
  %3447 = vrot.lane.b32.xlu0 %v2787, 112
  %v3448 = vpop.permute.xlu0 %3447
  %3449 = vrot.lane.b32.xlu0 %v2776, 112
  %v3450 = vpop.permute.xlu0 %3449
  %3451 = vrot.lane.b32.xlu0 %v2780, 112
  %v3452 = vpop.permute.xlu0 %3451
  %3453 = vrot.lane.b32.xlu0 %v2784, 112
  %v3454 = vpop.permute.xlu0 %3453
  %3455 = vrot.lane.b32.xlu0 %v2788, 112
  %v3456 = vpop.permute.xlu0 %3455
  %v3457 = vsel %vm737, %v3442, %v3450
  %v3458 = vsel %vm737, %v3444, %v3452
  %v3459 = vsel %vm737, %v3446, %v3454
  %v3460 = vsel %vm737, %v3448, %v3456
  %v3461 = vsel %vm737, %v3434, %v3442
  %v3462 = vsel %vm737, %v3436, %v3444
  %v3463 = vsel %vm737, %v3438, %v3446
  %v3464 = vsel %vm737, %v3440, %v3448
  %v3465 = vsel %vm737, %v3426, %v3434
  %v3466 = vsel %vm737, %v3428, %v3436
  %v3467 = vsel %vm737, %v3430, %v3438
  %v3468 = vsel %vm737, %v3432, %v3440
  %v3469 = vsel %vm737, %v3450, %v3426
  %v3470 = vsel %vm737, %v3452, %v3428
  %v3471 = vsel %vm737, %v3454, %v3430
  %v3472 = vsel %vm737, %v3456, %v3432
  %v3473 = vld [vmem:[%s742] ss:$8 sm:$0xf]
  %v3475 = vlaneseq
  %v3476 = vshrl.u32 %v3475, 7
  %v3477 = vsub.s32 0, %v3476
  %v3478 = vrot.slane %v3473, %v3477
  %v3479 = vlaneseq
  %v3480 = vshrl.u32 %v3479, 7
  %v3481 = vsub.s32 1, %v3480
  %v3482 = vrot.slane %v3473, %v3481
  %v3483 = vlaneseq
  %v3484 = vshrl.u32 %v3483, 7
  %v3485 = vsub.s32 2, %v3484
  %v3486 = vrot.slane %v3473, %v3485
  %v3487 = vlaneseq
  %v3488 = vshrl.u32 %v3487, 7
  %v3489 = vsub.s32 3, %v3488
  %v3490 = vrot.slane %v3473, %v3489
  %v3495 = vmul.f32 %v3465, %v3478
  %v3496 = vmul.f32 %v3461, %v3482
  %v3497 = vmul.f32 %v3457, %v3486
  %v3498 = vmul.f32 %v3469, %v3490
  %v3499 = vmul.f32 %v3466, %v3478
  %v3500 = vmul.f32 %v3462, %v3482
  %v3501 = vmul.f32 %v3458, %v3486
  %v3502 = vmul.f32 %v3470, %v3490
  %v3503 = vmul.f32 %v3467, %v3478
  %v3504 = vmul.f32 %v3463, %v3482
  %v3505 = vmul.f32 %v3459, %v3486
  %v3506 = vmul.f32 %v3471, %v3490
  %v3507 = vmul.f32 %v3468, %v3478
  %v3508 = vmul.f32 %v3464, %v3482
  %v3509 = vmul.f32 %v3460, %v3486
  %v3510 = vmul.f32 %v3472, %v3490
  %v3511 = vpack.c.bf16 %v3499, %v3495
  %v3512 = vpack.c.bf16 %v3500, %v3496
  %v3513 = vpack.c.bf16 %v3501, %v3497
  %v3514 = vpack.c.bf16 %v3502, %v3498
  %v3515 = vpack.c.bf16 %v3507, %v3503
  %v3516 = vpack.c.bf16 %v3508, %v3504
  %v3517 = vpack.c.bf16 %v3509, %v3505
  %v3518 = vpack.c.bf16 %v3510, %v3506
  %3519 = vst [vmem:[#allocation2 + $0x1c0] sm:$0xff] %v3511
  %3520 = vst [vmem:[#allocation2 + $0x1c8] sm:$0xff] %v3512
  %3521 = vst [vmem:[#allocation2 + $0x1d0] sm:$0xff] %v3513
  %3522 = vst [vmem:[#allocation2 + $0x1d8] sm:$0xff] %v3514
  %3523 = vst [vmem:[#allocation2 + $0x1e0] sm:$0xff] %v3515
  %3524 = vst [vmem:[#allocation2 + $0x1e8] sm:$0xff] %v3516
  %3525 = vst [vmem:[#allocation2 + $0x1f0] sm:$0xff] %v3517
  %3526 = vst [vmem:[#allocation2 + $0x1f8] sm:$0xff] %v3518
  %3527 = vrot.lane.b32.xlu0 %v2773, 111
  %v3528 = vpop.permute.xlu0 %3527
  %3529 = vrot.lane.b32.xlu0 %v2777, 111
  %v3530 = vpop.permute.xlu0 %3529
  %3531 = vrot.lane.b32.xlu0 %v2781, 111
  %v3532 = vpop.permute.xlu0 %3531
  %3533 = vrot.lane.b32.xlu0 %v2785, 111
  %v3534 = vpop.permute.xlu0 %3533
  %3535 = vrot.lane.b32.xlu0 %v2774, 111
  %v3536 = vpop.permute.xlu0 %3535
  %3537 = vrot.lane.b32.xlu0 %v2778, 111
  %v3538 = vpop.permute.xlu0 %3537
  %3539 = vrot.lane.b32.xlu0 %v2782, 111
  %v3540 = vpop.permute.xlu0 %3539
  %3541 = vrot.lane.b32.xlu0 %v2786, 111
  %v3542 = vpop.permute.xlu0 %3541
  %3543 = vrot.lane.b32.xlu0 %v2775, 111
  %v3544 = vpop.permute.xlu0 %3543
  %3545 = vrot.lane.b32.xlu0 %v2779, 111
  %v3546 = vpop.permute.xlu0 %3545
  %3547 = vrot.lane.b32.xlu0 %v2783, 111
  %v3548 = vpop.permute.xlu0 %3547
  %3549 = vrot.lane.b32.xlu0 %v2787, 111
  %v3550 = vpop.permute.xlu0 %3549
  %3551 = vrot.lane.b32.xlu0 %v2776, 111
  %v3552 = vpop.permute.xlu0 %3551
  %3553 = vrot.lane.b32.xlu0 %v2780, 111
  %v3554 = vpop.permute.xlu0 %3553
  %3555 = vrot.lane.b32.xlu0 %v2784, 111
  %v3556 = vpop.permute.xlu0 %3555
  %3557 = vrot.lane.b32.xlu0 %v2788, 111
  %v3558 = vpop.permute.xlu0 %3557
  %v3559 = vsel %vm841, %v3544, %v3552
  %v3560 = vsel %vm841, %v3546, %v3554
  %v3561 = vsel %vm841, %v3548, %v3556
  %v3562 = vsel %vm841, %v3550, %v3558
  %v3563 = vsel %vm841, %v3536, %v3544
  %v3564 = vsel %vm841, %v3538, %v3546
  %v3565 = vsel %vm841, %v3540, %v3548
  %v3566 = vsel %vm841, %v3542, %v3550
  %v3567 = vsel %vm841, %v3528, %v3536
  %v3568 = vsel %vm841, %v3530, %v3538
  %v3569 = vsel %vm841, %v3532, %v3540
  %v3570 = vsel %vm841, %v3534, %v3542
  %v3571 = vsel %vm841, %v3552, %v3528
  %v3572 = vsel %vm841, %v3554, %v3530
  %v3573 = vsel %vm841, %v3556, %v3532
  %v3574 = vsel %vm841, %v3558, %v3534
  %v3575 = vld [vmem:[%s846] ss:$8 sm:$0xf]
  %v3577 = vlaneseq
  %v3578 = vshrl.u32 %v3577, 7
  %v3579 = vsub.s32 0, %v3578
  %v3580 = vrot.slane %v3575, %v3579
  %v3581 = vlaneseq
  %v3582 = vshrl.u32 %v3581, 7
  %v3583 = vsub.s32 1, %v3582
  %v3584 = vrot.slane %v3575, %v3583
  %v3585 = vlaneseq
  %v3586 = vshrl.u32 %v3585, 7
  %v3587 = vsub.s32 2, %v3586
  %v3588 = vrot.slane %v3575, %v3587
  %v3589 = vlaneseq
  %v3590 = vshrl.u32 %v3589, 7
  %v3591 = vsub.s32 3, %v3590
  %v3592 = vrot.slane %v3575, %v3591
  %v3597 = vmul.f32 %v3567, %v3580
  %v3598 = vmul.f32 %v3563, %v3584
  %v3599 = vmul.f32 %v3559, %v3588
  %v3600 = vmul.f32 %v3571, %v3592
  %v3601 = vmul.f32 %v3568, %v3580
  %v3602 = vmul.f32 %v3564, %v3584
  %v3603 = vmul.f32 %v3560, %v3588
  %v3604 = vmul.f32 %v3572, %v3592
  %v3605 = vmul.f32 %v3569, %v3580
  %v3606 = vmul.f32 %v3565, %v3584
  %v3607 = vmul.f32 %v3561, %v3588
  %v3608 = vmul.f32 %v3573, %v3592
  %v3609 = vmul.f32 %v3570, %v3580
  %v3610 = vmul.f32 %v3566, %v3584
  %v3611 = vmul.f32 %v3562, %v3588
  %v3612 = vmul.f32 %v3574, %v3592
  %v3613 = vpack.c.bf16 %v3601, %v3597
  %v3614 = vpack.c.bf16 %v3602, %v3598
  %v3615 = vpack.c.bf16 %v3603, %v3599
  %v3616 = vpack.c.bf16 %v3604, %v3600
  %v3617 = vpack.c.bf16 %v3609, %v3605
  %v3618 = vpack.c.bf16 %v3610, %v3606
  %v3619 = vpack.c.bf16 %v3611, %v3607
  %v3620 = vpack.c.bf16 %v3612, %v3608
  %3621 = vst [vmem:[#allocation2 + $0x200] sm:$0xff] %v3613
  %3622 = vst [vmem:[#allocation2 + $0x208] sm:$0xff] %v3614
  %3623 = vst [vmem:[#allocation2 + $0x210] sm:$0xff] %v3615
  %3624 = vst [vmem:[#allocation2 + $0x218] sm:$0xff] %v3616
  %3625 = vst [vmem:[#allocation2 + $0x220] sm:$0xff] %v3617
  %3626 = vst [vmem:[#allocation2 + $0x228] sm:$0xff] %v3618
  %3627 = vst [vmem:[#allocation2 + $0x230] sm:$0xff] %v3619
  %3628 = vst [vmem:[#allocation2 + $0x238] sm:$0xff] %v3620
  %v3629 = vld [vmem:[#allocation2] sm:$0xff]
  %v3630 = vld [vmem:[#allocation2 + $0x8] sm:$0xff]
  %v3631 = vld [vmem:[#allocation2 + $0x10] sm:$0xff]
  %v3632 = vld [vmem:[#allocation2 + $0x18] sm:$0xff]
  %v3633 = vld [vmem:[#allocation2 + $0x20] sm:$0xff]
  %v3634 = vld [vmem:[#allocation2 + $0x28] sm:$0xff]
  %v3635 = vld [vmem:[#allocation2 + $0x30] sm:$0xff]
  %v3636 = vld [vmem:[#allocation2 + $0x38] sm:$0xff]
  %v3637 = vld [vmem:[#allocation2 + $0x40] sm:$0xff]
  %v3638 = vld [vmem:[#allocation2 + $0x48] sm:$0xff]
  %v3639 = vld [vmem:[#allocation2 + $0x50] sm:$0xff]
  %v3640 = vld [vmem:[#allocation2 + $0x58] sm:$0xff]
  %v3641 = vld [vmem:[#allocation2 + $0x60] sm:$0xff]
  %v3642 = vld [vmem:[#allocation2 + $0x68] sm:$0xff]
  %v3643 = vld [vmem:[#allocation2 + $0x70] sm:$0xff]
  %v3644 = vld [vmem:[#allocation2 + $0x78] sm:$0xff]
  %v3645 = vld [vmem:[#allocation2 + $0x80] sm:$0xff]
  %v3646 = vld [vmem:[#allocation2 + $0x88] sm:$0xff]
  %v3647 = vld [vmem:[#allocation2 + $0x90] sm:$0xff]
  %v3648 = vld [vmem:[#allocation2 + $0x98] sm:$0xff]
  %v3649 = vld [vmem:[#allocation2 + $0xa0] sm:$0xff]
  %v3650 = vld [vmem:[#allocation2 + $0xa8] sm:$0xff]
  %v3651 = vld [vmem:[#allocation2 + $0xb0] sm:$0xff]
  %v3652 = vld [vmem:[#allocation2 + $0xb8] sm:$0xff]
  %v3653 = vld [vmem:[#allocation2 + $0xc0] sm:$0xff]
  %v3654 = vld [vmem:[#allocation2 + $0xc8] sm:$0xff]
  %v3655 = vld [vmem:[#allocation2 + $0xd0] sm:$0xff]
  %v3656 = vld [vmem:[#allocation2 + $0xd8] sm:$0xff]
  %v3657 = vld [vmem:[#allocation2 + $0xe0] sm:$0xff]
  %v3658 = vld [vmem:[#allocation2 + $0xe8] sm:$0xff]
  %v3659 = vld [vmem:[#allocation2 + $0xf0] sm:$0xff]
  %v3660 = vld [vmem:[#allocation2 + $0xf8] sm:$0xff]
  %v3661 = vld [vmem:[#allocation2 + $0x100] sm:$0xff]
  %v3662 = vld [vmem:[#allocation2 + $0x108] sm:$0xff]
  %v3663 = vld [vmem:[#allocation2 + $0x110] sm:$0xff]
  %v3664 = vld [vmem:[#allocation2 + $0x118] sm:$0xff]
  %v3665 = vld [vmem:[#allocation2 + $0x120] sm:$0xff]
  %v3666 = vld [vmem:[#allocation2 + $0x128] sm:$0xff]
  %v3667 = vld [vmem:[#allocation2 + $0x130] sm:$0xff]
  %v3668 = vld [vmem:[#allocation2 + $0x138] sm:$0xff]
  %v3669 = vld [vmem:[#allocation2 + $0x140] sm:$0xff]
  %v3670 = vld [vmem:[#allocation2 + $0x148] sm:$0xff]
  %v3671 = vld [vmem:[#allocation2 + $0x150] sm:$0xff]
  %v3672 = vld [vmem:[#allocation2 + $0x158] sm:$0xff]
  %v3673 = vld [vmem:[#allocation2 + $0x160] sm:$0xff]
  %v3674 = vld [vmem:[#allocation2 + $0x168] sm:$0xff]
  %v3675 = vld [vmem:[#allocation2 + $0x170] sm:$0xff]
  %v3676 = vld [vmem:[#allocation2 + $0x178] sm:$0xff]
  %v3677 = vld [vmem:[#allocation2 + $0x180] sm:$0xff]
  %v3678 = vld [vmem:[#allocation2 + $0x188] sm:$0xff]
  %v3679 = vld [vmem:[#allocation2 + $0x190] sm:$0xff]
  %v3680 = vld [vmem:[#allocation2 + $0x198] sm:$0xff]
  %v3681 = vld [vmem:[#allocation2 + $0x1a0] sm:$0xff]
  %v3682 = vld [vmem:[#allocation2 + $0x1a8] sm:$0xff]
  %v3683 = vld [vmem:[#allocation2 + $0x1b0] sm:$0xff]
  %v3684 = vld [vmem:[#allocation2 + $0x1b8] sm:$0xff]
  %v3685 = vld [vmem:[#allocation2 + $0x1c0] sm:$0xff]
  %v3686 = vld [vmem:[#allocation2 + $0x1c8] sm:$0xff]
  %v3687 = vld [vmem:[#allocation2 + $0x1d0] sm:$0xff]
  %v3688 = vld [vmem:[#allocation2 + $0x1d8] sm:$0xff]
  %v3689 = vld [vmem:[#allocation2 + $0x1e0] sm:$0xff]
  %v3690 = vld [vmem:[#allocation2 + $0x1e8] sm:$0xff]
  %v3691 = vld [vmem:[#allocation2 + $0x1f0] sm:$0xff]
  %v3692 = vld [vmem:[#allocation2 + $0x1f8] sm:$0xff]
  %v3693 = vld [vmem:[#allocation2 + $0x200] sm:$0xff]
  %v3694 = vld [vmem:[#allocation2 + $0x208] sm:$0xff]
  %v3695 = vld [vmem:[#allocation2 + $0x210] sm:$0xff]
  %v3696 = vld [vmem:[#allocation2 + $0x218] sm:$0xff]
  %v3697 = vld [vmem:[#allocation2 + $0x220] sm:$0xff]
  %v3698 = vld [vmem:[#allocation2 + $0x228] sm:$0xff]
  %v3699 = vld [vmem:[#allocation2 + $0x230] sm:$0xff]
  %v3700 = vld [vmem:[#allocation2 + $0x238] sm:$0xff]
  %3702 = vset.pattern.permute.xlu0 0
  %3703 = vperm.xlu0 %3702, %v2795
  %v3704 = vpop.permute.xlu0 %3703
  %3707 = vset.pattern.permute.xlu0 0
  %3708 = vperm.xlu0 %3707, %v2796
  %v3709 = vpop.permute.xlu0 %3708
  %v3715 = vunpack.c.l.b16 %v2790
  %v3716 = vunpack.c.h.b16 %v2790
  %v3717 = vunpack.c.l.b16 %v2791
  %v3718 = vunpack.c.l.b16 %v2792
  %v3719 = vunpack.c.h.b16 %v2792
  %v3720 = vunpack.c.l.b16 %v2793
  %v3721 = vpack.c.b16 %v3718, %v3715
  %v3722 = vpack.c.b16 %v3719, %v3716
  %v3723 = vpack.c.b16 %v3720, %v3717
  %v3727 = vsel %vm1890, %v3723, 0
  %3729 = vmatprep.subr.bf16.mxu0 %v3630
  %3730 = vmatpush1.bf16.msra.mxu0 %v3629
  %3731 = vmatprep.subr.bf16.mxu0 %v3634
  %3732 = vmatpush1.bf16.msra.mxu0 %v3633
  %3733 = vmatprep.subr.bf16.mxu0 %v3638
  %3734 = vmatpush1.bf16.msra.mxu0 %v3637
  %3735 = vmatprep.subr.bf16.mxu0 %v3642
  %3736 = vmatpush1.bf16.msra.mxu0 %v3641
  %3737 = vmatprep.subr.bf16.mxu0 %v3646
  %3738 = vmatpush1.bf16.msra.mxu0 %v3645
  %3739 = vmatprep.subr.bf16.mxu0 %v3650
  %3740 = vmatpush1.bf16.msra.mxu0 %v3649
  %3741 = vmatprep.subr.bf16.mxu0 %v3654
  %3742 = vmatpush1.bf16.msra.mxu0 %v3653
  %3743 = vmatprep.subr.bf16.mxu0 %v3658
  %3744 = vmatpush1.bf16.msra.mxu0 %v3657
  %3745 = vmatprep.subr.bf16.mxu0 %v3662
  %3746 = vmatpush1.bf16.msra.mxu0 %v3661
  %3747 = vmatprep.subr.bf16.mxu0 %v3666
  %3748 = vmatpush1.bf16.msra.mxu0 %v3665
  %3749 = vmatprep.subr.bf16.mxu0 %v3670
  %3750 = vmatpush1.bf16.msra.mxu0 %v3669
  %3751 = vmatprep.subr.bf16.mxu0 %v3674
  %3752 = vmatpush1.bf16.msra.mxu0 %v3673
  %3753 = vmatprep.subr.bf16.mxu0 %v3678
  %3754 = vmatpush1.bf16.msra.mxu0 %v3677
  %3755 = vmatprep.subr.bf16.mxu0 %v3682
  %3756 = vmatpush1.bf16.msra.mxu0 %v3681
  %3757 = vmatprep.subr.bf16.mxu0 %v3686
  %3758 = vmatpush1.bf16.msra.mxu0 %v3685
  %3759 = vmatprep.subr.bf16.mxu0 %v3690
  %3760 = vmatpush1.bf16.msra.mxu0 %v3689
  %3761 = vmatprep.mubr.bf16.mxu0 %v3722
  %3762 = vmatmul.mubr.bf16.gmra.mrb[0].mxu0 %v3721
  %v3763 = vpop.f32.mrb[0].mxu0
  %v3764 = vadd.f32 %v3704, %v3763
  %v3765 = vpop.f32.mrb[0].mxu0
  %v3766 = vadd.f32 %v3704, %v3765
  %v3767 = vpop.f32.mrb[0].mxu0
  %v3768 = vadd.f32 %v3709, %v3767
  %v3769 = vpop.f32.mrb[0].mxu0
  %v3770 = vadd.f32 %v3709, %v3769
  %3771 = vdwg.mxu0
  %3772 = vmatprep.subr.bf16.mxu0 %v3694
  %3773 = vmatpush1.bf16.msra.mxu0 %v3693
  %3774 = vmatprep.subr.bf16.mxu0 %v3698
  %3775 = vmatpush1.bf16.msra.mxu0 %v3697
  %3776 = vmatprep.subr.bf16.mxu0 0
  %3777 = vmatpush1.bf16.msra.mxu0 0
  %3778 = vmatprep.subr.bf16.mxu0 0
  %3779 = vmatpush1.bf16.msra.mxu0 0
  %3780 = vmatprep.subr.bf16.mxu0 0
  %3781 = vmatpush1.bf16.msra.mxu0 0
  %3782 = vmatprep.subr.bf16.mxu0 0
  %3783 = vmatpush1.bf16.msra.mxu0 0
  %3784 = vmatprep.subr.bf16.mxu0 0
  %3785 = vmatpush1.bf16.msra.mxu0 0
  %3786 = vmatprep.subr.bf16.mxu0 0
  %3787 = vmatpush1.bf16.msra.mxu0 0
  %3788 = vmatprep.subr.bf16.mxu0 0
  %3789 = vmatpush1.bf16.msra.mxu0 0
  %3790 = vmatprep.subr.bf16.mxu0 0
  %3791 = vmatpush1.bf16.msra.mxu0 0
  %3792 = vmatprep.subr.bf16.mxu0 0
  %3793 = vmatpush1.bf16.msra.mxu0 0
  %3794 = vmatprep.subr.bf16.mxu0 0
  %3795 = vmatpush1.bf16.msra.mxu0 0
  %3796 = vmatprep.subr.bf16.mxu0 0
  %3797 = vmatpush1.bf16.msra.mxu0 0
  %3798 = vmatprep.subr.bf16.mxu0 0
  %3799 = vmatpush1.bf16.msra.mxu0 0
  %3800 = vmatprep.subr.bf16.mxu0 0
  %3801 = vmatpush1.bf16.msra.mxu0 0
  %3802 = vmatprep.subr.bf16.mxu0 0
  %3803 = vmatpush1.bf16.msra.mxu0 0
  %3804 = vmatprep.mubr.bf16.mxu0 0
  %3805 = vmatmul.mubr.bf16.gmra.mrb[0].mxu0 %v3727
  %v3806 = vpop.f32.mrb[0].mxu0
  %v3807 = vadd.f32 %v3764, %v3806
  %v3808 = vpop.f32.mrb[0].mxu0
  %v3809 = vadd.f32 %v3766, %v3808
  %v3810 = vpop.f32.mrb[0].mxu0
  %v3811 = vadd.f32 %v3768, %v3810
  %v3812 = vpop.f32.mrb[0].mxu0
  %v3813 = vadd.f32 %v3770, %v3812
  %3814 = vdwg.mxu0
  %3815 = vmatprep.subr.bf16.mxu0 %v3632
  %3816 = vmatpush1.bf16.msra.mxu0 %v3631
  %3817 = vmatprep.subr.bf16.mxu0 %v3636
  %3818 = vmatpush1.bf16.msra.mxu0 %v3635
  %3819 = vmatprep.subr.bf16.mxu0 %v3640
  %3820 = vmatpush1.bf16.msra.mxu0 %v3639
  %3821 = vmatprep.subr.bf16.mxu0 %v3644
  %3822 = vmatpush1.bf16.msra.mxu0 %v3643
  %3823 = vmatprep.subr.bf16.mxu0 %v3648
  %3824 = vmatpush1.bf16.msra.mxu0 %v3647
  %3825 = vmatprep.subr.bf16.mxu0 %v3652
  %3826 = vmatpush1.bf16.msra.mxu0 %v3651
  %3827 = vmatprep.subr.bf16.mxu0 %v3656
  %3828 = vmatpush1.bf16.msra.mxu0 %v3655
  %3829 = vmatprep.subr.bf16.mxu0 %v3660
  %3830 = vmatpush1.bf16.msra.mxu0 %v3659
  %3831 = vmatprep.subr.bf16.mxu0 %v3664
  %3832 = vmatpush1.bf16.msra.mxu0 %v3663
  %3833 = vmatprep.subr.bf16.mxu0 %v3668
  %3834 = vmatpush1.bf16.msra.mxu0 %v3667
  %3835 = vmatprep.subr.bf16.mxu0 %v3672
  %3836 = vmatpush1.bf16.msra.mxu0 %v3671
  %3837 = vmatprep.subr.bf16.mxu0 %v3676
  %3838 = vmatpush1.bf16.msra.mxu0 %v3675
  %3839 = vmatprep.subr.bf16.mxu0 %v3680
  %3840 = vmatpush1.bf16.msra.mxu0 %v3679
  %3841 = vmatprep.subr.bf16.mxu0 %v3684
  %3842 = vmatpush1.bf16.msra.mxu0 %v3683
  %3843 = vmatprep.subr.bf16.mxu0 %v3688
  %3844 = vmatpush1.bf16.msra.mxu0 %v3687
  %3845 = vmatprep.subr.bf16.mxu0 %v3692
  %3846 = vmatpush1.bf16.msra.mxu0 %v3691
  %3847 = vmatprep.mubr.bf16.mxu0 %v3722
  %3848 = vmatmul.mubr.bf16.gmra.mrb[0].mxu0 %v3721
  %v3849 = vpop.f32.mrb[0].mxu0
  %v3850 = vadd.f32 %v3704, %v3849
  %v3851 = vpop.f32.mrb[0].mxu0
  %v3852 = vadd.f32 %v3704, %v3851
  %v3853 = vpop.f32.mrb[0].mxu0
  %v3854 = vadd.f32 %v3709, %v3853
  %v3855 = vpop.f32.mrb[0].mxu0
  %v3856 = vadd.f32 %v3709, %v3855
  %3857 = vdwg.mxu0
  %3858 = vmatprep.subr.bf16.mxu0 %v3696
  %3859 = vmatpush1.bf16.msra.mxu0 %v3695
  %3860 = vmatprep.subr.bf16.mxu0 %v3700
  %3861 = vmatpush1.bf16.msra.mxu0 %v3699
  %3862 = vmatprep.subr.bf16.mxu0 0
  %3863 = vmatpush1.bf16.msra.mxu0 0
  %3864 = vmatprep.subr.bf16.mxu0 0
  %3865 = vmatpush1.bf16.msra.mxu0 0
  %3866 = vmatprep.subr.bf16.mxu0 0
  %3867 = vmatpush1.bf16.msra.mxu0 0
  %3868 = vmatprep.subr.bf16.mxu0 0
  %3869 = vmatpush1.bf16.msra.mxu0 0
  %3870 = vmatprep.subr.bf16.mxu0 0
  %3871 = vmatpush1.bf16.msra.mxu0 0
  %3872 = vmatprep.subr.bf16.mxu0 0
  %3873 = vmatpush1.bf16.msra.mxu0 0
  %3874 = vmatprep.subr.bf16.mxu0 0
  %3875 = vmatpush1.bf16.msra.mxu0 0
  %3876 = vmatprep.subr.bf16.mxu0 0
  %3877 = vmatpush1.bf16.msra.mxu0 0
  %3878 = vmatprep.subr.bf16.mxu0 0
  %3879 = vmatpush1.bf16.msra.mxu0 0
  %3880 = vmatprep.subr.bf16.mxu0 0
  %3881 = vmatpush1.bf16.msra.mxu0 0
  %3882 = vmatprep.subr.bf16.mxu0 0
  %3883 = vmatpush1.bf16.msra.mxu0 0
  %3884 = vmatprep.subr.bf16.mxu0 0
  %3885 = vmatpush1.bf16.msra.mxu0 0
  %3886 = vmatprep.subr.bf16.mxu0 0
  %3887 = vmatpush1.bf16.msra.mxu0 0
  %3888 = vmatprep.subr.bf16.mxu0 0
  %3889 = vmatpush1.bf16.msra.mxu0 0
  %3890 = vmatprep.mubr.bf16.mxu0 0
  %3891 = vmatmul.mubr.bf16.gmra.mrb[0].mxu0 %v3727
  %v3892 = vpop.f32.mrb[0].mxu0
  %v3893 = vadd.f32 %v3850, %v3892
  %v3894 = vpop.f32.mrb[0].mxu0
  %v3895 = vadd.f32 %v3852, %v3894
  %v3896 = vpop.f32.mrb[0].mxu0
  %v3897 = vadd.f32 %v3854, %v3896
  %v3898 = vpop.f32.mrb[0].mxu0
  %v3899 = vadd.f32 %v3856, %v3898
  %3900 = vdwg.mxu0
  %v3901 = vmax.f32 %v3807, 0.0
  %v3902 = vmax.f32 %v3809, 0.0
  %v3903 = vmax.f32 %v3893, 0.0
  %v3904 = vmax.f32 %v3895, 0.0
  %v3905 = vmax.f32 %v3811, 0.0
  %v3906 = vmax.f32 %v3813, 0.0
  %v3907 = vmax.f32 %v3897, 0.0
  %v3908 = vmax.f32 %v3899, 0.0
  %s3909 = scalar_lea.vmem %s6, 32
  %v3910 = vld [vmem:[%s3909] sm:$0xff]
  %v3911 = vld [vmem:[%s3909 + $0x8] sm:$0xff]
  %v3912 = vld [vmem:[%s3909 + $0x10] sm:$0xff]
  %v3913 = vld [vmem:[%s3909 + $0x18] sm:$0xff]
  %s3914 = scalar_lea.vmem %s7, 32
  %v3915 = vld [vmem:[%s3914] sm:$0xff]
  %v3916 = vld [vmem:[%s3914 + $0x8] sm:$0xff]
  %v3917 = vld [vmem:[%s3914 + $0x10] sm:$0xff]
  %v3918 = vld [vmem:[%s3914 + $0x18] sm:$0xff]
  %3919 = vrot.lane.b32.xlu0 %v3901, 17
  %v3920 = vpop.permute.xlu0 %3919
  %3921 = vrot.lane.b32.xlu0 %v3905, 17
  %v3922 = vpop.permute.xlu0 %3921
  %3923 = vrot.lane.b32.xlu0 %v3902, 17
  %v3924 = vpop.permute.xlu0 %3923
  %3925 = vrot.lane.b32.xlu0 %v3906, 17
  %v3926 = vpop.permute.xlu0 %3925
  %3927 = vrot.lane.b32.xlu0 %v3903, 17
  %v3928 = vpop.permute.xlu0 %3927
  %3929 = vrot.lane.b32.xlu0 %v3907, 17
  %v3930 = vpop.permute.xlu0 %3929
  %3931 = vrot.lane.b32.xlu0 %v3904, 17
  %v3932 = vpop.permute.xlu0 %3931
  %3933 = vrot.lane.b32.xlu0 %v3908, 17
  %v3934 = vpop.permute.xlu0 %3933
  %v3935 = vsel %vm78, %v3928, %v3932
  %v3936 = vsel %vm78, %v3930, %v3934
  %v3937 = vsel %vm78, %v3924, %v3928
  %v3938 = vsel %vm78, %v3926, %v3930
  %v3939 = vsel %vm78, %v3920, %v3924
  %v3940 = vsel %vm78, %v3922, %v3926
  %v3941 = vsel %vm78, %v3932, %v3920
  %v3942 = vsel %vm78, %v3934, %v3922
  %v3943 = vld [vmem:[%s1] ss:$8 sm:$0xf]
  %v3945 = vlaneseq
  %v3946 = vshrl.u32 %v3945, 7
  %v3947 = vsub.s32 0, %v3946
  %v3948 = vrot.slane %v3943, %v3947
  %v3949 = vlaneseq
  %v3950 = vshrl.u32 %v3949, 7
  %v3951 = vsub.s32 1, %v3950
  %v3952 = vrot.slane %v3943, %v3951
  %v3953 = vlaneseq
  %v3954 = vshrl.u32 %v3953, 7
  %v3955 = vsub.s32 2, %v3954
  %v3956 = vrot.slane %v3943, %v3955
  %v3957 = vlaneseq
  %v3958 = vshrl.u32 %v3957, 7
  %v3959 = vsub.s32 3, %v3958
  %v3960 = vrot.slane %v3943, %v3959
  %v3965 = vmul.f32 %v3941, %v3948
  %v3966 = vmul.f32 %v3939, %v3952
  %v3967 = vmul.f32 %v3937, %v3956
  %v3968 = vmul.f32 %v3935, %v3960
  %v3969 = vmul.f32 %v3942, %v3948
  %v3970 = vmul.f32 %v3940, %v3952
  %v3971 = vmul.f32 %v3938, %v3956
  %v3972 = vmul.f32 %v3936, %v3960
  %v3973 = vpack.c.bf16 %v3969, %v3965
  %v3974 = vpack.c.bf16 %v3970, %v3966
  %v3975 = vpack.c.bf16 %v3971, %v3967
  %v3976 = vpack.c.bf16 %v3972, %v3968
  %3977 = vst [vmem:[#allocation2] sm:$0xff] %v3973
  %3978 = vst [vmem:[#allocation2 + $0x8] sm:$0xff] %v3974
  %3979 = vst [vmem:[#allocation2 + $0x10] sm:$0xff] %v3975
  %3980 = vst [vmem:[#allocation2 + $0x18] sm:$0xff] %v3976
  %3981 = vrot.lane.b32.xlu0 %v3901, 16
  %v3982 = vpop.permute.xlu0 %3981
  %3983 = vrot.lane.b32.xlu0 %v3905, 16
  %v3984 = vpop.permute.xlu0 %3983
  %3985 = vrot.lane.b32.xlu0 %v3902, 16
  %v3986 = vpop.permute.xlu0 %3985
  %3987 = vrot.lane.b32.xlu0 %v3906, 16
  %v3988 = vpop.permute.xlu0 %3987
  %3989 = vrot.lane.b32.xlu0 %v3903, 16
  %v3990 = vpop.permute.xlu0 %3989
  %3991 = vrot.lane.b32.xlu0 %v3907, 16
  %v3992 = vpop.permute.xlu0 %3991
  %3993 = vrot.lane.b32.xlu0 %v3904, 16
  %v3994 = vpop.permute.xlu0 %3993
  %3995 = vrot.lane.b32.xlu0 %v3908, 16
  %v3996 = vpop.permute.xlu0 %3995
  %v3997 = vsel %vm169, %v3990, %v3994
  %v3998 = vsel %vm169, %v3992, %v3996
  %v3999 = vsel %vm169, %v3986, %v3990
  %v4000 = vsel %vm169, %v3988, %v3992
  %v4001 = vsel %vm169, %v3982, %v3986
  %v4002 = vsel %vm169, %v3984, %v3988
  %v4003 = vsel %vm169, %v3994, %v3982
  %v4004 = vsel %vm169, %v3996, %v3984
  %v4005 = vld [vmem:[%s174] ss:$8 sm:$0xf]
  %v4007 = vlaneseq
  %v4008 = vshrl.u32 %v4007, 7
  %v4009 = vsub.s32 0, %v4008
  %v4010 = vrot.slane %v4005, %v4009
  %v4011 = vlaneseq
  %v4012 = vshrl.u32 %v4011, 7
  %v4013 = vsub.s32 1, %v4012
  %v4014 = vrot.slane %v4005, %v4013
  %v4015 = vlaneseq
  %v4016 = vshrl.u32 %v4015, 7
  %v4017 = vsub.s32 2, %v4016
  %v4018 = vrot.slane %v4005, %v4017
  %v4019 = vlaneseq
  %v4020 = vshrl.u32 %v4019, 7
  %v4021 = vsub.s32 3, %v4020
  %v4022 = vrot.slane %v4005, %v4021
  %v4027 = vmul.f32 %v4003, %v4010
  %v4028 = vmul.f32 %v4001, %v4014
  %v4029 = vmul.f32 %v3999, %v4018
  %v4030 = vmul.f32 %v3997, %v4022
  %v4031 = vmul.f32 %v4004, %v4010
  %v4032 = vmul.f32 %v4002, %v4014
  %v4033 = vmul.f32 %v4000, %v4018
  %v4034 = vmul.f32 %v3998, %v4022
  %v4035 = vpack.c.bf16 %v4031, %v4027
  %v4036 = vpack.c.bf16 %v4032, %v4028
  %v4037 = vpack.c.bf16 %v4033, %v4029
  %v4038 = vpack.c.bf16 %v4034, %v4030
  %4039 = vst [vmem:[#allocation2 + $0x20] sm:$0xff] %v4035
  %4040 = vst [vmem:[#allocation2 + $0x28] sm:$0xff] %v4036
  %4041 = vst [vmem:[#allocation2 + $0x30] sm:$0xff] %v4037
  %4042 = vst [vmem:[#allocation2 + $0x38] sm:$0xff] %v4038
  %4043 = vrot.lane.b32.xlu0 %v3901, 15
  %v4044 = vpop.permute.xlu0 %4043
  %4045 = vrot.lane.b32.xlu0 %v3905, 15
  %v4046 = vpop.permute.xlu0 %4045
  %4047 = vrot.lane.b32.xlu0 %v3902, 15
  %v4048 = vpop.permute.xlu0 %4047
  %4049 = vrot.lane.b32.xlu0 %v3906, 15
  %v4050 = vpop.permute.xlu0 %4049
  %4051 = vrot.lane.b32.xlu0 %v3903, 15
  %v4052 = vpop.permute.xlu0 %4051
  %4053 = vrot.lane.b32.xlu0 %v3907, 15
  %v4054 = vpop.permute.xlu0 %4053
  %4055 = vrot.lane.b32.xlu0 %v3904, 15
  %v4056 = vpop.permute.xlu0 %4055
  %4057 = vrot.lane.b32.xlu0 %v3908, 15
  %v4058 = vpop.permute.xlu0 %4057
  %v4059 = vsel %vm273, %v4052, %v4056
  %v4060 = vsel %vm273, %v4054, %v4058
  %v4061 = vsel %vm273, %v4048, %v4052
  %v4062 = vsel %vm273, %v4050, %v4054
  %v4063 = vsel %vm273, %v4044, %v4048
  %v4064 = vsel %vm273, %v4046, %v4050
  %v4065 = vsel %vm273, %v4056, %v4044
  %v4066 = vsel %vm273, %v4058, %v4046
  %v4067 = vld [vmem:[%s278] ss:$8 sm:$0xf]
  %v4069 = vlaneseq
  %v4070 = vshrl.u32 %v4069, 7
  %v4071 = vsub.s32 0, %v4070
  %v4072 = vrot.slane %v4067, %v4071
  %v4073 = vlaneseq
  %v4074 = vshrl.u32 %v4073, 7
  %v4075 = vsub.s32 1, %v4074
  %v4076 = vrot.slane %v4067, %v4075
  %v4077 = vlaneseq
  %v4078 = vshrl.u32 %v4077, 7
  %v4079 = vsub.s32 2, %v4078
  %v4080 = vrot.slane %v4067, %v4079
  %v4081 = vlaneseq
  %v4082 = vshrl.u32 %v4081, 7
  %v4083 = vsub.s32 3, %v4082
  %v4084 = vrot.slane %v4067, %v4083
  %v4089 = vmul.f32 %v4065, %v4072
  %v4090 = vmul.f32 %v4063, %v4076
  %v4091 = vmul.f32 %v4061, %v4080
  %v4092 = vmul.f32 %v4059, %v4084
  %v4093 = vmul.f32 %v4066, %v4072
  %v4094 = vmul.f32 %v4064, %v4076
  %v4095 = vmul.f32 %v4062, %v4080
  %v4096 = vmul.f32 %v4060, %v4084
  %v4097 = vpack.c.bf16 %v4093, %v4089
  %v4098 = vpack.c.bf16 %v4094, %v4090
  %v4099 = vpack.c.bf16 %v4095, %v4091
  %v4100 = vpack.c.bf16 %v4096, %v4092
  %4101 = vst [vmem:[#allocation2 + $0x40] sm:$0xff] %v4097
  %4102 = vst [vmem:[#allocation2 + $0x48] sm:$0xff] %v4098
  %4103 = vst [vmem:[#allocation2 + $0x50] sm:$0xff] %v4099
  %4104 = vst [vmem:[#allocation2 + $0x58] sm:$0xff] %v4100
  %4105 = vrot.lane.b32.xlu0 %v3901, 1
  %v4106 = vpop.permute.xlu0 %4105
  %4107 = vrot.lane.b32.xlu0 %v3905, 1
  %v4108 = vpop.permute.xlu0 %4107
  %4109 = vrot.lane.b32.xlu0 %v3902, 1
  %v4110 = vpop.permute.xlu0 %4109
  %4111 = vrot.lane.b32.xlu0 %v3906, 1
  %v4112 = vpop.permute.xlu0 %4111
  %4113 = vrot.lane.b32.xlu0 %v3903, 1
  %v4114 = vpop.permute.xlu0 %4113
  %4115 = vrot.lane.b32.xlu0 %v3907, 1
  %v4116 = vpop.permute.xlu0 %4115
  %4117 = vrot.lane.b32.xlu0 %v3904, 1
  %v4118 = vpop.permute.xlu0 %4117
  %4119 = vrot.lane.b32.xlu0 %v3908, 1
  %v4120 = vpop.permute.xlu0 %4119
  %v4121 = vsel %vm377, %v4114, %v4118
  %v4122 = vsel %vm377, %v4116, %v4120
  %v4123 = vsel %vm377, %v4110, %v4114
  %v4124 = vsel %vm377, %v4112, %v4116
  %v4125 = vsel %vm377, %v4106, %v4110
  %v4126 = vsel %vm377, %v4108, %v4112
  %v4127 = vsel %vm377, %v4118, %v4106
  %v4128 = vsel %vm377, %v4120, %v4108
  %v4129 = vld [vmem:[%s382] ss:$8 sm:$0xf]
  %v4131 = vlaneseq
  %v4132 = vshrl.u32 %v4131, 7
  %v4133 = vsub.s32 0, %v4132
  %v4134 = vrot.slane %v4129, %v4133
  %v4135 = vlaneseq
  %v4136 = vshrl.u32 %v4135, 7
  %v4137 = vsub.s32 1, %v4136
  %v4138 = vrot.slane %v4129, %v4137
  %v4139 = vlaneseq
  %v4140 = vshrl.u32 %v4139, 7
  %v4141 = vsub.s32 2, %v4140
  %v4142 = vrot.slane %v4129, %v4141
  %v4143 = vlaneseq
  %v4144 = vshrl.u32 %v4143, 7
  %v4145 = vsub.s32 3, %v4144
  %v4146 = vrot.slane %v4129, %v4145
  %v4151 = vmul.f32 %v4127, %v4134
  %v4152 = vmul.f32 %v4125, %v4138
  %v4153 = vmul.f32 %v4123, %v4142
  %v4154 = vmul.f32 %v4121, %v4146
  %v4155 = vmul.f32 %v4128, %v4134
  %v4156 = vmul.f32 %v4126, %v4138
  %v4157 = vmul.f32 %v4124, %v4142
  %v4158 = vmul.f32 %v4122, %v4146
  %v4159 = vpack.c.bf16 %v4155, %v4151
  %v4160 = vpack.c.bf16 %v4156, %v4152
  %v4161 = vpack.c.bf16 %v4157, %v4153
  %v4162 = vpack.c.bf16 %v4158, %v4154
  %4163 = vst [vmem:[#allocation2 + $0x60] sm:$0xff] %v4159
  %4164 = vst [vmem:[#allocation2 + $0x68] sm:$0xff] %v4160
  %4165 = vst [vmem:[#allocation2 + $0x70] sm:$0xff] %v4161
  %4166 = vst [vmem:[#allocation2 + $0x78] sm:$0xff] %v4162
  %v4167 = vpack.c.bf16 %v3905, %v3901
  %v4168 = vpack.c.bf16 %v3906, %v3902
  %v4169 = vpack.c.bf16 %v3907, %v3903
  %v4170 = vpack.c.bf16 %v3908, %v3904
  %4171 = vst [vmem:[#allocation2 + $0x80] sm:$0xff] %v4167
  %4172 = vst [vmem:[#allocation2 + $0x88] sm:$0xff] %v4168
  %4173 = vst [vmem:[#allocation2 + $0x90] sm:$0xff] %v4169
  %4174 = vst [vmem:[#allocation2 + $0x98] sm:$0xff] %v4170
  %4175 = vrot.lane.b32.xlu0 %v3901, 127
  %v4176 = vpop.permute.xlu0 %4175
  %4177 = vrot.lane.b32.xlu0 %v3905, 127
  %v4178 = vpop.permute.xlu0 %4177
  %4179 = vrot.lane.b32.xlu0 %v3902, 127
  %v4180 = vpop.permute.xlu0 %4179
  %4181 = vrot.lane.b32.xlu0 %v3906, 127
  %v4182 = vpop.permute.xlu0 %4181
  %4183 = vrot.lane.b32.xlu0 %v3903, 127
  %v4184 = vpop.permute.xlu0 %4183
  %4185 = vrot.lane.b32.xlu0 %v3907, 127
  %v4186 = vpop.permute.xlu0 %4185
  %4187 = vrot.lane.b32.xlu0 %v3904, 127
  %v4188 = vpop.permute.xlu0 %4187
  %4189 = vrot.lane.b32.xlu0 %v3908, 127
  %v4190 = vpop.permute.xlu0 %4189
  %v4191 = vsel %vm529, %v4184, %v4188
  %v4192 = vsel %vm529, %v4186, %v4190
  %v4193 = vsel %vm529, %v4180, %v4184
  %v4194 = vsel %vm529, %v4182, %v4186
  %v4195 = vsel %vm529, %v4176, %v4180
  %v4196 = vsel %vm529, %v4178, %v4182
  %v4197 = vsel %vm529, %v4188, %v4176
  %v4198 = vsel %vm529, %v4190, %v4178
  %v4199 = vld [vmem:[%s534] ss:$8 sm:$0xf]
  %v4201 = vlaneseq
  %v4202 = vshrl.u32 %v4201, 7
  %v4203 = vsub.s32 0, %v4202
  %v4204 = vrot.slane %v4199, %v4203
  %v4205 = vlaneseq
  %v4206 = vshrl.u32 %v4205, 7
  %v4207 = vsub.s32 1, %v4206
  %v4208 = vrot.slane %v4199, %v4207
  %v4209 = vlaneseq
  %v4210 = vshrl.u32 %v4209, 7
  %v4211 = vsub.s32 2, %v4210
  %v4212 = vrot.slane %v4199, %v4211
  %v4213 = vlaneseq
  %v4214 = vshrl.u32 %v4213, 7
  %v4215 = vsub.s32 3, %v4214
  %v4216 = vrot.slane %v4199, %v4215
  %v4221 = vmul.f32 %v4195, %v4204
  %v4222 = vmul.f32 %v4193, %v4208
  %v4223 = vmul.f32 %v4191, %v4212
  %v4224 = vmul.f32 %v4197, %v4216
  %v4225 = vmul.f32 %v4196, %v4204
  %v4226 = vmul.f32 %v4194, %v4208
  %v4227 = vmul.f32 %v4192, %v4212
  %v4228 = vmul.f32 %v4198, %v4216
  %v4229 = vpack.c.bf16 %v4225, %v4221
  %v4230 = vpack.c.bf16 %v4226, %v4222
  %v4231 = vpack.c.bf16 %v4227, %v4223
  %v4232 = vpack.c.bf16 %v4228, %v4224
  %4233 = vst [vmem:[#allocation2 + $0xa0] sm:$0xff] %v4229
  %4234 = vst [vmem:[#allocation2 + $0xa8] sm:$0xff] %v4230
  %4235 = vst [vmem:[#allocation2 + $0xb0] sm:$0xff] %v4231
  %4236 = vst [vmem:[#allocation2 + $0xb8] sm:$0xff] %v4232
  %4237 = vrot.lane.b32.xlu0 %v3901, 113
  %v4238 = vpop.permute.xlu0 %4237
  %4239 = vrot.lane.b32.xlu0 %v3905, 113
  %v4240 = vpop.permute.xlu0 %4239
  %4241 = vrot.lane.b32.xlu0 %v3902, 113
  %v4242 = vpop.permute.xlu0 %4241
  %4243 = vrot.lane.b32.xlu0 %v3906, 113
  %v4244 = vpop.permute.xlu0 %4243
  %4245 = vrot.lane.b32.xlu0 %v3903, 113
  %v4246 = vpop.permute.xlu0 %4245
  %4247 = vrot.lane.b32.xlu0 %v3907, 113
  %v4248 = vpop.permute.xlu0 %4247
  %4249 = vrot.lane.b32.xlu0 %v3904, 113
  %v4250 = vpop.permute.xlu0 %4249
  %4251 = vrot.lane.b32.xlu0 %v3908, 113
  %v4252 = vpop.permute.xlu0 %4251
  %v4253 = vsel %vm633, %v4246, %v4250
  %v4254 = vsel %vm633, %v4248, %v4252
  %v4255 = vsel %vm633, %v4242, %v4246
  %v4256 = vsel %vm633, %v4244, %v4248
  %v4257 = vsel %vm633, %v4238, %v4242
  %v4258 = vsel %vm633, %v4240, %v4244
  %v4259 = vsel %vm633, %v4250, %v4238
  %v4260 = vsel %vm633, %v4252, %v4240
  %v4261 = vld [vmem:[%s638] ss:$8 sm:$0xf]
  %v4263 = vlaneseq
  %v4264 = vshrl.u32 %v4263, 7
  %v4265 = vsub.s32 0, %v4264
  %v4266 = vrot.slane %v4261, %v4265
  %v4267 = vlaneseq
  %v4268 = vshrl.u32 %v4267, 7
  %v4269 = vsub.s32 1, %v4268
  %v4270 = vrot.slane %v4261, %v4269
  %v4271 = vlaneseq
  %v4272 = vshrl.u32 %v4271, 7
  %v4273 = vsub.s32 2, %v4272
  %v4274 = vrot.slane %v4261, %v4273
  %v4275 = vlaneseq
  %v4276 = vshrl.u32 %v4275, 7
  %v4277 = vsub.s32 3, %v4276
  %v4278 = vrot.slane %v4261, %v4277
  %v4283 = vmul.f32 %v4257, %v4266
  %v4284 = vmul.f32 %v4255, %v4270
  %v4285 = vmul.f32 %v4253, %v4274
  %v4286 = vmul.f32 %v4259, %v4278
  %v4287 = vmul.f32 %v4258, %v4266
  %v4288 = vmul.f32 %v4256, %v4270
  %v4289 = vmul.f32 %v4254, %v4274
  %v4290 = vmul.f32 %v4260, %v4278
  %v4291 = vpack.c.bf16 %v4287, %v4283
  %v4292 = vpack.c.bf16 %v4288, %v4284
  %v4293 = vpack.c.bf16 %v4289, %v4285
  %v4294 = vpack.c.bf16 %v4290, %v4286
  %4295 = vst [vmem:[#allocation2 + $0xc0] sm:$0xff] %v4291
  %4296 = vst [vmem:[#allocation2 + $0xc8] sm:$0xff] %v4292
  %4297 = vst [vmem:[#allocation2 + $0xd0] sm:$0xff] %v4293
  %4298 = vst [vmem:[#allocation2 + $0xd8] sm:$0xff] %v4294
  %4299 = vrot.lane.b32.xlu0 %v3901, 112
  %v4300 = vpop.permute.xlu0 %4299
  %4301 = vrot.lane.b32.xlu0 %v3905, 112
  %v4302 = vpop.permute.xlu0 %4301
  %4303 = vrot.lane.b32.xlu0 %v3902, 112
  %v4304 = vpop.permute.xlu0 %4303
  %4305 = vrot.lane.b32.xlu0 %v3906, 112
  %v4306 = vpop.permute.xlu0 %4305
  %4307 = vrot.lane.b32.xlu0 %v3903, 112
  %v4308 = vpop.permute.xlu0 %4307
  %4309 = vrot.lane.b32.xlu0 %v3907, 112
  %v4310 = vpop.permute.xlu0 %4309
  %4311 = vrot.lane.b32.xlu0 %v3904, 112
  %v4312 = vpop.permute.xlu0 %4311
  %4313 = vrot.lane.b32.xlu0 %v3908, 112
  %v4314 = vpop.permute.xlu0 %4313
  %v4315 = vsel %vm737, %v4308, %v4312
  %v4316 = vsel %vm737, %v4310, %v4314
  %v4317 = vsel %vm737, %v4304, %v4308
  %v4318 = vsel %vm737, %v4306, %v4310
  %v4319 = vsel %vm737, %v4300, %v4304
  %v4320 = vsel %vm737, %v4302, %v4306
  %v4321 = vsel %vm737, %v4312, %v4300
  %v4322 = vsel %vm737, %v4314, %v4302
  %v4323 = vld [vmem:[%s742] ss:$8 sm:$0xf]
  %v4325 = vlaneseq
  %v4326 = vshrl.u32 %v4325, 7
  %v4327 = vsub.s32 0, %v4326
  %v4328 = vrot.slane %v4323, %v4327
  %v4329 = vlaneseq
  %v4330 = vshrl.u32 %v4329, 7
  %v4331 = vsub.s32 1, %v4330
  %v4332 = vrot.slane %v4323, %v4331
  %v4333 = vlaneseq
  %v4334 = vshrl.u32 %v4333, 7
  %v4335 = vsub.s32 2, %v4334
  %v4336 = vrot.slane %v4323, %v4335
  %v4337 = vlaneseq
  %v4338 = vshrl.u32 %v4337, 7
  %v4339 = vsub.s32 3, %v4338
  %v4340 = vrot.slane %v4323, %v4339
  %v4345 = vmul.f32 %v4319, %v4328
  %v4346 = vmul.f32 %v4317, %v4332
  %v4347 = vmul.f32 %v4315, %v4336
  %v4348 = vmul.f32 %v4321, %v4340
  %v4349 = vmul.f32 %v4320, %v4328
  %v4350 = vmul.f32 %v4318, %v4332
  %v4351 = vmul.f32 %v4316, %v4336
  %v4352 = vmul.f32 %v4322, %v4340
  %v4353 = vpack.c.bf16 %v4349, %v4345
  %v4354 = vpack.c.bf16 %v4350, %v4346
  %v4355 = vpack.c.bf16 %v4351, %v4347
  %v4356 = vpack.c.bf16 %v4352, %v4348
  %4357 = vst [vmem:[#allocation2 + $0xe0] sm:$0xff] %v4353
  %4358 = vst [vmem:[#allocation2 + $0xe8] sm:$0xff] %v4354
  %4359 = vst [vmem:[#allocation2 + $0xf0] sm:$0xff] %v4355
  %4360 = vst [vmem:[#allocation2 + $0xf8] sm:$0xff] %v4356
  %4361 = vrot.lane.b32.xlu0 %v3901, 111
  %v4362 = vpop.permute.xlu0 %4361
  %4363 = vrot.lane.b32.xlu0 %v3905, 111
  %v4364 = vpop.permute.xlu0 %4363
  %4365 = vrot.lane.b32.xlu0 %v3902, 111
  %v4366 = vpop.permute.xlu0 %4365
  %4367 = vrot.lane.b32.xlu0 %v3906, 111
  %v4368 = vpop.permute.xlu0 %4367
  %4369 = vrot.lane.b32.xlu0 %v3903, 111
  %v4370 = vpop.permute.xlu0 %4369
  %4371 = vrot.lane.b32.xlu0 %v3907, 111
  %v4372 = vpop.permute.xlu0 %4371
  %4373 = vrot.lane.b32.xlu0 %v3904, 111
  %v4374 = vpop.permute.xlu0 %4373
  %4375 = vrot.lane.b32.xlu0 %v3908, 111
  %v4376 = vpop.permute.xlu0 %4375
  %v4377 = vsel %vm841, %v4370, %v4374
  %v4378 = vsel %vm841, %v4372, %v4376
  %v4379 = vsel %vm841, %v4366, %v4370
  %v4380 = vsel %vm841, %v4368, %v4372
  %v4381 = vsel %vm841, %v4362, %v4366
  %v4382 = vsel %vm841, %v4364, %v4368
  %v4383 = vsel %vm841, %v4374, %v4362
  %v4384 = vsel %vm841, %v4376, %v4364
  %v4385 = vld [vmem:[%s846] ss:$8 sm:$0xf]
  %v4387 = vlaneseq
  %v4388 = vshrl.u32 %v4387, 7
  %v4389 = vsub.s32 0, %v4388
  %v4390 = vrot.slane %v4385, %v4389
  %v4391 = vlaneseq
  %v4392 = vshrl.u32 %v4391, 7
  %v4393 = vsub.s32 1, %v4392
  %v4394 = vrot.slane %v4385, %v4393
  %v4395 = vlaneseq
  %v4396 = vshrl.u32 %v4395, 7
  %v4397 = vsub.s32 2, %v4396
  %v4398 = vrot.slane %v4385, %v4397
  %v4399 = vlaneseq
  %v4400 = vshrl.u32 %v4399, 7
  %v4401 = vsub.s32 3, %v4400
  %v4402 = vrot.slane %v4385, %v4401
  %v4407 = vmul.f32 %v4381, %v4390
  %v4408 = vmul.f32 %v4379, %v4394
  %v4409 = vmul.f32 %v4377, %v4398
  %v4410 = vmul.f32 %v4383, %v4402
  %v4411 = vmul.f32 %v4382, %v4390
  %v4412 = vmul.f32 %v4380, %v4394
  %v4413 = vmul.f32 %v4378, %v4398
  %v4414 = vmul.f32 %v4384, %v4402
  %v4415 = vpack.c.bf16 %v4411, %v4407
  %v4416 = vpack.c.bf16 %v4412, %v4408
  %v4417 = vpack.c.bf16 %v4413, %v4409
  %v4418 = vpack.c.bf16 %v4414, %v4410
  %4419 = vst [vmem:[#allocation2 + $0x100] sm:$0xff] %v4415
  %4420 = vst [vmem:[#allocation2 + $0x108] sm:$0xff] %v4416
  %4421 = vst [vmem:[#allocation2 + $0x110] sm:$0xff] %v4417
  %4422 = vst [vmem:[#allocation2 + $0x118] sm:$0xff] %v4418
  %v4423 = vld [vmem:[#allocation2] sm:$0xff]
  %v4424 = vld [vmem:[#allocation2 + $0x8] sm:$0xff]
  %v4425 = vld [vmem:[#allocation2 + $0x10] sm:$0xff]
  %v4426 = vld [vmem:[#allocation2 + $0x18] sm:$0xff]
  %v4427 = vld [vmem:[#allocation2 + $0x20] sm:$0xff]
  %v4428 = vld [vmem:[#allocation2 + $0x28] sm:$0xff]
  %v4429 = vld [vmem:[#allocation2 + $0x30] sm:$0xff]
  %v4430 = vld [vmem:[#allocation2 + $0x38] sm:$0xff]
  %v4431 = vld [vmem:[#allocation2 + $0x40] sm:$0xff]
  %v4432 = vld [vmem:[#allocation2 + $0x48] sm:$0xff]
  %v4433 = vld [vmem:[#allocation2 + $0x50] sm:$0xff]
  %v4434 = vld [vmem:[#allocation2 + $0x58] sm:$0xff]
  %v4435 = vld [vmem:[#allocation2 + $0x60] sm:$0xff]
  %v4436 = vld [vmem:[#allocation2 + $0x68] sm:$0xff]
  %v4437 = vld [vmem:[#allocation2 + $0x70] sm:$0xff]
  %v4438 = vld [vmem:[#allocation2 + $0x78] sm:$0xff]
  %v4439 = vld [vmem:[#allocation2 + $0x80] sm:$0xff]
  %v4440 = vld [vmem:[#allocation2 + $0x88] sm:$0xff]
  %v4441 = vld [vmem:[#allocation2 + $0x90] sm:$0xff]
  %v4442 = vld [vmem:[#allocation2 + $0x98] sm:$0xff]
  %v4443 = vld [vmem:[#allocation2 + $0xa0] sm:$0xff]
  %v4444 = vld [vmem:[#allocation2 + $0xa8] sm:$0xff]
  %v4445 = vld [vmem:[#allocation2 + $0xb0] sm:$0xff]
  %v4446 = vld [vmem:[#allocation2 + $0xb8] sm:$0xff]
  %v4447 = vld [vmem:[#allocation2 + $0xc0] sm:$0xff]
  %v4448 = vld [vmem:[#allocation2 + $0xc8] sm:$0xff]
  %v4449 = vld [vmem:[#allocation2 + $0xd0] sm:$0xff]
  %v4450 = vld [vmem:[#allocation2 + $0xd8] sm:$0xff]
  %v4451 = vld [vmem:[#allocation2 + $0xe0] sm:$0xff]
  %v4452 = vld [vmem:[#allocation2 + $0xe8] sm:$0xff]
  %v4453 = vld [vmem:[#allocation2 + $0xf0] sm:$0xff]
  %v4454 = vld [vmem:[#allocation2 + $0xf8] sm:$0xff]
  %v4455 = vld [vmem:[#allocation2 + $0x100] sm:$0xff]
  %v4456 = vld [vmem:[#allocation2 + $0x108] sm:$0xff]
  %v4457 = vld [vmem:[#allocation2 + $0x110] sm:$0xff]
  %v4458 = vld [vmem:[#allocation2 + $0x118] sm:$0xff]
  %4460 = vset.pattern.permute.xlu0 0
  %4461 = vperm.xlu0 %4460, %v3915
  %v4462 = vpop.permute.xlu0 %4461
  %4465 = vset.pattern.permute.xlu0 0
  %4466 = vperm.xlu0 %4465, %v3916
  %v4467 = vpop.permute.xlu0 %4466
  %4470 = vset.pattern.permute.xlu0 0
  %4471 = vperm.xlu0 %4470, %v3917
  %v4472 = vpop.permute.xlu0 %4471
  %4475 = vset.pattern.permute.xlu0 0
  %4476 = vperm.xlu0 %4475, %v3918
  %v4477 = vpop.permute.xlu0 %4476
  %v4483 = vunpack.c.l.b16 %v3910
  %v4484 = vunpack.c.h.b16 %v3910
  %v4485 = vunpack.c.l.b16 %v3911
  %v4486 = vunpack.c.h.b16 %v3911
  %v4487 = vunpack.c.l.b16 %v3912
  %v4488 = vunpack.c.h.b16 %v3912
  %v4489 = vunpack.c.l.b16 %v3913
  %v4490 = vunpack.c.h.b16 %v3913
  %v4491 = vpack.c.b16 %v4485, %v4483
  %v4492 = vpack.c.b16 %v4486, %v4484
  %v4493 = vpack.c.b16 %v4489, %v4487
  %v4494 = vpack.c.b16 %v4490, %v4488
  %v4498 = vsel %vm2660, %v4492, 0
  %v4501 = vsel %vm2660, %v4494, 0
  %4503 = vmatprep.subr.bf16.mxu0 %v4424
  %4504 = vmatpush1.bf16.msra.mxu0 %v4423
  %4505 = vmatprep.subr.bf16.mxu0 %v4428
  %4506 = vmatpush1.bf16.msra.mxu0 %v4427
  %4507 = vmatprep.subr.bf16.mxu0 %v4432
  %4508 = vmatpush1.bf16.msra.mxu0 %v4431
  %4509 = vmatprep.subr.bf16.mxu0 %v4436
  %4510 = vmatpush1.bf16.msra.mxu0 %v4435
  %4511 = vmatprep.subr.bf16.mxu0 %v4440
  %4512 = vmatpush1.bf16.msra.mxu0 %v4439
  %4513 = vmatprep.subr.bf16.mxu0 %v4444
  %4514 = vmatpush1.bf16.msra.mxu0 %v4443
  %4515 = vmatprep.subr.bf16.mxu0 %v4448
  %4516 = vmatpush1.bf16.msra.mxu0 %v4447
  %4517 = vmatprep.subr.bf16.mxu0 %v4452
  %4518 = vmatpush1.bf16.msra.mxu0 %v4451
  %4519 = vmatprep.subr.bf16.mxu0 %v4456
  %4520 = vmatpush1.bf16.msra.mxu0 %v4455
  %4521 = vmatprep.subr.bf16.mxu0 0
  %4522 = vmatpush1.bf16.msra.mxu0 0
  %4523 = vmatprep.subr.bf16.mxu0 0
  %4524 = vmatpush1.bf16.msra.mxu0 0
  %4525 = vmatprep.subr.bf16.mxu0 0
  %4526 = vmatpush1.bf16.msra.mxu0 0
  %4527 = vmatprep.subr.bf16.mxu0 0
  %4528 = vmatpush1.bf16.msra.mxu0 0
  %4529 = vmatprep.subr.bf16.mxu0 0
  %4530 = vmatpush1.bf16.msra.mxu0 0
  %4531 = vmatprep.subr.bf16.mxu0 0
  %4532 = vmatpush1.bf16.msra.mxu0 0
  %4533 = vmatprep.subr.bf16.mxu0 0
  %4534 = vmatpush1.bf16.msra.mxu0 0
  %4535 = vmatprep.mubr.bf16.mxu0 %v4498
  %4536 = vmatmul.mubr.bf16.gmra.mrb[0].mxu0 %v4491
  %v4537 = vpop.f32.mrb[0].mxu0
  %v4538 = vadd.f32 %v4462, %v4537
  %v4539 = vpop.f32.mrb[0].mxu0
  %v4540 = vadd.f32 %v4462, %v4539
  %v4541 = vpop.f32.mrb[0].mxu0
  %v4542 = vadd.f32 %v4467, %v4541
  %v4543 = vpop.f32.mrb[0].mxu0
  %v4544 = vadd.f32 %v4467, %v4543
  %4545 = vmatprep.mubr.bf16.mxu0 %v4501
  %4546 = vmatmul.mubr.bf16.gmra.mrb[0].mxu0 %v4493
  %v4547 = vpop.f32.mrb[0].mxu0
  %v4548 = vadd.f32 %v4472, %v4547
  %v4549 = vpop.f32.mrb[0].mxu0
  %v4550 = vadd.f32 %v4472, %v4549
  %v4551 = vpop.f32.mrb[0].mxu0
  %v4552 = vadd.f32 %v4477, %v4551
  %v4553 = vpop.f32.mrb[0].mxu0
  %v4554 = vadd.f32 %v4477, %v4553
  %4555 = vdwg.mxu0
  %4556 = vmatprep.subr.bf16.mxu0 %v4426
  %4557 = vmatpush1.bf16.msra.mxu0 %v4425
  %4558 = vmatprep.subr.bf16.mxu0 %v4430
  %4559 = vmatpush1.bf16.msra.mxu0 %v4429
  %4560 = vmatprep.subr.bf16.mxu0 %v4434
  %4561 = vmatpush1.bf16.msra.mxu0 %v4433
  %4562 = vmatprep.subr.bf16.mxu0 %v4438
  %4563 = vmatpush1.bf16.msra.mxu0 %v4437
  %4564 = vmatprep.subr.bf16.mxu0 %v4442
  %4565 = vmatpush1.bf16.msra.mxu0 %v4441
  %4566 = vmatprep.subr.bf16.mxu0 %v4446
  %4567 = vmatpush1.bf16.msra.mxu0 %v4445
  %4568 = vmatprep.subr.bf16.mxu0 %v4450
  %4569 = vmatpush1.bf16.msra.mxu0 %v4449
  %4570 = vmatprep.subr.bf16.mxu0 %v4454
  %4571 = vmatpush1.bf16.msra.mxu0 %v4453
  %4572 = vmatprep.subr.bf16.mxu0 %v4458
  %4573 = vmatpush1.bf16.msra.mxu0 %v4457
  %4574 = vmatprep.subr.bf16.mxu0 0
  %4575 = vmatpush1.bf16.msra.mxu0 0
  %4576 = vmatprep.subr.bf16.mxu0 0
  %4577 = vmatpush1.bf16.msra.mxu0 0
  %4578 = vmatprep.subr.bf16.mxu0 0
  %4579 = vmatpush1.bf16.msra.mxu0 0
  %4580 = vmatprep.subr.bf16.mxu0 0
  %4581 = vmatpush1.bf16.msra.mxu0 0
  %4582 = vmatprep.subr.bf16.mxu0 0
  %4583 = vmatpush1.bf16.msra.mxu0 0
  %4584 = vmatprep.subr.bf16.mxu0 0
  %4585 = vmatpush1.bf16.msra.mxu0 0
  %4586 = vmatprep.subr.bf16.mxu0 0
  %4587 = vmatpush1.bf16.msra.mxu0 0
  %4588 = vmatprep.mubr.bf16.mxu0 %v4498
  %4589 = vmatmul.mubr.bf16.gmra.mrb[0].mxu0 %v4491
  %v4590 = vpop.f32.mrb[0].mxu0
  %v4591 = vadd.f32 %v4462, %v4590
  %v4592 = vpop.f32.mrb[0].mxu0
  %v4593 = vadd.f32 %v4462, %v4592
  %v4594 = vpop.f32.mrb[0].mxu0
  %v4595 = vadd.f32 %v4467, %v4594
  %v4596 = vpop.f32.mrb[0].mxu0
  %v4597 = vadd.f32 %v4467, %v4596
  %4598 = vmatprep.mubr.bf16.mxu0 %v4501
  %4599 = vmatmul.mubr.bf16.gmra.mrb[0].mxu0 %v4493
  %v4600 = vpop.f32.mrb[0].mxu0
  %v4601 = vadd.f32 %v4472, %v4600
  %v4602 = vpop.f32.mrb[0].mxu0
  %v4603 = vadd.f32 %v4472, %v4602
  %v4604 = vpop.f32.mrb[0].mxu0
  %v4605 = vadd.f32 %v4477, %v4604
  %v4606 = vpop.f32.mrb[0].mxu0
  %v4607 = vadd.f32 %v4477, %v4606
  %4608 = vdwg.mxu0
  %v4609 = vadd.f32 %v2773, %v4538
  %v4610 = vadd.f32 %v2774, %v4540
  %v4611 = vadd.f32 %v2775, %v4591
  %v4612 = vadd.f32 %v2776, %v4593
  %v4613 = vadd.f32 %v2777, %v4542
  %v4614 = vadd.f32 %v2778, %v4544
  %v4615 = vadd.f32 %v2779, %v4595
  %v4616 = vadd.f32 %v2780, %v4597
  %v4617 = vadd.f32 %v2781, %v4548
  %v4618 = vadd.f32 %v2782, %v4550
  %v4619 = vadd.f32 %v2783, %v4601
  %v4620 = vadd.f32 %v2784, %v4603
  %v4621 = vadd.f32 %v2785, %v4552
  %v4622 = vadd.f32 %v2786, %v4554
  %v4623 = vadd.f32 %v2787, %v4605
  %v4624 = vadd.f32 %v2788, %v4607
  %v4625 = vadd.f32 %v4609, %v4610
  %4626 = vadd.xlane.f32.xlu0 %v4625
  %v4627 = vpop.xlane.xlu0 %4626
  %v4628 = vadd.f32 %v4613, %v4614
  %4629 = vadd.xlane.f32.xlu0 %v4628
  %v4630 = vpop.xlane.xlu0 %4629
  %v4631 = vadd.f32 %v4617, %v4618
  %4632 = vadd.xlane.f32.xlu0 %v4631
  %v4633 = vpop.xlane.xlu0 %4632
  %v4634 = vadd.f32 %v4621, %v4622
  %4635 = vadd.xlane.f32.xlu0 %v4634
  %v4636 = vpop.xlane.xlu0 %4635
  %v4637 = vadd.f32 %v4611, %v4612
  %4638 = vadd.xlane.f32.xlu0 %v4637
  %v4639 = vpop.xlane.xlu0 %4638
  %v4640 = vadd.f32 %v4615, %v4616
  %4641 = vadd.xlane.f32.xlu0 %v4640
  %v4642 = vpop.xlane.xlu0 %4641
  %v4643 = vadd.f32 %v4619, %v4620
  %4644 = vadd.xlane.f32.xlu0 %v4643
  %v4645 = vpop.xlane.xlu0 %4644
  %v4646 = vadd.f32 %v4623, %v4624
  %4647 = vadd.xlane.f32.xlu0 %v4646
  %v4648 = vpop.xlane.xlu0 %4647
  %vm4649 = vcmask 7168
  %v4650 = vsel %vm4649, %v4627, %v4639
  %v4651 = vsel %vm4649, %v4630, %v4642
  %v4652 = vsel %vm4649, %v4633, %v4645
  %v4653 = vsel %vm4649, %v4636, %v4648
  %v4654 = vmul.f32 %v4650, 0.00390625
  %v4655 = vmul.f32 %v4651, 0.00390625
  %v4656 = vmul.f32 %v4652, 0.00390625
  %v4657 = vmul.f32 %v4653, 0.00390625
  %v4658 = vld [vmem:[%s8] sm:$0xff]
  %v4659 = vld [vmem:[%s8 + $0x8] sm:$0xff]
  %v4660 = vld [vmem:[%s8 + $0x10] sm:$0xff]
  %v4661 = vld [vmem:[%s8 + $0x18] sm:$0xff]
  %v4662 = vld [vmem:[%s8 + $0x20] sm:$0xff]
  %v4663 = vld [vmem:[%s8 + $0x28] sm:$0xff]
  %v4664 = vld [vmem:[%s9] sm:$0xff]
  %v4665 = vld [vmem:[%s9 + $0x8] sm:$0xff]
  %v4666 = vld [vmem:[%s9 + $0x10] sm:$0xff]
  %v4667 = vld [vmem:[%s9 + $0x18] sm:$0xff]
  %v4668 = vld [vmem:[%s9 + $0x20] sm:$0xff]
  %v4669 = vld [vmem:[%s9 + $0x28] sm:$0xff]
  %4671 = vset.pattern.permute.xlu0 0
  %4672 = vperm.xlu0 %4671, %v4664
  %v4673 = vpop.permute.xlu0 %4672
  %4676 = vset.pattern.permute.xlu0 0
  %4677 = vperm.xlu0 %4676, %v4665
  %v4678 = vpop.permute.xlu0 %4677
  %4681 = vset.pattern.permute.xlu0 0
  %4682 = vperm.xlu0 %4681, %v4666
  %v4683 = vpop.permute.xlu0 %4682
  %4686 = vset.pattern.permute.xlu0 0
  %4687 = vperm.xlu0 %4686, %v4667
  %v4688 = vpop.permute.xlu0 %4687
  %4691 = vset.pattern.permute.xlu0 0
  %4692 = vperm.xlu0 %4691, %v4668
  %v4693 = vpop.permute.xlu0 %4692
  %4696 = vset.pattern.permute.xlu0 0
  %4697 = vperm.xlu0 %4696, %v4669
  %v4698 = vpop.permute.xlu0 %4697
  %v4701 = vsel %vm1890, %v4658, 0
  %v4704 = vsel %vm1890, %v4659, 0
  %v4707 = vsel %vm1890, %v4660, 0
  %v4710 = vsel %vm1890, %v4661, 0
  %v4713 = vsel %vm1890, %v4662, 0
  %v4716 = vsel %vm1890, %v4663, 0
  %4718 = vmatprep.subr.mxu0 0.0
  %4719 = vmatpush1.msra.mxu0 %v4654
  %4720 = vmatprep.subr.mxu0 0.0
  %4721 = vmatpush1.msra.mxu0 %v4655
  %4722 = vmatprep.subr.mxu0 0.0
  %4723 = vmatpush1.msra.mxu0 %v4656
  %4724 = vmatprep.subr.mxu0 0.0
  %4725 = vmatpush1.msra.mxu0 %v4657
  %4726 = vmatprep.subr.mxu0 0.0
  %4727 = vmatpush1.msra.mxu0 0.0
  %4728 = vmatprep.subr.mxu0 0.0
  %4729 = vmatpush1.msra.mxu0 0.0
  %4730 = vmatprep.subr.mxu0 0.0
  %4731 = vmatpush1.msra.mxu0 0.0
  %4732 = vmatprep.subr.mxu0 0.0
  %4733 = vmatpush1.msra.mxu0 0.0
  %4734 = vmatprep.subr.mxu0 0.0
  %4735 = vmatpush1.msra.mxu0 0.0
  %4736 = vmatprep.subr.mxu0 0.0
  %4737 = vmatpush1.msra.mxu0 0.0
  %4738 = vmatprep.subr.mxu0 0.0
  %4739 = vmatpush1.msra.mxu0 0.0
  %4740 = vmatprep.subr.mxu0 0.0
  %4741 = vmatpush1.msra.mxu0 0.0
  %4742 = vmatprep.subr.mxu0 0.0
  %4743 = vmatpush1.msra.mxu0 0.0
  %4744 = vmatprep.subr.mxu0 0.0
  %4745 = vmatpush1.msra.mxu0 0.0
  %4746 = vmatprep.subr.mxu0 0.0
  %4747 = vmatpush1.msra.mxu0 0.0
  %4748 = vmatprep.subr.mxu0 0.0
  %4749 = vmatpush1.msra.mxu0 0.0
  %4750 = vmatprep.subr.mxu0 0.0
  %4751 = vmatpush1.msra.mxu0 0.0
  %4752 = vmatprep.subr.mxu0 0.0
  %4753 = vmatpush1.msra.mxu0 0.0
  %4754 = vmatprep.subr.mxu0 0.0
  %4755 = vmatpush1.msra.mxu0 0.0
  %4756 = vmatprep.subr.mxu0 0.0
  %4757 = vmatpush1.msra.mxu0 0.0
  %4758 = vmatprep.subr.mxu0 0.0
  %4759 = vmatpush1.msra.mxu0 0.0
  %4760 = vmatprep.subr.mxu0 0.0
  %4761 = vmatpush1.msra.mxu0 0.0
  %4762 = vmatprep.subr.mxu0 0.0
  %4763 = vmatpush1.msra.mxu0 0.0
  %4764 = vmatprep.subr.mxu0 0.0
  %4765 = vmatpush1.msra.mxu0 0.0
  %4766 = vmatprep.subr.mxu0 0.0
  %4767 = vmatpush1.msra.mxu0 0.0
  %4768 = vmatprep.subr.mxu0 0.0
  %4769 = vmatpush1.msra.mxu0 0.0
  %4770 = vmatprep.subr.mxu0 0.0
  %4771 = vmatpush1.msra.mxu0 0.0
  %4772 = vmatprep.subr.mxu0 0.0
  %4773 = vmatpush1.msra.mxu0 0.0
  %4774 = vmatprep.subr.mxu0 0.0
  %4775 = vmatpush1.msra.mxu0 0.0
  %4776 = vmatprep.subr.mxu0 0.0
  %4777 = vmatpush1.msra.mxu0 0.0
  %4778 = vmatprep.subr.mxu0 0.0
  %4779 = vmatpush1.msra.mxu0 0.0
  %4780 = vmatprep.subr.mxu0 0.0
  %4781 = vmatpush1.msra.mxu0 0.0
  %4782 = vmatprep.mubr.f32.mxu0 0.0
  %4783 = vmatmul.mubr.f32.gmra.mrb[0].mxu0 %v4701
  %v4784 = vpop.f32.mrb[0].mxu0
  %v4785 = vadd.f32 %v4673, %v4784
  %v4786 = vpop.f32.mrb[0].mxu0
  %4787 = vmatprep.mubr.f32.mxu0 0.0
  %4788 = vmatmul.mubr.f32.gmra.mrb[0].mxu0 %v4704
  %v4789 = vpop.f32.mrb[0].mxu0
  %v4790 = vadd.f32 %v4678, %v4789
  %v4791 = vpop.f32.mrb[0].mxu0
  %4792 = vmatprep.mubr.f32.mxu0 0.0
  %4793 = vmatmul.mubr.f32.gmra.mrb[0].mxu0 %v4707
  %v4794 = vpop.f32.mrb[0].mxu0
  %v4795 = vadd.f32 %v4683, %v4794
  %v4796 = vpop.f32.mrb[0].mxu0
  %4797 = vmatprep.mubr.f32.mxu0 0.0
  %4798 = vmatmul.mubr.f32.gmra.mrb[0].mxu0 %v4710
  %v4799 = vpop.f32.mrb[0].mxu0
  %v4800 = vadd.f32 %v4688, %v4799
  %v4801 = vpop.f32.mrb[0].mxu0
  %4802 = vmatprep.mubr.f32.mxu0 0.0
  %4803 = vmatmul.mubr.f32.gmra.mrb[0].mxu0 %v4713
  %v4804 = vpop.f32.mrb[0].mxu0
  %v4805 = vadd.f32 %v4693, %v4804
  %v4806 = vpop.f32.mrb[0].mxu0
  %4807 = vmatprep.mubr.f32.mxu0 0.0
  %4808 = vmatmul.mubr.f32.gmra.mrb[0].mxu0 %v4716
  %v4809 = vpop.f32.mrb[0].mxu0
  %v4810 = vadd.f32 %v4698, %v4809
  %v4811 = vpop.f32.mrb[0].mxu0
  %4812 = vdwg.mxu0
  %v4813 = vld [vmem:[%s10] sm:$0xff]
  %v4814 = vld [vmem:[%s10 + $0x8] sm:$0xff]
  %v4815 = vld [vmem:[%s11] sm:$0xff]
  %v4816 = vld [vmem:[%s11 + $0x8] sm:$0xff]
  %4818 = vset.pattern.permute.xlu0 0
  %4819 = vperm.xlu0 %4818, %v4815
  %v4820 = vpop.permute.xlu0 %4819
  %4823 = vset.pattern.permute.xlu0 0
  %4824 = vperm.xlu0 %4823, %v4816
  %v4825 = vpop.permute.xlu0 %4824
  %vm4827 = vcmask 392192
  %v4829 = vsel %vm4827, %v4813, 0
  %v4832 = vsel %vm4827, %v4814, 0
  %4834 = vmatprep.subr.mxu0 0.0
  %4835 = vmatpush1.msra.mxu0 %v4785
  %4836 = vmatprep.subr.mxu0 0.0
  %4837 = vmatpush1.msra.mxu0 %v4790
  %4838 = vmatprep.subr.mxu0 0.0
  %4839 = vmatpush1.msra.mxu0 %v4795
  %4840 = vmatprep.subr.mxu0 0.0
  %4841 = vmatpush1.msra.mxu0 %v4800
  %4842 = vmatprep.subr.mxu0 0.0
  %4843 = vmatpush1.msra.mxu0 %v4805
  %4844 = vmatprep.subr.mxu0 0.0
  %4845 = vmatpush1.msra.mxu0 %v4810
  %4846 = vmatprep.subr.mxu0 0.0
  %4847 = vmatpush1.msra.mxu0 0.0
  %4848 = vmatprep.subr.mxu0 0.0
  %4849 = vmatpush1.msra.mxu0 0.0
  %4850 = vmatprep.subr.mxu0 0.0
  %4851 = vmatpush1.msra.mxu0 0.0
  %4852 = vmatprep.subr.mxu0 0.0
  %4853 = vmatpush1.msra.mxu0 0.0
  %4854 = vmatprep.subr.mxu0 0.0
  %4855 = vmatpush1.msra.mxu0 0.0
  %4856 = vmatprep.subr.mxu0 0.0
  %4857 = vmatpush1.msra.mxu0 0.0
  %4858 = vmatprep.subr.mxu0 0.0
  %4859 = vmatpush1.msra.mxu0 0.0
  %4860 = vmatprep.subr.mxu0 0.0
  %4861 = vmatpush1.msra.mxu0 0.0
  %4862 = vmatprep.subr.mxu0 0.0
  %4863 = vmatpush1.msra.mxu0 0.0
  %4864 = vmatprep.subr.mxu0 0.0
  %4865 = vmatpush1.msra.mxu0 0.0
  %4866 = vmatprep.subr.mxu0 0.0
  %4867 = vmatpush1.msra.mxu0 0.0
  %4868 = vmatprep.subr.mxu0 0.0
  %4869 = vmatpush1.msra.mxu0 0.0
  %4870 = vmatprep.subr.mxu0 0.0
  %4871 = vmatpush1.msra.mxu0 0.0
  %4872 = vmatprep.subr.mxu0 0.0
  %4873 = vmatpush1.msra.mxu0 0.0
  %4874 = vmatprep.subr.mxu0 0.0
  %4875 = vmatpush1.msra.mxu0 0.0
  %4876 = vmatprep.subr.mxu0 0.0
  %4877 = vmatpush1.msra.mxu0 0.0
  %4878 = vmatprep.subr.mxu0 0.0
  %4879 = vmatpush1.msra.mxu0 0.0
  %4880 = vmatprep.subr.mxu0 0.0
  %4881 = vmatpush1.msra.mxu0 0.0
  %4882 = vmatprep.subr.mxu0 0.0
  %4883 = vmatpush1.msra.mxu0 0.0
  %4884 = vmatprep.subr.mxu0 0.0
  %4885 = vmatpush1.msra.mxu0 0.0
  %4886 = vmatprep.subr.mxu0 0.0
  %4887 = vmatpush1.msra.mxu0 0.0
  %4888 = vmatprep.subr.mxu0 0.0
  %4889 = vmatpush1.msra.mxu0 0.0
  %4890 = vmatprep.subr.mxu0 0.0
  %4891 = vmatpush1.msra.mxu0 0.0
  %4892 = vmatprep.subr.mxu0 0.0
  %4893 = vmatpush1.msra.mxu0 0.0
  %4894 = vmatprep.subr.mxu0 0.0
  %4895 = vmatpush1.msra.mxu0 0.0
  %4896 = vmatprep.subr.mxu0 0.0
  %4897 = vmatpush1.msra.mxu0 0.0
  %4898 = vmatprep.mubr.f32.mxu0 0.0
  %4899 = vmatmul.mubr.f32.gmra.mrb[0].mxu0 %v4829
  %v4900 = vpop.f32.mrb[0].mxu0
  %v4901 = vadd.f32 %v4820, %v4900
  %v4902 = vpop.f32.mrb[0].mxu0
  %4903 = vmatprep.mubr.f32.mxu0 0.0
  %4904 = vmatmul.mubr.f32.gmra.mrb[0].mxu0 %v4832
  %v4905 = vpop.f32.mrb[0].mxu0
  %v4906 = vadd.f32 %v4825, %v4905
  %v4907 = vpop.f32.mrb[0].mxu0
  %4908 = vdwg.mxu0
  %vm4909 = vcmask 15360
  %v4910 = vsel %vm4909, %v4901, -inf
  %v4911 = vsel %vm4909, %v4906, -inf
  %v4912 = vmax.f32 %v4910, %v4911
  %v4913 = vrot.slane %v4912, 4
  %v4914 = vmax.f32 %v4912, %v4913
  %v4915 = vrot.slane %v4914, 2
  %v4916 = vmax.f32 %v4914, %v4915
  %v4917 = vrot.slane %v4916, 1
  %v4918 = vmax.f32 %v4916, %v4917
  %v4919 = vsub.f32 %v4901, %v4918
  %v4920 = vsub.f32 %v4906, %v4918
  %v4921 = vmul.f32 %v4919, 1.442695
  %v4922 = vpow.pop %v4921
  %v4923 = vmul.f32 %v4920, 1.442695
  %v4924 = vpow.pop %v4923
  %v4925 = vsel %vm4909, %v4922, 0.0
  %v4926 = vsel %vm4909, %v4924, 0.0
  %v4927 = vadd.f32 %v4925, %v4926
  %v4928 = vrot.slane %v4927, 4
  %v4929 = vadd.f32 %v4927, %v4928
  %v4930 = vrot.slane %v4929, 2
  %v4931 = vadd.f32 %v4929, %v4930
  %v4932 = vrot.slane %v4931, 1
  %v4933 = vadd.f32 %v4931, %v4932
  %v4934 = vlog2.pop %v4933
  %v4935 = vmul.f32 %v4934, 0.6931472
  %v4936 = vsub.f32 %v4919, %v4935
  %v4937 = vsub.f32 %v4920, %v4935
  %4938 = vst.msk [vmem:[%s12] sm:$0xff] %vm4909, %v4936
  %4939 = vst.msk [vmem:[%s12 + $0x8] sm:$0xff] %vm4909, %v4937
  // Predicated region
  $region50: #{edgespeechnet_forward.1} parent=0 // pred_check
    _
  $region51: #{edgespeechnet_forward.1} parent=0 // pred_check_branch
    %4941 = sbr.rel (0) target = $region53
  $region52: #{edgespeechnet_forward.1} parent=0 // pred_region
    _
  $region53: #{edgespeechnet_forward.1} parent=0 // pred_fallthru
    _
  // Predicated region
  $region54: #{edgespeechnet_forward.1} parent=0 // pred_check
    _
  $region55: #{edgespeechnet_forward.1} parent=0 // pred_check_branch
    %4943 = sbr.rel (0) target = $region57
  $region56: #{edgespeechnet_forward.1} parent=0 // pred_region
    _
  $region57: #{edgespeechnet_forward.1} parent=0 // pred_fallthru
    _

</llo_original>
